<compile_context>
chip_gen: v7x
topology: tpu7x:2x2x1
jax: 0.10.0
libtpu: 0.0.40
codegen_flags: <defaults>
</compile_context>

<pallas_src>
import functools

import jax
import jax.numpy as jnp
from jax import lax
from jax.experimental import pallas as pl
from jax.experimental.pallas import tpu as pltpu


def _round_up(x, m):
    return (x + m - 1) // m * m


# ----------------------------------------------------------------------------
# Fused kernel: encoder (im2col conv -> ReLU -> mean pool -> Linear -> ReLU)
# followed by a 2-layer wavefronted GRU, L2-normalize, final Linear.
# ----------------------------------------------------------------------------
def fused_kernel(x_ref, wc_ref, bc_ref, wf_ref, bf_ref,
                 wih1_ref, bih1_ref, whh1_ref, bhh1_ref,
                 w2_ref, b2_ref, wfc_ref, bfc_ref, out_ref, *,
                 t_out, win_stride, kc_pad, num_steps, batch, dp, use_l2_norm):
    NB = x_ref.shape[0]                       # = num_steps * batch (clip rows)
    x = x_ref[...]                            # (NB, Wpad) bf16, time-major flat

    # ---- Encoder: conv1d as a single lane-dense im2col matmul -------------
    # im2col row block t = 128-wide lane window starting at t*win_stride.
    # Window lanes >= K*C hit all-zero rows of wc, so no explicit zero-fill.
    windows = [x[:, t * win_stride:t * win_stride + kc_pad] for t in range(t_out)]
    im2col = jnp.concatenate(windows, axis=0)          # (t_out*NB, kc_pad), rows (t, nb)
    conv = jnp.dot(im2col, wc_ref[...], preferred_element_type=jnp.float32)
    conv = jnp.maximum(conv + bc_ref[...], 0.0)        # ReLU (inside encoder)
    # Mean pool over t: (t, nb) row order keeps the reshape tile-aligned
    # (inner dim NB is a multiple of 8) -> view + sublane-slab sum.
    pooled = conv.reshape(t_out, NB, -1).sum(axis=0) * (1.0 / t_out)

    feat = jnp.dot(pooled.astype(jnp.bfloat16), wf_ref[...],
                   preferred_element_type=jnp.float32) + bf_ref[...]
    feat = jnp.maximum(feat, 0.0)                      # forward()'s self.relu(feature)

    # ---- GRU aggregator (2 layers, PyTorch gate order r, z, n) ------------
    # Layer-1 input projection hoisted out of the recurrence (one big matmul).
    gi1 = (jnp.dot(feat.astype(jnp.bfloat16), wih1_ref[...],
                   preferred_element_type=jnp.float32) + bih1_ref[...])

    whh1 = whh1_ref[...]
    bhh1 = bhh1_ref[...]
    w2 = w2_ref[...]
    b2 = b2_ref[...]
    B, N, D = batch, num_steps, dp

    def l1_step(gi_t, h1):
        # Only the recurrent matmul sits on the serial critical path.
        gh = jnp.dot(h1.astype(jnp.bfloat16), whh1,
                     preferred_element_type=jnp.float32) + bhh1
        r = jax.nn.sigmoid(gi_t[:, 0:D] + gh[:, 0:D])          # lane-aligned slices
        z = jax.nn.sigmoid(gi_t[:, D:2 * D] + gh[:, D:2 * D])
        n = jnp.tanh(gi_t[:, 2 * D:3 * D] + r * gh[:, 2 * D:3 * D])
        return (1.0 - z) * n + z * h1

    def l2_step(h1_t, h2):
        # One stacked matmul (contraction = 2*Dp = 256):
        #   [h1_t | h2] @ w2 -> [r_ih+hh | z_ih+hh | n_ih | n_hh]
        cat = jnp.concatenate([h1_t, h2], axis=1).astype(jnp.bfloat16)
        g = jnp.dot(cat, w2, preferred_element_type=jnp.float32) + b2
        r = jax.nn.sigmoid(g[:, 0:D])
        z = jax.nn.sigmoid(g[:, D:2 * D])
        n = jnp.tanh(g[:, 2 * D:3 * D] + r * g[:, 3 * D:4 * D])
        return (1.0 - z) * n + z * h2

    # Wavefront: at wave t compute layer-1 step t and layer-2 step t-1 (two
    # independent small matmuls in flight); critical path ~N+1 instead of 2N.
    h1 = jnp.zeros((B, D), jnp.float32)
    h2 = jnp.zeros((B, D), jnp.float32)
    h1_prev = None
    for t in range(N):                                  # static unroll, N small
        h1_new = l1_step(gi1[t * B:(t + 1) * B, :], h1)
        if t >= 1:
            h2 = l2_step(h1_prev, h2)                   # independent of h1_new
        h1_prev = h1_new
        h1 = h1_new
    h2 = l2_step(h1_prev, h2)                           # layer-2, last step

    ctx = h2                                            # context[:, -1, :]
    if use_l2_norm:                                     # F.normalize(p=2, eps=1e-12)
        ss = jnp.sum(ctx * ctx, axis=1, keepdims=True)
        ctx = ctx * lax.rsqrt(jnp.maximum(ss, 1e-24))
    out_ref[...] = (jnp.dot(ctx.astype(jnp.bfloat16), wfc_ref[...],
                            preferred_element_type=jnp.float32) + bfc_ref[...])


# ----------------------------------------------------------------------------
# Forward wrapper: layout plumbing + one fused pallas_call.
# ----------------------------------------------------------------------------
def dpc_mem_classifier_forward(x, params, *, num_class, use_l2_norm=True,
                               kernel_size=7, stride=2):
    """x: (B, N, C, T) f32 -> logits (B, num_class) f32."""
    B, N, C, T = x.shape
    t_out = (T - kernel_size) // stride + 1
    assert t_out >= 1
    kc_pad = _round_up(kernel_size * C, 128)
    win_stride = stride * C
    w_pad = max(T * C, (t_out - 1) * win_stride + kc_pad)

    # Layout plumbing only: clip order (n, b) so GRU timestep rows are
    # contiguous; lane axis = T*C (lane-dense); zero-pad so every 128-wide
    # im2col window is in bounds (extra lanes hit zero rows of wc).
    # TODO(synk): at production-sized T, move this transpose into the kernel
    # (rearrange the natural (.., C, T) block in VMEM) to avoid the HBM pass.
    x_flat = jnp.transpose(x, (1, 0, 3, 2)).reshape(N * B, T * C)
    x_flat = jnp.pad(x_flat, ((0, 0), (0, w_pad - T * C))).astype(jnp.bfloat16)

    Dp = params["wf"].shape[1]
    Cp = params["wfc"].shape[1]

    kern = functools.partial(
        fused_kernel, t_out=t_out, win_stride=win_stride, kc_pad=kc_pad,
        num_steps=N, batch=B, dp=Dp, use_l2_norm=use_l2_norm)

    out = pl.pallas_call(
        kern,
        out_shape=jax.ShapeDtypeStruct((B, Cp), jnp.float32),
        in_specs=[pl.BlockSpec(memory_space=pltpu.MemorySpace.VMEM)] * 13,
        out_specs=pl.BlockSpec(memory_space=pltpu.MemorySpace.VMEM),
    )(x_flat, params["wc"], params["bc"], params["wf"], params["bf"],
      params["wih1"], params["bih1"], params["whh1"], params["bhh1"],
      params["w2"], params["b2"], params["wfc"], params["bfc"])
    return out[:, :num_class]


# ----------------------------------------------------------------------------
# Parameters: raw PyTorch-shaped params + packing (transpose / lane-pad to
# multiples of 128 / bf16 weight cast).  Zero padding keeps padded lanes 0
# through the whole network, so results equal the unpadded math.
# ----------------------------------------------------------------------------
def init_raw_params(key, *, input_channels, hidden_channels, feature_dim,
                    num_class, kernel_size):
    C, H, D, K = input_channels, hidden_channels, feature_dim, kernel_size
    ks = jax.random.split(key, 13)
    s = 0.1
    return {
        # encoder (PyTorch Conv1d / Linear shapes)
        "conv_w": s * jax.random.normal(ks[0], (H, C, K), jnp.float32),
        "conv_b": s * jax.random.normal(ks[1], (H,), jnp.float32),
        "enc_fc_w": s * jax.random.normal(ks[2], (D, H), jnp.float32),
        "enc_fc_b": s * jax.random.normal(ks[3], (D,), jnp.float32),
        # GRU (PyTorch layout: (3D, in) / (3D, D) / (3D,), gate order r,z,n)
        "w_ih_l0": s * jax.random.normal(ks[4], (3 * D, D), jnp.float32),
        "w_hh_l0": s * jax.random.normal(ks[5], (3 * D, D), jnp.float32),
        "b_ih_l0": s * jax.random.normal(ks[6], (3 * D,), jnp.float32),
        "b_hh_l0": s * jax.random.normal(ks[7], (3 * D,), jnp.float32),
        "w_ih_l1": s * jax.random.normal(ks[8], (3 * D, D), jnp.float32),
        "w_hh_l1": s * jax.random.normal(ks[9], (3 * D, D), jnp.float32),
        "b_ih_l1": s * jax.random.normal(ks[10], (3 * D,), jnp.float32),
        "b_hh_l1": s * jax.random.normal(ks[11], (3 * D,), jnp.float32),
        # final_fc: Linear(D, num_class), bias init 0.0 per module
        "fc_w": s * jax.random.normal(ks[12], (num_class, D), jnp.float32),
        "fc_b": jnp.zeros((num_class,), jnp.float32),
    }


def prepare_params(raw, *, kernel_size, input_channels, hidden_channels,
                   feature_dim, num_class):
    K, C, H, D = kernel_size, input_channels, hidden_channels, feature_dim
    Hp = _round_up(H, 128)
    Dp = _round_up(D, 128)
    Cp = _round_up(num_class, 128)
    KCp = _round_up(K * C, 128)

    def pad_to(a, shape):
        return jnp.pad(a, [(0, s - d) for d, s in zip(a.shape, shape)])

    # conv weight: (H, C, K) -> row (k*C + c), col h; rows >= K*C are zero so
    # the in-kernel 128-wide windows need no explicit zero padding.
    wc = jnp.transpose(raw["conv_w"], (2, 1, 0)).reshape(K * C, H)
    wc = pad_to(wc, (KCp, Hp)).astype(jnp.bfloat16)
    bc = pad_to(raw["conv_b"][None, :], (1, Hp)).astype(jnp.float32)
    wf = pad_to(raw["enc_fc_w"].T, (Hp, Dp)).astype(jnp.bfloat16)
    bf = pad_to(raw["enc_fc_b"][None, :], (1, Dp)).astype(jnp.float32)

    def pack_gate_w(w):                      # (3D, in) -> (Dp, 3*Dp), gate g at g*Dp
        wt = w.T
        in_dim = wt.shape[0]
        out = jnp.zeros((Dp, 3 * Dp), jnp.float32)
        for g in range(3):
            out = out.at[:in_dim, g * Dp:g * Dp + D].set(wt[:, g * D:(g + 1) * D])
        return out.astype(jnp.bfloat16)

    def pack_gate_b(b):                      # (3D,) -> (1, 3*Dp)
        out = jnp.zeros((1, 3 * Dp), jnp.float32)
        for g in range(3):
            out = out.at[0, g * Dp:g * Dp + D].set(b[g * D:(g + 1) * D])
        return out

    wih1 = pack_gate_w(raw["w_ih_l0"])
    whh1 = pack_gate_w(raw["w_hh_l0"])
    bih1 = pack_gate_b(raw["b_ih_l0"])
    bhh1 = pack_gate_b(raw["b_hh_l0"])

    # Layer-2 stacked weight (2*Dp, 4*Dp) for the wavefronted GRU:
    #   rows [0:Dp)   <- w_ih_l1.T  (input = h1_t)
    #   rows [Dp:2Dp) <- w_hh_l1.T  (input = h2_{t-1})
    #   cols [0:Dp)=r (ih+hh), [Dp:2Dp)=z (ih+hh), [2Dp:3Dp)=n_ih, [3Dp:4Dp)=n_hh
    wih2t = raw["w_ih_l1"].T
    whh2t = raw["w_hh_l1"].T
    w2 = jnp.zeros((2 * Dp, 4 * Dp), jnp.float32)
    w2 = w2.at[:D, 0:D].set(wih2t[:, 0:D])                       # r (ih)
    w2 = w2.at[Dp:Dp + D, 0:D].set(whh2t[:, 0:D])                # r (hh)
    w2 = w2.at[:D, Dp:Dp + D].set(wih2t[:, D:2 * D])             # z (ih)
    w2 = w2.at[Dp:Dp + D, Dp:Dp + D].set(whh2t[:, D:2 * D])      # z (hh)
    w2 = w2.at[:D, 2 * Dp:2 * Dp + D].set(wih2t[:, 2 * D:3 * D])         # n (ih)
    w2 = w2.at[Dp:Dp + D, 3 * Dp:3 * Dp + D].set(whh2t[:, 2 * D:3 * D])  # n (hh)
    w2 = w2.astype(jnp.bfloat16)

    bih2, bhh2 = raw["b_ih_l1"], raw["b_hh_l1"]
    b2 = jnp.zeros((1, 4 * Dp), jnp.float32)
    b2 = b2.at[0, 0:D].set(bih2[0:D] + bhh2[0:D])                        # r
    b2 = b2.at[0, Dp:Dp + D].set(bih2[D:2 * D] + bhh2[D:2 * D])          # z
    b2 = b2.at[0, 2 * Dp:2 * Dp + D].set(bih2[2 * D:3 * D])              # n (ih)
    b2 = b2.at[0, 3 * Dp:3 * Dp + D].set(bhh2[2 * D:3 * D])              # n (hh)

    wfc = pad_to(raw["fc_w"].T, (Dp, Cp)).astype(jnp.bfloat16)
    bfc = pad_to(raw["fc_b"][None, :], (1, Cp)).astype(jnp.float32)

    return {"wc": wc, "bc": bc, "wf": wf, "bf": bf,
            "wih1": wih1, "bih1": bih1, "whh1": whh1, "bhh1": bhh1,
            "w2": w2, "b2": b2, "wfc": wfc, "bfc": bfc}


# ----------------------------------------------------------------------------
# Pure-JAX f32 reference (same math, unpadded) for a correctness check.
# ----------------------------------------------------------------------------
def reference_forward(x, raw, *, feature_dim, use_l2_norm, kernel_size=7, stride=2):
    B, N, C, T = x.shape
    D = feature_dim
    xf = x.reshape(B * N, C, T)
    t_out = (T - kernel_size) // stride + 1
    idx = jnp.arange(t_out)[:, None] * stride + jnp.arange(kernel_size)[None, :]
    patches = xf[:, :, idx]                                   # (BN, C, T_out, K)
    conv = jnp.einsum("bctk,hck->bht", patches, raw["conv_w"]) \
        + raw["conv_b"][None, :, None]
    conv = jnp.maximum(conv, 0.0)
    pooled = conv.mean(axis=2)
    feat = jnp.maximum(pooled @ raw["enc_fc_w"].T + raw["enc_fc_b"], 0.0)
    feat = feat.reshape(B, N, D)

    def gru_layer(xs, w_ih, w_hh, b_ih, b_hh):
        h = jnp.zeros((xs.shape[0], D), jnp.float32)
        outs = []
        for t in range(xs.shape[1]):
            gi = xs[:, t] @ w_ih.T + b_ih
            gh = h @ w_hh.T + b_hh
            r = jax.nn.sigmoid(gi[:, :D] + gh[:, :D])
            z = jax.nn.sigmoid(gi[:, D:2 * D] + gh[:, D:2 * D])
            n = jnp.tanh(gi[:, 2 * D:] + r * gh[:, 2 * D:])
            h = (1.0 - z) * n + z * h
            outs.append(h)
        return jnp.stack(outs, axis=1)

    h1 = gru_layer(feat, raw["w_ih_l0"], raw["w_hh_l0"], raw["b_ih_l0"], raw["b_hh_l0"])
    h2 = gru_layer(h1, raw["w_ih_l1"], raw["w_hh_l1"], raw["b_ih_l1"], raw["b_hh_l1"])
    ctx = h2[:, -1, :]
    if use_l2_norm:
        ctx = ctx / jnp.maximum(
            jnp.sqrt(jnp.sum(ctx * ctx, axis=1, keepdims=True)), 1e-12)
    return ctx @ raw["fc_w"].T + raw["fc_b"]


if __name__ == "__main__":
    batch_size = 2
    num_epoch = 8          # sequence length fed to the GRU aggregator
    input_channels = 4
    T = 32                 # 1-D signal length per epoch
    hidden_channels = 16
    feature_dim = 32
    num_class = 5
    kernel_size = 7
    stride = 2

    key = jax.random.PRNGKey(0)
    k_x, k_p = jax.random.split(key)
    x = jax.random.normal(
        k_x, (batch_size, num_epoch, input_channels, T), jnp.float32)

    raw = init_raw_params(k_p, input_channels=input_channels,
                          hidden_channels=hidden_channels,
                          feature_dim=feature_dim, num_class=num_class,
                          kernel_size=kernel_size)
    params = prepare_params(raw, kernel_size=kernel_size,
                            input_channels=input_channels,
                            hidden_channels=hidden_channels,
                            feature_dim=feature_dim, num_class=num_class)

    out = dpc_mem_classifier_forward(x, params, num_class=num_class,
                                     use_l2_norm=True,
                                     kernel_size=kernel_size, stride=stride)
    out = jax.block_until_ready(out)
    assert out.shape == (batch_size, num_class), out.shape

    ref = reference_forward(x, raw, feature_dim=feature_dim, use_l2_norm=True,
                            kernel_size=kernel_size, stride=stride)
    err = float(jnp.max(jnp.abs(out - ref)))
    assert err < 5e-2, f"max abs err vs reference: {err}"
    print("KERNEL_OK")
</pallas_src>

<mosaic_0001>
module attributes {stable_mosaic.version = 11 : i64} {
  func.func @fused_kernel(%arg0: memref<16x224xbf16, #tpu.memory_space<vmem>>, %arg1: memref<128x128xbf16, #tpu.memory_space<vmem>>, %arg2: memref<1x128xf32, #tpu.memory_space<vmem>>, %arg3: memref<128x128xbf16, #tpu.memory_space<vmem>>, %arg4: memref<1x128xf32, #tpu.memory_space<vmem>>, %arg5: memref<128x384xbf16, #tpu.memory_space<vmem>>, %arg6: memref<1x384xf32, #tpu.memory_space<vmem>>, %arg7: memref<128x384xbf16, #tpu.memory_space<vmem>>, %arg8: memref<1x384xf32, #tpu.memory_space<vmem>>, %arg9: memref<256x512xbf16, #tpu.memory_space<vmem>>, %arg10: memref<1x512xf32, #tpu.memory_space<vmem>>, %arg11: memref<128x128xbf16, #tpu.memory_space<vmem>>, %arg12: memref<1x128xf32, #tpu.memory_space<vmem>>, %arg13: memref<2x128xf32, #tpu.memory_space<vmem>>) attributes {dimension_semantics = [], scalar_prefetch = 0 : i64, scratch_operands = 0 : i64, tpu.core_type = #tpu.core_type<tc>} {
    %c0 = arith.constant 0 : index
    %c0_0 = arith.constant 0 : index
    %0 = vector.load %arg0[%c0, %c0_0] : memref<16x224xbf16, #tpu.memory_space<vmem>>, vector<16x224xbf16>
    %1 = vector.extract_strided_slice %0 {offsets = [0, 0], sizes = [16, 128], strides = [1, 1]} : vector<16x224xbf16> to vector<16x128xbf16>
    %2 = vector.extract_strided_slice %0 {offsets = [0, 8], sizes = [16, 128], strides = [1, 1]} : vector<16x224xbf16> to vector<16x128xbf16>
    %3 = vector.extract_strided_slice %0 {offsets = [0, 16], sizes = [16, 128], strides = [1, 1]} : vector<16x224xbf16> to vector<16x128xbf16>
    %4 = vector.extract_strided_slice %0 {offsets = [0, 24], sizes = [16, 128], strides = [1, 1]} : vector<16x224xbf16> to vector<16x128xbf16>
    %5 = vector.extract_strided_slice %0 {offsets = [0, 32], sizes = [16, 128], strides = [1, 1]} : vector<16x224xbf16> to vector<16x128xbf16>
    %6 = vector.extract_strided_slice %0 {offsets = [0, 40], sizes = [16, 128], strides = [1, 1]} : vector<16x224xbf16> to vector<16x128xbf16>
    %7 = vector.extract_strided_slice %0 {offsets = [0, 48], sizes = [16, 128], strides = [1, 1]} : vector<16x224xbf16> to vector<16x128xbf16>
    %8 = vector.extract_strided_slice %0 {offsets = [0, 56], sizes = [16, 128], strides = [1, 1]} : vector<16x224xbf16> to vector<16x128xbf16>
    %9 = vector.extract_strided_slice %0 {offsets = [0, 64], sizes = [16, 128], strides = [1, 1]} : vector<16x224xbf16> to vector<16x128xbf16>
    %10 = vector.extract_strided_slice %0 {offsets = [0, 72], sizes = [16, 128], strides = [1, 1]} : vector<16x224xbf16> to vector<16x128xbf16>
    %11 = vector.extract_strided_slice %0 {offsets = [0, 80], sizes = [16, 128], strides = [1, 1]} : vector<16x224xbf16> to vector<16x128xbf16>
    %12 = vector.extract_strided_slice %0 {offsets = [0, 88], sizes = [16, 128], strides = [1, 1]} : vector<16x224xbf16> to vector<16x128xbf16>
    %13 = vector.extract_strided_slice %0 {offsets = [0, 96], sizes = [16, 128], strides = [1, 1]} : vector<16x224xbf16> to vector<16x128xbf16>
    %14 = tpu.concatenate %1, %2, %3, %4, %5, %6, %7, %8, %9, %10, %11, %12, %13 in 0 : vector<16x128xbf16>, vector<16x128xbf16>, vector<16x128xbf16>, vector<16x128xbf16>, vector<16x128xbf16>, vector<16x128xbf16>, vector<16x128xbf16>, vector<16x128xbf16>, vector<16x128xbf16>, vector<16x128xbf16>, vector<16x128xbf16>, vector<16x128xbf16>, vector<16x128xbf16> -> vector<208x128xbf16>
    %c0_1 = arith.constant 0 : index
    %c0_2 = arith.constant 0 : index
    %15 = vector.load %arg1[%c0_1, %c0_2] : memref<128x128xbf16, #tpu.memory_space<vmem>>, vector<128x128xbf16>
    %cst = arith.constant dense<0.000000e+00> : vector<208x128xf32>
    %16 = tpu.matmul %14, %15, %cst {dimension_numbers = #tpu.dot_dimension_numbers<[1], [0], [0], [1], [0, 0, 1, 1], [], []>} : vector<208x128xbf16>, vector<128x128xbf16>, vector<208x128xf32> -> vector<208x128xf32>
    %c0_3 = arith.constant 0 : index
    %c0_4 = arith.constant 0 : index
    %17 = vector.load %arg2[%c0_3, %c0_4] : memref<1x128xf32, #tpu.memory_space<vmem>>, vector<1x128xf32>
    %18 = vector.broadcast %17 : vector<1x128xf32> to vector<208x128xf32>
    %19 = arith.addf %16, %18 : vector<208x128xf32>
    %cst_5 = arith.constant 0.000000e+00 : f32
    %20 = vector.broadcast %cst_5 : f32 to vector<208x128xf32>
    %21 = arith.maximumf %19, %20 : vector<208x128xf32>
    %22 = vector.shape_cast %21 : vector<208x128xf32> to vector<13x16x128xf32>
    %cst_6 = arith.constant dense<0.000000e+00> : vector<16x128xf32>
    %23 = vector.multi_reduction <add>, %22, %cst_6 [0] : vector<13x16x128xf32> to vector<16x128xf32>
    %cst_7 = arith.constant 0.0769230798 : f32
    %24 = vector.broadcast %cst_7 : f32 to vector<16x128xf32>
    %25 = arith.mulf %23, %24 : vector<16x128xf32>
    %26 = arith.truncf %25 : vector<16x128xf32> to vector<16x128xbf16>
    %c0_8 = arith.constant 0 : index
    %c0_9 = arith.constant 0 : index
    %27 = vector.load %arg3[%c0_8, %c0_9] : memref<128x128xbf16, #tpu.memory_space<vmem>>, vector<128x128xbf16>
    %cst_10 = arith.constant dense<0.000000e+00> : vector<16x128xf32>
    %28 = tpu.matmul %26, %27, %cst_10 {dimension_numbers = #tpu.dot_dimension_numbers<[1], [0], [0], [1], [0, 0, 1, 1], [], []>} : vector<16x128xbf16>, vector<128x128xbf16>, vector<16x128xf32> -> vector<16x128xf32>
    %c0_11 = arith.constant 0 : index
    %c0_12 = arith.constant 0 : index
    %29 = vector.load %arg4[%c0_11, %c0_12] : memref<1x128xf32, #tpu.memory_space<vmem>>, vector<1x128xf32>
    %30 = vector.broadcast %29 : vector<1x128xf32> to vector<16x128xf32>
    %31 = arith.addf %28, %30 : vector<16x128xf32>
    %cst_13 = arith.constant 0.000000e+00 : f32
    %32 = vector.broadcast %cst_13 : f32 to vector<16x128xf32>
    %33 = arith.maximumf %31, %32 : vector<16x128xf32>
    %34 = arith.truncf %33 : vector<16x128xf32> to vector<16x128xbf16>
    %c0_14 = arith.constant 0 : index
    %c0_15 = arith.constant 0 : index
    %35 = vector.load %arg5[%c0_14, %c0_15] : memref<128x384xbf16, #tpu.memory_space<vmem>>, vector<128x384xbf16>
    %cst_16 = arith.constant dense<0.000000e+00> : vector<16x384xf32>
    %36 = tpu.matmul %34, %35, %cst_16 {dimension_numbers = #tpu.dot_dimension_numbers<[1], [0], [0], [1], [0, 0, 1, 1], [], []>} : vector<16x128xbf16>, vector<128x384xbf16>, vector<16x384xf32> -> vector<16x384xf32>
    %c0_17 = arith.constant 0 : index
    %c0_18 = arith.constant 0 : index
    %37 = vector.load %arg6[%c0_17, %c0_18] : memref<1x384xf32, #tpu.memory_space<vmem>>, vector<1x384xf32>
    %38 = vector.broadcast %37 : vector<1x384xf32> to vector<16x384xf32>
    %39 = arith.addf %36, %38 : vector<16x384xf32>
    %c0_19 = arith.constant 0 : index
    %c0_20 = arith.constant 0 : index
    %40 = vector.load %arg7[%c0_19, %c0_20] : memref<128x384xbf16, #tpu.memory_space<vmem>>, vector<128x384xbf16>
    %c0_21 = arith.constant 0 : index
    %c0_22 = arith.constant 0 : index
    %41 = vector.load %arg8[%c0_21, %c0_22] : memref<1x384xf32, #tpu.memory_space<vmem>>, vector<1x384xf32>
    %c0_23 = arith.constant 0 : index
    %c0_24 = arith.constant 0 : index
    %42 = vector.load %arg9[%c0_23, %c0_24] : memref<256x512xbf16, #tpu.memory_space<vmem>>, vector<256x512xbf16>
    %c0_25 = arith.constant 0 : index
    %c0_26 = arith.constant 0 : index
    %43 = vector.load %arg10[%c0_25, %c0_26] : memref<1x512xf32, #tpu.memory_space<vmem>>, vector<1x512xf32>
    %cst_27 = arith.constant 0.000000e+00 : f32
    %44 = vector.broadcast %cst_27 : f32 to vector<2x128xf32>
    %cst_28 = arith.constant 0.000000e+00 : f32
    %45 = vector.broadcast %cst_28 : f32 to vector<2x128xf32>
    %46 = vector.extract_strided_slice %39 {offsets = [0, 0], sizes = [2, 384], strides = [1, 1]} : vector<16x384xf32> to vector<2x384xf32>
    %47 = arith.truncf %44 : vector<2x128xf32> to vector<2x128xbf16>
    %cst_29 = arith.constant dense<0.000000e+00> : vector<2x384xf32>
    %48 = tpu.matmul %47, %40, %cst_29 {dimension_numbers = #tpu.dot_dimension_numbers<[1], [0], [0], [1], [0, 0, 1, 1], [], []>} : vector<2x128xbf16>, vector<128x384xbf16>, vector<2x384xf32> -> vector<2x384xf32>
    %49 = vector.broadcast %41 : vector<1x384xf32> to vector<2x384xf32>
    %50 = arith.addf %48, %49 : vector<2x384xf32>
    %51 = vector.extract_strided_slice %46 {offsets = [0, 0], sizes = [2, 128], strides = [1, 1]} : vector<2x384xf32> to vector<2x128xf32>
    %52 = vector.extract_strided_slice %50 {offsets = [0, 0], sizes = [2, 128], strides = [1, 1]} : vector<2x384xf32> to vector<2x128xf32>
    %53 = arith.addf %51, %52 : vector<2x128xf32>
    %54 = arith.negf %53 : vector<2x128xf32>
    %55 = math.exp %54 : vector<2x128xf32>
    %cst_30 = arith.constant 1.000000e+00 : f32
    %56 = vector.broadcast %cst_30 : f32 to vector<2x128xf32>
    %57 = arith.addf %56, %55 : vector<2x128xf32>
    %58 = arith.divf %56, %57 : vector<2x128xf32>
    %59 = vector.extract_strided_slice %46 {offsets = [0, 128], sizes = [2, 128], strides = [1, 1]} : vector<2x384xf32> to vector<2x128xf32>
    %60 = vector.extract_strided_slice %50 {offsets = [0, 128], sizes = [2, 128], strides = [1, 1]} : vector<2x384xf32> to vector<2x128xf32>
    %61 = arith.addf %59, %60 : vector<2x128xf32>
    %62 = arith.negf %61 : vector<2x128xf32>
    %63 = math.exp %62 : vector<2x128xf32>
    %cst_31 = arith.constant 1.000000e+00 : f32
    %64 = vector.broadcast %cst_31 : f32 to vector<2x128xf32>
    %65 = arith.addf %64, %63 : vector<2x128xf32>
    %66 = arith.divf %64, %65 : vector<2x128xf32>
    %67 = vector.extract_strided_slice %46 {offsets = [0, 256], sizes = [2, 128], strides = [1, 1]} : vector<2x384xf32> to vector<2x128xf32>
    %68 = vector.extract_strided_slice %50 {offsets = [0, 256], sizes = [2, 128], strides = [1, 1]} : vector<2x384xf32> to vector<2x128xf32>
    %69 = arith.mulf %58, %68 : vector<2x128xf32>
    %70 = arith.addf %67, %69 : vector<2x128xf32>
    %71 = math.tanh %70 : vector<2x128xf32>
    %cst_32 = arith.constant 1.000000e+00 : f32
    %72 = vector.broadcast %cst_32 : f32 to vector<2x128xf32>
    %73 = arith.subf %72, %66 : vector<2x128xf32>
    %74 = arith.mulf %73, %71 : vector<2x128xf32>
    %75 = arith.mulf %66, %44 : vector<2x128xf32>
    %76 = arith.addf %74, %75 : vector<2x128xf32>
    %77 = vector.extract_strided_slice %39 {offsets = [2, 0], sizes = [2, 384], strides = [1, 1]} : vector<16x384xf32> to vector<2x384xf32>
    %78 = arith.truncf %76 : vector<2x128xf32> to vector<2x128xbf16>
    %cst_33 = arith.constant dense<0.000000e+00> : vector<2x384xf32>
    %79 = tpu.matmul %78, %40, %cst_33 {dimension_numbers = #tpu.dot_dimension_numbers<[1], [0], [0], [1], [0, 0, 1, 1], [], []>} : vector<2x128xbf16>, vector<128x384xbf16>, vector<2x384xf32> -> vector<2x384xf32>
    %80 = vector.broadcast %41 : vector<1x384xf32> to vector<2x384xf32>
    %81 = arith.addf %79, %80 : vector<2x384xf32>
    %82 = vector.extract_strided_slice %77 {offsets = [0, 0], sizes = [2, 128], strides = [1, 1]} : vector<2x384xf32> to vector<2x128xf32>
    %83 = vector.extract_strided_slice %81 {offsets = [0, 0], sizes = [2, 128], strides = [1, 1]} : vector<2x384xf32> to vector<2x128xf32>
    %84 = arith.addf %82, %83 : vector<2x128xf32>
    %85 = arith.negf %84 : vector<2x128xf32>
    %86 = math.exp %85 : vector<2x128xf32>
    %cst_34 = arith.constant 1.000000e+00 : f32
    %87 = vector.broadcast %cst_34 : f32 to vector<2x128xf32>
    %88 = arith.addf %87, %86 : vector<2x128xf32>
    %89 = arith.divf %87, %88 : vector<2x128xf32>
    %90 = vector.extract_strided_slice %77 {offsets = [0, 128], sizes = [2, 128], strides = [1, 1]} : vector<2x384xf32> to vector<2x128xf32>
    %91 = vector.extract_strided_slice %81 {offsets = [0, 128], sizes = [2, 128], strides = [1, 1]} : vector<2x384xf32> to vector<2x128xf32>
    %92 = arith.addf %90, %91 : vector<2x128xf32>
    %93 = arith.negf %92 : vector<2x128xf32>
    %94 = math.exp %93 : vector<2x128xf32>
    %cst_35 = arith.constant 1.000000e+00 : f32
    %95 = vector.broadcast %cst_35 : f32 to vector<2x128xf32>
    %96 = arith.addf %95, %94 : vector<2x128xf32>
    %97 = arith.divf %95, %96 : vector<2x128xf32>
    %98 = vector.extract_strided_slice %77 {offsets = [0, 256], sizes = [2, 128], strides = [1, 1]} : vector<2x384xf32> to vector<2x128xf32>
    %99 = vector.extract_strided_slice %81 {offsets = [0, 256], sizes = [2, 128], strides = [1, 1]} : vector<2x384xf32> to vector<2x128xf32>
    %100 = arith.mulf %89, %99 : vector<2x128xf32>
    %101 = arith.addf %98, %100 : vector<2x128xf32>
    %102 = math.tanh %101 : vector<2x128xf32>
    %cst_36 = arith.constant 1.000000e+00 : f32
    %103 = vector.broadcast %cst_36 : f32 to vector<2x128xf32>
    %104 = arith.subf %103, %97 : vector<2x128xf32>
    %105 = arith.mulf %104, %102 : vector<2x128xf32>
    %106 = arith.mulf %97, %76 : vector<2x128xf32>
    %107 = arith.addf %105, %106 : vector<2x128xf32>
    %108 = tpu.concatenate %76, %45 in 1 : vector<2x128xf32>, vector<2x128xf32> -> vector<2x256xf32>
    %109 = arith.truncf %108 : vector<2x256xf32> to vector<2x256xbf16>
    %cst_37 = arith.constant dense<0.000000e+00> : vector<2x512xf32>
    %110 = tpu.matmul %109, %42, %cst_37 {dimension_numbers = #tpu.dot_dimension_numbers<[1], [0], [0], [1], [0, 0, 1, 1], [], []>} : vector<2x256xbf16>, vector<256x512xbf16>, vector<2x512xf32> -> vector<2x512xf32>
    %111 = vector.broadcast %43 : vector<1x512xf32> to vector<2x512xf32>
    %112 = arith.addf %110, %111 : vector<2x512xf32>
    %113 = vector.extract_strided_slice %112 {offsets = [0, 0], sizes = [2, 128], strides = [1, 1]} : vector<2x512xf32> to vector<2x128xf32>
    %114 = arith.negf %113 : vector<2x128xf32>
    %115 = math.exp %114 : vector<2x128xf32>
    %cst_38 = arith.constant 1.000000e+00 : f32
    %116 = vector.broadcast %cst_38 : f32 to vector<2x128xf32>
    %117 = arith.addf %116, %115 : vector<2x128xf32>
    %118 = arith.divf %116, %117 : vector<2x128xf32>
    %119 = vector.extract_strided_slice %112 {offsets = [0, 128], sizes = [2, 128], strides = [1, 1]} : vector<2x512xf32> to vector<2x128xf32>
    %120 = arith.negf %119 : vector<2x128xf32>
    %121 = math.exp %120 : vector<2x128xf32>
    %cst_39 = arith.constant 1.000000e+00 : f32
    %122 = vector.broadcast %cst_39 : f32 to vector<2x128xf32>
    %123 = arith.addf %122, %121 : vector<2x128xf32>
    %124 = arith.divf %122, %123 : vector<2x128xf32>
    %125 = vector.extract_strided_slice %112 {offsets = [0, 256], sizes = [2, 128], strides = [1, 1]} : vector<2x512xf32> to vector<2x128xf32>
    %126 = vector.extract_strided_slice %112 {offsets = [0, 384], sizes = [2, 128], strides = [1, 1]} : vector<2x512xf32> to vector<2x128xf32>
    %127 = arith.mulf %118, %126 : vector<2x128xf32>
    %128 = arith.addf %125, %127 : vector<2x128xf32>
    %129 = math.tanh %128 : vector<2x128xf32>
    %cst_40 = arith.constant 1.000000e+00 : f32
    %130 = vector.broadcast %cst_40 : f32 to vector<2x128xf32>
    %131 = arith.subf %130, %124 : vector<2x128xf32>
    %132 = arith.mulf %131, %129 : vector<2x128xf32>
    %133 = arith.mulf %124, %45 : vector<2x128xf32>
    %134 = arith.addf %132, %133 : vector<2x128xf32>
    %135 = vector.extract_strided_slice %39 {offsets = [4, 0], sizes = [2, 384], strides = [1, 1]} : vector<16x384xf32> to vector<2x384xf32>
    %136 = arith.truncf %107 : vector<2x128xf32> to vector<2x128xbf16>
    %cst_41 = arith.constant dense<0.000000e+00> : vector<2x384xf32>
    %137 = tpu.matmul %136, %40, %cst_41 {dimension_numbers = #tpu.dot_dimension_numbers<[1], [0], [0], [1], [0, 0, 1, 1], [], []>} : vector<2x128xbf16>, vector<128x384xbf16>, vector<2x384xf32> -> vector<2x384xf32>
    %138 = vector.broadcast %41 : vector<1x384xf32> to vector<2x384xf32>
    %139 = arith.addf %137, %138 : vector<2x384xf32>
    %140 = vector.extract_strided_slice %135 {offsets = [0, 0], sizes = [2, 128], strides = [1, 1]} : vector<2x384xf32> to vector<2x128xf32>
    %141 = vector.extract_strided_slice %139 {offsets = [0, 0], sizes = [2, 128], strides = [1, 1]} : vector<2x384xf32> to vector<2x128xf32>
    %142 = arith.addf %140, %141 : vector<2x128xf32>
    %143 = arith.negf %142 : vector<2x128xf32>
    %144 = math.exp %143 : vector<2x128xf32>
    %cst_42 = arith.constant 1.000000e+00 : f32
    %145 = vector.broadcast %cst_42 : f32 to vector<2x128xf32>
    %146 = arith.addf %145, %144 : vector<2x128xf32>
    %147 = arith.divf %145, %146 : vector<2x128xf32>
    %148 = vector.extract_strided_slice %135 {offsets = [0, 128], sizes = [2, 128], strides = [1, 1]} : vector<2x384xf32> to vector<2x128xf32>
    %149 = vector.extract_strided_slice %139 {offsets = [0, 128], sizes = [2, 128], strides = [1, 1]} : vector<2x384xf32> to vector<2x128xf32>
    %150 = arith.addf %148, %149 : vector<2x128xf32>
    %151 = arith.negf %150 : vector<2x128xf32>
    %152 = math.exp %151 : vector<2x128xf32>
    %cst_43 = arith.constant 1.000000e+00 : f32
    %153 = vector.broadcast %cst_43 : f32 to vector<2x128xf32>
    %154 = arith.addf %153, %152 : vector<2x128xf32>
    %155 = arith.divf %153, %154 : vector<2x128xf32>
    %156 = vector.extract_strided_slice %135 {offsets = [0, 256], sizes = [2, 128], strides = [1, 1]} : vector<2x384xf32> to vector<2x128xf32>
    %157 = vector.extract_strided_slice %139 {offsets = [0, 256], sizes = [2, 128], strides = [1, 1]} : vector<2x384xf32> to vector<2x128xf32>
    %158 = arith.mulf %147, %157 : vector<2x128xf32>
    %159 = arith.addf %156, %158 : vector<2x128xf32>
    %160 = math.tanh %159 : vector<2x128xf32>
    %cst_44 = arith.constant 1.000000e+00 : f32
    %161 = vector.broadcast %cst_44 : f32 to vector<2x128xf32>
    %162 = arith.subf %161, %155 : vector<2x128xf32>
    %163 = arith.mulf %162, %160 : vector<2x128xf32>
    %164 = arith.mulf %155, %107 : vector<2x128xf32>
    %165 = arith.addf %163, %164 : vector<2x128xf32>
    %166 = tpu.concatenate %107, %134 in 1 : vector<2x128xf32>, vector<2x128xf32> -> vector<2x256xf32>
    %167 = arith.truncf %166 : vector<2x256xf32> to vector<2x256xbf16>
    %cst_45 = arith.constant dense<0.000000e+00> : vector<2x512xf32>
    %168 = tpu.matmul %167, %42, %cst_45 {dimension_numbers = #tpu.dot_dimension_numbers<[1], [0], [0], [1], [0, 0, 1, 1], [], []>} : vector<2x256xbf16>, vector<256x512xbf16>, vector<2x512xf32> -> vector<2x512xf32>
    %169 = vector.broadcast %43 : vector<1x512xf32> to vector<2x512xf32>
    %170 = arith.addf %168, %169 : vector<2x512xf32>
    %171 = vector.extract_strided_slice %170 {offsets = [0, 0], sizes = [2, 128], strides = [1, 1]} : vector<2x512xf32> to vector<2x128xf32>
    %172 = arith.negf %171 : vector<2x128xf32>
    %173 = math.exp %172 : vector<2x128xf32>
    %cst_46 = arith.constant 1.000000e+00 : f32
    %174 = vector.broadcast %cst_46 : f32 to vector<2x128xf32>
    %175 = arith.addf %174, %173 : vector<2x128xf32>
    %176 = arith.divf %174, %175 : vector<2x128xf32>
    %177 = vector.extract_strided_slice %170 {offsets = [0, 128], sizes = [2, 128], strides = [1, 1]} : vector<2x512xf32> to vector<2x128xf32>
    %178 = arith.negf %177 : vector<2x128xf32>
    %179 = math.exp %178 : vector<2x128xf32>
    %cst_47 = arith.constant 1.000000e+00 : f32
    %180 = vector.broadcast %cst_47 : f32 to vector<2x128xf32>
    %181 = arith.addf %180, %179 : vector<2x128xf32>
    %182 = arith.divf %180, %181 : vector<2x128xf32>
    %183 = vector.extract_strided_slice %170 {offsets = [0, 256], sizes = [2, 128], strides = [1, 1]} : vector<2x512xf32> to vector<2x128xf32>
    %184 = vector.extract_strided_slice %170 {offsets = [0, 384], sizes = [2, 128], strides = [1, 1]} : vector<2x512xf32> to vector<2x128xf32>
    %185 = arith.mulf %176, %184 : vector<2x128xf32>
    %186 = arith.addf %183, %185 : vector<2x128xf32>
    %187 = math.tanh %186 : vector<2x128xf32>
    %cst_48 = arith.constant 1.000000e+00 : f32
    %188 = vector.broadcast %cst_48 : f32 to vector<2x128xf32>
    %189 = arith.subf %188, %182 : vector<2x128xf32>
    %190 = arith.mulf %189, %187 : vector<2x128xf32>
    %191 = arith.mulf %182, %134 : vector<2x128xf32>
    %192 = arith.addf %190, %191 : vector<2x128xf32>
    %193 = vector.extract_strided_slice %39 {offsets = [6, 0], sizes = [2, 384], strides = [1, 1]} : vector<16x384xf32> to vector<2x384xf32>
    %194 = arith.truncf %165 : vector<2x128xf32> to vector<2x128xbf16>
    %cst_49 = arith.constant dense<0.000000e+00> : vector<2x384xf32>
    %195 = tpu.matmul %194, %40, %cst_49 {dimension_numbers = #tpu.dot_dimension_numbers<[1], [0], [0], [1], [0, 0, 1, 1], [], []>} : vector<2x128xbf16>, vector<128x384xbf16>, vector<2x384xf32> -> vector<2x384xf32>
    %196 = vector.broadcast %41 : vector<1x384xf32> to vector<2x384xf32>
    %197 = arith.addf %195, %196 : vector<2x384xf32>
    %198 = vector.extract_strided_slice %193 {offsets = [0, 0], sizes = [2, 128], strides = [1, 1]} : vector<2x384xf32> to vector<2x128xf32>
    %199 = vector.extract_strided_slice %197 {offsets = [0, 0], sizes = [2, 128], strides = [1, 1]} : vector<2x384xf32> to vector<2x128xf32>
    %200 = arith.addf %198, %199 : vector<2x128xf32>
    %201 = arith.negf %200 : vector<2x128xf32>
    %202 = math.exp %201 : vector<2x128xf32>
    %cst_50 = arith.constant 1.000000e+00 : f32
    %203 = vector.broadcast %cst_50 : f32 to vector<2x128xf32>
    %204 = arith.addf %203, %202 : vector<2x128xf32>
    %205 = arith.divf %203, %204 : vector<2x128xf32>
    %206 = vector.extract_strided_slice %193 {offsets = [0, 128], sizes = [2, 128], strides = [1, 1]} : vector<2x384xf32> to vector<2x128xf32>
    %207 = vector.extract_strided_slice %197 {offsets = [0, 128], sizes = [2, 128], strides = [1, 1]} : vector<2x384xf32> to vector<2x128xf32>
    %208 = arith.addf %206, %207 : vector<2x128xf32>
    %209 = arith.negf %208 : vector<2x128xf32>
    %210 = math.exp %209 : vector<2x128xf32>
    %cst_51 = arith.constant 1.000000e+00 : f32
    %211 = vector.broadcast %cst_51 : f32 to vector<2x128xf32>
    %212 = arith.addf %211, %210 : vector<2x128xf32>
    %213 = arith.divf %211, %212 : vector<2x128xf32>
    %214 = vector.extract_strided_slice %193 {offsets = [0, 256], sizes = [2, 128], strides = [1, 1]} : vector<2x384xf32> to vector<2x128xf32>
    %215 = vector.extract_strided_slice %197 {offsets = [0, 256], sizes = [2, 128], strides = [1, 1]} : vector<2x384xf32> to vector<2x128xf32>
    %216 = arith.mulf %205, %215 : vector<2x128xf32>
    %217 = arith.addf %214, %216 : vector<2x128xf32>
    %218 = math.tanh %217 : vector<2x128xf32>
    %cst_52 = arith.constant 1.000000e+00 : f32
    %219 = vector.broadcast %cst_52 : f32 to vector<2x128xf32>
    %220 = arith.subf %219, %213 : vector<2x128xf32>
    %221 = arith.mulf %220, %218 : vector<2x128xf32>
    %222 = arith.mulf %213, %165 : vector<2x128xf32>
    %223 = arith.addf %221, %222 : vector<2x128xf32>
    %224 = tpu.concatenate %165, %192 in 1 : vector<2x128xf32>, vector<2x128xf32> -> vector<2x256xf32>
    %225 = arith.truncf %224 : vector<2x256xf32> to vector<2x256xbf16>
    %cst_53 = arith.constant dense<0.000000e+00> : vector<2x512xf32>
    %226 = tpu.matmul %225, %42, %cst_53 {dimension_numbers = #tpu.dot_dimension_numbers<[1], [0], [0], [1], [0, 0, 1, 1], [], []>} : vector<2x256xbf16>, vector<256x512xbf16>, vector<2x512xf32> -> vector<2x512xf32>
    %227 = vector.broadcast %43 : vector<1x512xf32> to vector<2x512xf32>
    %228 = arith.addf %226, %227 : vector<2x512xf32>
    %229 = vector.extract_strided_slice %228 {offsets = [0, 0], sizes = [2, 128], strides = [1, 1]} : vector<2x512xf32> to vector<2x128xf32>
    %230 = arith.negf %229 : vector<2x128xf32>
    %231 = math.exp %230 : vector<2x128xf32>
    %cst_54 = arith.constant 1.000000e+00 : f32
    %232 = vector.broadcast %cst_54 : f32 to vector<2x128xf32>
    %233 = arith.addf %232, %231 : vector<2x128xf32>
    %234 = arith.divf %232, %233 : vector<2x128xf32>
    %235 = vector.extract_strided_slice %228 {offsets = [0, 128], sizes = [2, 128], strides = [1, 1]} : vector<2x512xf32> to vector<2x128xf32>
    %236 = arith.negf %235 : vector<2x128xf32>
    %237 = math.exp %236 : vector<2x128xf32>
    %cst_55 = arith.constant 1.000000e+00 : f32
    %238 = vector.broadcast %cst_55 : f32 to vector<2x128xf32>
    %239 = arith.addf %238, %237 : vector<2x128xf32>
    %240 = arith.divf %238, %239 : vector<2x128xf32>
    %241 = vector.extract_strided_slice %228 {offsets = [0, 256], sizes = [2, 128], strides = [1, 1]} : vector<2x512xf32> to vector<2x128xf32>
    %242 = vector.extract_strided_slice %228 {offsets = [0, 384], sizes = [2, 128], strides = [1, 1]} : vector<2x512xf32> to vector<2x128xf32>
    %243 = arith.mulf %234, %242 : vector<2x128xf32>
    %244 = arith.addf %241, %243 : vector<2x128xf32>
    %245 = math.tanh %244 : vector<2x128xf32>
    %cst_56 = arith.constant 1.000000e+00 : f32
    %246 = vector.broadcast %cst_56 : f32 to vector<2x128xf32>
    %247 = arith.subf %246, %240 : vector<2x128xf32>
    %248 = arith.mulf %247, %245 : vector<2x128xf32>
    %249 = arith.mulf %240, %192 : vector<2x128xf32>
    %250 = arith.addf %248, %249 : vector<2x128xf32>
    %251 = vector.extract_strided_slice %39 {offsets = [8, 0], sizes = [2, 384], strides = [1, 1]} : vector<16x384xf32> to vector<2x384xf32>
    %252 = arith.truncf %223 : vector<2x128xf32> to vector<2x128xbf16>
    %cst_57 = arith.constant dense<0.000000e+00> : vector<2x384xf32>
    %253 = tpu.matmul %252, %40, %cst_57 {dimension_numbers = #tpu.dot_dimension_numbers<[1], [0], [0], [1], [0, 0, 1, 1], [], []>} : vector<2x128xbf16>, vector<128x384xbf16>, vector<2x384xf32> -> vector<2x384xf32>
    %254 = vector.broadcast %41 : vector<1x384xf32> to vector<2x384xf32>
    %255 = arith.addf %253, %254 : vector<2x384xf32>
    %256 = vector.extract_strided_slice %251 {offsets = [0, 0], sizes = [2, 128], strides = [1, 1]} : vector<2x384xf32> to vector<2x128xf32>
    %257 = vector.extract_strided_slice %255 {offsets = [0, 0], sizes = [2, 128], strides = [1, 1]} : vector<2x384xf32> to vector<2x128xf32>
    %258 = arith.addf %256, %257 : vector<2x128xf32>
    %259 = arith.negf %258 : vector<2x128xf32>
    %260 = math.exp %259 : vector<2x128xf32>
    %cst_58 = arith.constant 1.000000e+00 : f32
    %261 = vector.broadcast %cst_58 : f32 to vector<2x128xf32>
    %262 = arith.addf %261, %260 : vector<2x128xf32>
    %263 = arith.divf %261, %262 : vector<2x128xf32>
    %264 = vector.extract_strided_slice %251 {offsets = [0, 128], sizes = [2, 128], strides = [1, 1]} : vector<2x384xf32> to vector<2x128xf32>
    %265 = vector.extract_strided_slice %255 {offsets = [0, 128], sizes = [2, 128], strides = [1, 1]} : vector<2x384xf32> to vector<2x128xf32>
    %266 = arith.addf %264, %265 : vector<2x128xf32>
    %267 = arith.negf %266 : vector<2x128xf32>
    %268 = math.exp %267 : vector<2x128xf32>
    %cst_59 = arith.constant 1.000000e+00 : f32
    %269 = vector.broadcast %cst_59 : f32 to vector<2x128xf32>
    %270 = arith.addf %269, %268 : vector<2x128xf32>
    %271 = arith.divf %269, %270 : vector<2x128xf32>
    %272 = vector.extract_strided_slice %251 {offsets = [0, 256], sizes = [2, 128], strides = [1, 1]} : vector<2x384xf32> to vector<2x128xf32>
    %273 = vector.extract_strided_slice %255 {offsets = [0, 256], sizes = [2, 128], strides = [1, 1]} : vector<2x384xf32> to vector<2x128xf32>
    %274 = arith.mulf %263, %273 : vector<2x128xf32>
    %275 = arith.addf %272, %274 : vector<2x128xf32>
    %276 = math.tanh %275 : vector<2x128xf32>
    %cst_60 = arith.constant 1.000000e+00 : f32
    %277 = vector.broadcast %cst_60 : f32 to vector<2x128xf32>
    %278 = arith.subf %277, %271 : vector<2x128xf32>
    %279 = arith.mulf %278, %276 : vector<2x128xf32>
    %280 = arith.mulf %271, %223 : vector<2x128xf32>
    %281 = arith.addf %279, %280 : vector<2x128xf32>
    %282 = tpu.concatenate %223, %250 in 1 : vector<2x128xf32>, vector<2x128xf32> -> vector<2x256xf32>
    %283 = arith.truncf %282 : vector<2x256xf32> to vector<2x256xbf16>
    %cst_61 = arith.constant dense<0.000000e+00> : vector<2x512xf32>
    %284 = tpu.matmul %283, %42, %cst_61 {dimension_numbers = #tpu.dot_dimension_numbers<[1], [0], [0], [1], [0, 0, 1, 1], [], []>} : vector<2x256xbf16>, vector<256x512xbf16>, vector<2x512xf32> -> vector<2x512xf32>
    %285 = vector.broadcast %43 : vector<1x512xf32> to vector<2x512xf32>
    %286 = arith.addf %284, %285 : vector<2x512xf32>
    %287 = vector.extract_strided_slice %286 {offsets = [0, 0], sizes = [2, 128], strides = [1, 1]} : vector<2x512xf32> to vector<2x128xf32>
    %288 = arith.negf %287 : vector<2x128xf32>
    %289 = math.exp %288 : vector<2x128xf32>
    %cst_62 = arith.constant 1.000000e+00 : f32
    %290 = vector.broadcast %cst_62 : f32 to vector<2x128xf32>
    %291 = arith.addf %290, %289 : vector<2x128xf32>
    %292 = arith.divf %290, %291 : vector<2x128xf32>
    %293 = vector.extract_strided_slice %286 {offsets = [0, 128], sizes = [2, 128], strides = [1, 1]} : vector<2x512xf32> to vector<2x128xf32>
    %294 = arith.negf %293 : vector<2x128xf32>
    %295 = math.exp %294 : vector<2x128xf32>
    %cst_63 = arith.constant 1.000000e+00 : f32
    %296 = vector.broadcast %cst_63 : f32 to vector<2x128xf32>
    %297 = arith.addf %296, %295 : vector<2x128xf32>
    %298 = arith.divf %296, %297 : vector<2x128xf32>
    %299 = vector.extract_strided_slice %286 {offsets = [0, 256], sizes = [2, 128], strides = [1, 1]} : vector<2x512xf32> to vector<2x128xf32>
    %300 = vector.extract_strided_slice %286 {offsets = [0, 384], sizes = [2, 128], strides = [1, 1]} : vector<2x512xf32> to vector<2x128xf32>
    %301 = arith.mulf %292, %300 : vector<2x128xf32>
    %302 = arith.addf %299, %301 : vector<2x128xf32>
    %303 = math.tanh %302 : vector<2x128xf32>
    %cst_64 = arith.constant 1.000000e+00 : f32
    %304 = vector.broadcast %cst_64 : f32 to vector<2x128xf32>
    %305 = arith.subf %304, %298 : vector<2x128xf32>
    %306 = arith.mulf %305, %303 : vector<2x128xf32>
    %307 = arith.mulf %298, %250 : vector<2x128xf32>
    %308 = arith.addf %306, %307 : vector<2x128xf32>
    %309 = vector.extract_strided_slice %39 {offsets = [10, 0], sizes = [2, 384], strides = [1, 1]} : vector<16x384xf32> to vector<2x384xf32>
    %310 = arith.truncf %281 : vector<2x128xf32> to vector<2x128xbf16>
    %cst_65 = arith.constant dense<0.000000e+00> : vector<2x384xf32>
    %311 = tpu.matmul %310, %40, %cst_65 {dimension_numbers = #tpu.dot_dimension_numbers<[1], [0], [0], [1], [0, 0, 1, 1], [], []>} : vector<2x128xbf16>, vector<128x384xbf16>, vector<2x384xf32> -> vector<2x384xf32>
    %312 = vector.broadcast %41 : vector<1x384xf32> to vector<2x384xf32>
    %313 = arith.addf %311, %312 : vector<2x384xf32>
    %314 = vector.extract_strided_slice %309 {offsets = [0, 0], sizes = [2, 128], strides = [1, 1]} : vector<2x384xf32> to vector<2x128xf32>
    %315 = vector.extract_strided_slice %313 {offsets = [0, 0], sizes = [2, 128], strides = [1, 1]} : vector<2x384xf32> to vector<2x128xf32>
    %316 = arith.addf %314, %315 : vector<2x128xf32>
    %317 = arith.negf %316 : vector<2x128xf32>
    %318 = math.exp %317 : vector<2x128xf32>
    %cst_66 = arith.constant 1.000000e+00 : f32
    %319 = vector.broadcast %cst_66 : f32 to vector<2x128xf32>
    %320 = arith.addf %319, %318 : vector<2x128xf32>
    %321 = arith.divf %319, %320 : vector<2x128xf32>
    %322 = vector.extract_strided_slice %309 {offsets = [0, 128], sizes = [2, 128], strides = [1, 1]} : vector<2x384xf32> to vector<2x128xf32>
    %323 = vector.extract_strided_slice %313 {offsets = [0, 128], sizes = [2, 128], strides = [1, 1]} : vector<2x384xf32> to vector<2x128xf32>
    %324 = arith.addf %322, %323 : vector<2x128xf32>
    %325 = arith.negf %324 : vector<2x128xf32>
    %326 = math.exp %325 : vector<2x128xf32>
    %cst_67 = arith.constant 1.000000e+00 : f32
    %327 = vector.broadcast %cst_67 : f32 to vector<2x128xf32>
    %328 = arith.addf %327, %326 : vector<2x128xf32>
    %329 = arith.divf %327, %328 : vector<2x128xf32>
    %330 = vector.extract_strided_slice %309 {offsets = [0, 256], sizes = [2, 128], strides = [1, 1]} : vector<2x384xf32> to vector<2x128xf32>
    %331 = vector.extract_strided_slice %313 {offsets = [0, 256], sizes = [2, 128], strides = [1, 1]} : vector<2x384xf32> to vector<2x128xf32>
    %332 = arith.mulf %321, %331 : vector<2x128xf32>
    %333 = arith.addf %330, %332 : vector<2x128xf32>
    %334 = math.tanh %333 : vector<2x128xf32>
    %cst_68 = arith.constant 1.000000e+00 : f32
    %335 = vector.broadcast %cst_68 : f32 to vector<2x128xf32>
    %336 = arith.subf %335, %329 : vector<2x128xf32>
    %337 = arith.mulf %336, %334 : vector<2x128xf32>
    %338 = arith.mulf %329, %281 : vector<2x128xf32>
    %339 = arith.addf %337, %338 : vector<2x128xf32>
    %340 = tpu.concatenate %281, %308 in 1 : vector<2x128xf32>, vector<2x128xf32> -> vector<2x256xf32>
    %341 = arith.truncf %340 : vector<2x256xf32> to vector<2x256xbf16>
    %cst_69 = arith.constant dense<0.000000e+00> : vector<2x512xf32>
    %342 = tpu.matmul %341, %42, %cst_69 {dimension_numbers = #tpu.dot_dimension_numbers<[1], [0], [0], [1], [0, 0, 1, 1], [], []>} : vector<2x256xbf16>, vector<256x512xbf16>, vector<2x512xf32> -> vector<2x512xf32>
    %343 = vector.broadcast %43 : vector<1x512xf32> to vector<2x512xf32>
    %344 = arith.addf %342, %343 : vector<2x512xf32>
    %345 = vector.extract_strided_slice %344 {offsets = [0, 0], sizes = [2, 128], strides = [1, 1]} : vector<2x512xf32> to vector<2x128xf32>
    %346 = arith.negf %345 : vector<2x128xf32>
    %347 = math.exp %346 : vector<2x128xf32>
    %cst_70 = arith.constant 1.000000e+00 : f32
    %348 = vector.broadcast %cst_70 : f32 to vector<2x128xf32>
    %349 = arith.addf %348, %347 : vector<2x128xf32>
    %350 = arith.divf %348, %349 : vector<2x128xf32>
    %351 = vector.extract_strided_slice %344 {offsets = [0, 128], sizes = [2, 128], strides = [1, 1]} : vector<2x512xf32> to vector<2x128xf32>
    %352 = arith.negf %351 : vector<2x128xf32>
    %353 = math.exp %352 : vector<2x128xf32>
    %cst_71 = arith.constant 1.000000e+00 : f32
    %354 = vector.broadcast %cst_71 : f32 to vector<2x128xf32>
    %355 = arith.addf %354, %353 : vector<2x128xf32>
    %356 = arith.divf %354, %355 : vector<2x128xf32>
    %357 = vector.extract_strided_slice %344 {offsets = [0, 256], sizes = [2, 128], strides = [1, 1]} : vector<2x512xf32> to vector<2x128xf32>
    %358 = vector.extract_strided_slice %344 {offsets = [0, 384], sizes = [2, 128], strides = [1, 1]} : vector<2x512xf32> to vector<2x128xf32>
    %359 = arith.mulf %350, %358 : vector<2x128xf32>
    %360 = arith.addf %357, %359 : vector<2x128xf32>
    %361 = math.tanh %360 : vector<2x128xf32>
    %cst_72 = arith.constant 1.000000e+00 : f32
    %362 = vector.broadcast %cst_72 : f32 to vector<2x128xf32>
    %363 = arith.subf %362, %356 : vector<2x128xf32>
    %364 = arith.mulf %363, %361 : vector<2x128xf32>
    %365 = arith.mulf %356, %308 : vector<2x128xf32>
    %366 = arith.addf %364, %365 : vector<2x128xf32>
    %367 = vector.extract_strided_slice %39 {offsets = [12, 0], sizes = [2, 384], strides = [1, 1]} : vector<16x384xf32> to vector<2x384xf32>
    %368 = arith.truncf %339 : vector<2x128xf32> to vector<2x128xbf16>
    %cst_73 = arith.constant dense<0.000000e+00> : vector<2x384xf32>
    %369 = tpu.matmul %368, %40, %cst_73 {dimension_numbers = #tpu.dot_dimension_numbers<[1], [0], [0], [1], [0, 0, 1, 1], [], []>} : vector<2x128xbf16>, vector<128x384xbf16>, vector<2x384xf32> -> vector<2x384xf32>
    %370 = vector.broadcast %41 : vector<1x384xf32> to vector<2x384xf32>
    %371 = arith.addf %369, %370 : vector<2x384xf32>
    %372 = vector.extract_strided_slice %367 {offsets = [0, 0], sizes = [2, 128], strides = [1, 1]} : vector<2x384xf32> to vector<2x128xf32>
    %373 = vector.extract_strided_slice %371 {offsets = [0, 0], sizes = [2, 128], strides = [1, 1]} : vector<2x384xf32> to vector<2x128xf32>
    %374 = arith.addf %372, %373 : vector<2x128xf32>
    %375 = arith.negf %374 : vector<2x128xf32>
    %376 = math.exp %375 : vector<2x128xf32>
    %cst_74 = arith.constant 1.000000e+00 : f32
    %377 = vector.broadcast %cst_74 : f32 to vector<2x128xf32>
    %378 = arith.addf %377, %376 : vector<2x128xf32>
    %379 = arith.divf %377, %378 : vector<2x128xf32>
    %380 = vector.extract_strided_slice %367 {offsets = [0, 128], sizes = [2, 128], strides = [1, 1]} : vector<2x384xf32> to vector<2x128xf32>
    %381 = vector.extract_strided_slice %371 {offsets = [0, 128], sizes = [2, 128], strides = [1, 1]} : vector<2x384xf32> to vector<2x128xf32>
    %382 = arith.addf %380, %381 : vector<2x128xf32>
    %383 = arith.negf %382 : vector<2x128xf32>
    %384 = math.exp %383 : vector<2x128xf32>
    %cst_75 = arith.constant 1.000000e+00 : f32
    %385 = vector.broadcast %cst_75 : f32 to vector<2x128xf32>
    %386 = arith.addf %385, %384 : vector<2x128xf32>
    %387 = arith.divf %385, %386 : vector<2x128xf32>
    %388 = vector.extract_strided_slice %367 {offsets = [0, 256], sizes = [2, 128], strides = [1, 1]} : vector<2x384xf32> to vector<2x128xf32>
    %389 = vector.extract_strided_slice %371 {offsets = [0, 256], sizes = [2, 128], strides = [1, 1]} : vector<2x384xf32> to vector<2x128xf32>
    %390 = arith.mulf %379, %389 : vector<2x128xf32>
    %391 = arith.addf %388, %390 : vector<2x128xf32>
    %392 = math.tanh %391 : vector<2x128xf32>
    %cst_76 = arith.constant 1.000000e+00 : f32
    %393 = vector.broadcast %cst_76 : f32 to vector<2x128xf32>
    %394 = arith.subf %393, %387 : vector<2x128xf32>
    %395 = arith.mulf %394, %392 : vector<2x128xf32>
    %396 = arith.mulf %387, %339 : vector<2x128xf32>
    %397 = arith.addf %395, %396 : vector<2x128xf32>
    %398 = tpu.concatenate %339, %366 in 1 : vector<2x128xf32>, vector<2x128xf32> -> vector<2x256xf32>
    %399 = arith.truncf %398 : vector<2x256xf32> to vector<2x256xbf16>
    %cst_77 = arith.constant dense<0.000000e+00> : vector<2x512xf32>
    %400 = tpu.matmul %399, %42, %cst_77 {dimension_numbers = #tpu.dot_dimension_numbers<[1], [0], [0], [1], [0, 0, 1, 1], [], []>} : vector<2x256xbf16>, vector<256x512xbf16>, vector<2x512xf32> -> vector<2x512xf32>
    %401 = vector.broadcast %43 : vector<1x512xf32> to vector<2x512xf32>
    %402 = arith.addf %400, %401 : vector<2x512xf32>
    %403 = vector.extract_strided_slice %402 {offsets = [0, 0], sizes = [2, 128], strides = [1, 1]} : vector<2x512xf32> to vector<2x128xf32>
    %404 = arith.negf %403 : vector<2x128xf32>
    %405 = math.exp %404 : vector<2x128xf32>
    %cst_78 = arith.constant 1.000000e+00 : f32
    %406 = vector.broadcast %cst_78 : f32 to vector<2x128xf32>
    %407 = arith.addf %406, %405 : vector<2x128xf32>
    %408 = arith.divf %406, %407 : vector<2x128xf32>
    %409 = vector.extract_strided_slice %402 {offsets = [0, 128], sizes = [2, 128], strides = [1, 1]} : vector<2x512xf32> to vector<2x128xf32>
    %410 = arith.negf %409 : vector<2x128xf32>
    %411 = math.exp %410 : vector<2x128xf32>
    %cst_79 = arith.constant 1.000000e+00 : f32
    %412 = vector.broadcast %cst_79 : f32 to vector<2x128xf32>
    %413 = arith.addf %412, %411 : vector<2x128xf32>
    %414 = arith.divf %412, %413 : vector<2x128xf32>
    %415 = vector.extract_strided_slice %402 {offsets = [0, 256], sizes = [2, 128], strides = [1, 1]} : vector<2x512xf32> to vector<2x128xf32>
    %416 = vector.extract_strided_slice %402 {offsets = [0, 384], sizes = [2, 128], strides = [1, 1]} : vector<2x512xf32> to vector<2x128xf32>
    %417 = arith.mulf %408, %416 : vector<2x128xf32>
    %418 = arith.addf %415, %417 : vector<2x128xf32>
    %419 = math.tanh %418 : vector<2x128xf32>
    %cst_80 = arith.constant 1.000000e+00 : f32
    %420 = vector.broadcast %cst_80 : f32 to vector<2x128xf32>
    %421 = arith.subf %420, %414 : vector<2x128xf32>
    %422 = arith.mulf %421, %419 : vector<2x128xf32>
    %423 = arith.mulf %414, %366 : vector<2x128xf32>
    %424 = arith.addf %422, %423 : vector<2x128xf32>
    %425 = vector.extract_strided_slice %39 {offsets = [14, 0], sizes = [2, 384], strides = [1, 1]} : vector<16x384xf32> to vector<2x384xf32>
    %426 = arith.truncf %397 : vector<2x128xf32> to vector<2x128xbf16>
    %cst_81 = arith.constant dense<0.000000e+00> : vector<2x384xf32>
    %427 = tpu.matmul %426, %40, %cst_81 {dimension_numbers = #tpu.dot_dimension_numbers<[1], [0], [0], [1], [0, 0, 1, 1], [], []>} : vector<2x128xbf16>, vector<128x384xbf16>, vector<2x384xf32> -> vector<2x384xf32>
    %428 = vector.broadcast %41 : vector<1x384xf32> to vector<2x384xf32>
    %429 = arith.addf %427, %428 : vector<2x384xf32>
    %430 = vector.extract_strided_slice %425 {offsets = [0, 0], sizes = [2, 128], strides = [1, 1]} : vector<2x384xf32> to vector<2x128xf32>
    %431 = vector.extract_strided_slice %429 {offsets = [0, 0], sizes = [2, 128], strides = [1, 1]} : vector<2x384xf32> to vector<2x128xf32>
    %432 = arith.addf %430, %431 : vector<2x128xf32>
    %433 = arith.negf %432 : vector<2x128xf32>
    %434 = math.exp %433 : vector<2x128xf32>
    %cst_82 = arith.constant 1.000000e+00 : f32
    %435 = vector.broadcast %cst_82 : f32 to vector<2x128xf32>
    %436 = arith.addf %435, %434 : vector<2x128xf32>
    %437 = arith.divf %435, %436 : vector<2x128xf32>
    %438 = vector.extract_strided_slice %425 {offsets = [0, 128], sizes = [2, 128], strides = [1, 1]} : vector<2x384xf32> to vector<2x128xf32>
    %439 = vector.extract_strided_slice %429 {offsets = [0, 128], sizes = [2, 128], strides = [1, 1]} : vector<2x384xf32> to vector<2x128xf32>
    %440 = arith.addf %438, %439 : vector<2x128xf32>
    %441 = arith.negf %440 : vector<2x128xf32>
    %442 = math.exp %441 : vector<2x128xf32>
    %cst_83 = arith.constant 1.000000e+00 : f32
    %443 = vector.broadcast %cst_83 : f32 to vector<2x128xf32>
    %444 = arith.addf %443, %442 : vector<2x128xf32>
    %445 = arith.divf %443, %444 : vector<2x128xf32>
    %446 = vector.extract_strided_slice %425 {offsets = [0, 256], sizes = [2, 128], strides = [1, 1]} : vector<2x384xf32> to vector<2x128xf32>
    %447 = vector.extract_strided_slice %429 {offsets = [0, 256], sizes = [2, 128], strides = [1, 1]} : vector<2x384xf32> to vector<2x128xf32>
    %448 = arith.mulf %437, %447 : vector<2x128xf32>
    %449 = arith.addf %446, %448 : vector<2x128xf32>
    %450 = math.tanh %449 : vector<2x128xf32>
    %cst_84 = arith.constant 1.000000e+00 : f32
    %451 = vector.broadcast %cst_84 : f32 to vector<2x128xf32>
    %452 = arith.subf %451, %445 : vector<2x128xf32>
    %453 = arith.mulf %452, %450 : vector<2x128xf32>
    %454 = arith.mulf %445, %397 : vector<2x128xf32>
    %455 = arith.addf %453, %454 : vector<2x128xf32>
    %456 = tpu.concatenate %397, %424 in 1 : vector<2x128xf32>, vector<2x128xf32> -> vector<2x256xf32>
    %457 = arith.truncf %456 : vector<2x256xf32> to vector<2x256xbf16>
    %cst_85 = arith.constant dense<0.000000e+00> : vector<2x512xf32>
    %458 = tpu.matmul %457, %42, %cst_85 {dimension_numbers = #tpu.dot_dimension_numbers<[1], [0], [0], [1], [0, 0, 1, 1], [], []>} : vector<2x256xbf16>, vector<256x512xbf16>, vector<2x512xf32> -> vector<2x512xf32>
    %459 = vector.broadcast %43 : vector<1x512xf32> to vector<2x512xf32>
    %460 = arith.addf %458, %459 : vector<2x512xf32>
    %461 = vector.extract_strided_slice %460 {offsets = [0, 0], sizes = [2, 128], strides = [1, 1]} : vector<2x512xf32> to vector<2x128xf32>
    %462 = arith.negf %461 : vector<2x128xf32>
    %463 = math.exp %462 : vector<2x128xf32>
    %cst_86 = arith.constant 1.000000e+00 : f32
    %464 = vector.broadcast %cst_86 : f32 to vector<2x128xf32>
    %465 = arith.addf %464, %463 : vector<2x128xf32>
    %466 = arith.divf %464, %465 : vector<2x128xf32>
    %467 = vector.extract_strided_slice %460 {offsets = [0, 128], sizes = [2, 128], strides = [1, 1]} : vector<2x512xf32> to vector<2x128xf32>
    %468 = arith.negf %467 : vector<2x128xf32>
    %469 = math.exp %468 : vector<2x128xf32>
    %cst_87 = arith.constant 1.000000e+00 : f32
    %470 = vector.broadcast %cst_87 : f32 to vector<2x128xf32>
    %471 = arith.addf %470, %469 : vector<2x128xf32>
    %472 = arith.divf %470, %471 : vector<2x128xf32>
    %473 = vector.extract_strided_slice %460 {offsets = [0, 256], sizes = [2, 128], strides = [1, 1]} : vector<2x512xf32> to vector<2x128xf32>
    %474 = vector.extract_strided_slice %460 {offsets = [0, 384], sizes = [2, 128], strides = [1, 1]} : vector<2x512xf32> to vector<2x128xf32>
    %475 = arith.mulf %466, %474 : vector<2x128xf32>
    %476 = arith.addf %473, %475 : vector<2x128xf32>
    %477 = math.tanh %476 : vector<2x128xf32>
    %cst_88 = arith.constant 1.000000e+00 : f32
    %478 = vector.broadcast %cst_88 : f32 to vector<2x128xf32>
    %479 = arith.subf %478, %472 : vector<2x128xf32>
    %480 = arith.mulf %479, %477 : vector<2x128xf32>
    %481 = arith.mulf %472, %424 : vector<2x128xf32>
    %482 = arith.addf %480, %481 : vector<2x128xf32>
    %483 = tpu.concatenate %455, %482 in 1 : vector<2x128xf32>, vector<2x128xf32> -> vector<2x256xf32>
    %484 = arith.truncf %483 : vector<2x256xf32> to vector<2x256xbf16>
    %cst_89 = arith.constant dense<0.000000e+00> : vector<2x512xf32>
    %485 = tpu.matmul %484, %42, %cst_89 {dimension_numbers = #tpu.dot_dimension_numbers<[1], [0], [0], [1], [0, 0, 1, 1], [], []>} : vector<2x256xbf16>, vector<256x512xbf16>, vector<2x512xf32> -> vector<2x512xf32>
    %486 = vector.broadcast %43 : vector<1x512xf32> to vector<2x512xf32>
    %487 = arith.addf %485, %486 : vector<2x512xf32>
    %488 = vector.extract_strided_slice %487 {offsets = [0, 0], sizes = [2, 128], strides = [1, 1]} : vector<2x512xf32> to vector<2x128xf32>
    %489 = arith.negf %488 : vector<2x128xf32>
    %490 = math.exp %489 : vector<2x128xf32>
    %cst_90 = arith.constant 1.000000e+00 : f32
    %491 = vector.broadcast %cst_90 : f32 to vector<2x128xf32>
    %492 = arith.addf %491, %490 : vector<2x128xf32>
    %493 = arith.divf %491, %492 : vector<2x128xf32>
    %494 = vector.extract_strided_slice %487 {offsets = [0, 128], sizes = [2, 128], strides = [1, 1]} : vector<2x512xf32> to vector<2x128xf32>
    %495 = arith.negf %494 : vector<2x128xf32>
    %496 = math.exp %495 : vector<2x128xf32>
    %cst_91 = arith.constant 1.000000e+00 : f32
    %497 = vector.broadcast %cst_91 : f32 to vector<2x128xf32>
    %498 = arith.addf %497, %496 : vector<2x128xf32>
    %499 = arith.divf %497, %498 : vector<2x128xf32>
    %500 = vector.extract_strided_slice %487 {offsets = [0, 256], sizes = [2, 128], strides = [1, 1]} : vector<2x512xf32> to vector<2x128xf32>
    %501 = vector.extract_strided_slice %487 {offsets = [0, 384], sizes = [2, 128], strides = [1, 1]} : vector<2x512xf32> to vector<2x128xf32>
    %502 = arith.mulf %493, %501 : vector<2x128xf32>
    %503 = arith.addf %500, %502 : vector<2x128xf32>
    %504 = math.tanh %503 : vector<2x128xf32>
    %cst_92 = arith.constant 1.000000e+00 : f32
    %505 = vector.broadcast %cst_92 : f32 to vector<2x128xf32>
    %506 = arith.subf %505, %499 : vector<2x128xf32>
    %507 = arith.mulf %506, %504 : vector<2x128xf32>
    %508 = arith.mulf %499, %482 : vector<2x128xf32>
    %509 = arith.addf %507, %508 : vector<2x128xf32>
    %510 = arith.mulf %509, %509 : vector<2x128xf32>
    %cst_93 = arith.constant dense<0.000000e+00> : vector<2xf32>
    %511 = vector.multi_reduction <add>, %510, %cst_93 [1] : vector<2x128xf32> to vector<2xf32>
    %512 = vector.shape_cast %511 : vector<2xf32> to vector<2x1xf32>
    %cst_94 = arith.constant 1.000000e-24 : f32
    %513 = vector.broadcast %cst_94 : f32 to vector<2x1xf32>
    %514 = arith.maximumf %512, %513 : vector<2x1xf32>
    %515 = math.rsqrt %514 : vector<2x1xf32>
    %516 = vector.broadcast %515 : vector<2x1xf32> to vector<2x128xf32>
    %517 = arith.mulf %509, %516 : vector<2x128xf32>
    %518 = arith.truncf %517 : vector<2x128xf32> to vector<2x128xbf16>
    %c0_95 = arith.constant 0 : index
    %c0_96 = arith.constant 0 : index
    %519 = vector.load %arg11[%c0_95, %c0_96] : memref<128x128xbf16, #tpu.memory_space<vmem>>, vector<128x128xbf16>
    %cst_97 = arith.constant dense<0.000000e+00> : vector<2x128xf32>
    %520 = tpu.matmul %518, %519, %cst_97 {dimension_numbers = #tpu.dot_dimension_numbers<[1], [0], [0], [1], [0, 0, 1, 1], [], []>} : vector<2x128xbf16>, vector<128x128xbf16>, vector<2x128xf32> -> vector<2x128xf32>
    %c0_98 = arith.constant 0 : index
    %c0_99 = arith.constant 0 : index
    %521 = vector.load %arg12[%c0_98, %c0_99] : memref<1x128xf32, #tpu.memory_space<vmem>>, vector<1x128xf32>
    %522 = vector.broadcast %521 : vector<1x128xf32> to vector<2x128xf32>
    %523 = arith.addf %520, %522 : vector<2x128xf32>
    %c0_100 = arith.constant 0 : index
    %c0_101 = arith.constant 0 : index
    %524 = vector.load %arg13[%c0_100, %c0_101] : memref<2x128xf32, #tpu.memory_space<vmem>>, vector<2x128xf32>
    tpu.vector_store %arg13[%c0_100, %c0_101], %523 {strides = array<i32>} : memref<2x128xf32, #tpu.memory_space<vmem>>, vector<2x128xf32>,
    return
  }
}

</mosaic_0001>

<llo_original>
// kernel: tpu_custom_call.1
$region0: #{tpu_custom_call.1}
  #allocation0 [shape = 'u32[]', space=smem, size = 0x4, offset = 0x4, fixed_abs, tag = 'smem constant byte address 0x4 - core index']
  #allocation1 [shape = 'u32[144,128]{1,0:T(1,128)}', space=vmem, size = 0x12000, scoped, tag = 'internal scratch']
  %s0 = inlined_call_operand.hbm [shape: bf16[16,224], index: 0, kind: input, shape index: {}]
  %s1 = inlined_call_operand.hbm [shape: bf16[128,128], index: 1, kind: input, shape index: {}]
  %s2 = inlined_call_operand.hbm [shape: f32[1,128], index: 2, kind: input, shape index: {}]
  %s3 = inlined_call_operand.hbm [shape: bf16[128,128], index: 3, kind: input, shape index: {}]
  %s4 = inlined_call_operand.vmem [shape: f32[1,128], index: 4, kind: input, shape index: {}]
  %s5 = inlined_call_operand.hbm [shape: bf16[128,384], index: 5, kind: input, shape index: {}]
  %s6 = inlined_call_operand.vmem [shape: f32[1,384], index: 6, kind: input, shape index: {}]
  %s7 = inlined_call_operand.hbm [shape: bf16[128,384], index: 7, kind: input, shape index: {}]
  %s8 = inlined_call_operand.vmem [shape: f32[1,384], index: 8, kind: input, shape index: {}]
  %s9 = inlined_call_operand.hbm [shape: bf16[256,512], index: 9, kind: input, shape index: {}]
  %s10 = inlined_call_operand.vmem [shape: f32[1,512], index: 10, kind: input, shape index: {}]
  %s11 = inlined_call_operand.hbm [shape: bf16[128,128], index: 11, kind: input, shape index: {}]
  %s12 = inlined_call_operand.vmem [shape: f32[1,128], index: 12, kind: input, shape index: {}]
  %s13 = inlined_call_operand.hbm [shape: f32[2,128], index: 13, kind: output, shape index: {}]
  %s14 = sld [smem:[#allocation0]]
  $region94: #{tpu_custom_call.1} parent=0
    _
  %s16 = ssub.s32 1, %s14
  %s17 = scalar_select 0, %s16, %s14
  $region1: #{tpu_custom_call.1} parent=0
    #allocation2 [shape = 'u8[8192]{0}', space=vmem, size = 0x2000, scoped, tag = 'input window, operand 0, single buffered']
    #allocation3 [shape = 's32[1]{0}', space=sflag, size = 0x4, scoped, tag = 'scoped memory for tpu_custom_call.1']
    #allocation4 [shape = 's32[1]{0}', space=sflag, size = 0x4, scoped, tag = 'scoped memory for tpu_custom_call.1']
    #allocation5 [shape = 'u8[32768]{0}', space=vmem, size = 0x8000, scoped, tag = 'input window, operand 1, single buffered']
    #allocation6 [shape = 's32[1]{0}', space=sflag, size = 0x4, scoped, tag = 'scoped memory for tpu_custom_call.1']
    #allocation7 [shape = 'u8[512]{0}', space=vmem, size = 0x400, scoped, tag = 'input window, operand 2, single buffered']
    #allocation8 [shape = 'u8[32768]{0}', space=vmem, size = 0x8000, scoped, tag = 'input window, operand 3, single buffered']
    #allocation9 [shape = 's32[1]{0}', space=sflag, size = 0x4, scoped, tag = 'scoped memory for tpu_custom_call.1']
    #allocation10 [shape = 'u8[98304]{0}', space=vmem, size = 0x18000, scoped, tag = 'input window, operand 5, single buffered']
    #allocation11 [shape = 'u8[98304]{0}', space=vmem, size = 0x18000, scoped, tag = 'input window, operand 7, single buffered']
    #allocation12 [shape = 's32[1]{0}', space=sflag, size = 0x4, scoped, tag = 'scoped memory for tpu_custom_call.1']
    #allocation13 [shape = 'u8[262144]{0}', space=vmem, size = 0x40000, scoped, tag = 'input window, operand 9, single buffered']
    #allocation14 [shape = 'u8[32768]{0}', space=vmem, size = 0x8000, scoped, tag = 'input window, operand 11, single buffered']
    #allocation15 [shape = 's32[1]{0}', space=sflag, size = 0x4, scoped, tag = 'scoped memory for tpu_custom_call.1']
    #allocation16 [shape = 'u8[1024]{0}', space=vmem, size = 0x400, scoped, tag = 'output window, operand 0, single buffered']
    %18 = vsyncpa [#allocation3], 0
    %19 = vsyncpa [#allocation6], 0
    %20 = vsyncpa [#allocation9], 0
    %21 = vsyncpa [#allocation12], 0
    %22 = vsyncpa [#allocation15], 0
    %23 = vsyncpa [#allocation4], 0
    // Predicated region
    $region2: #{tpu_custom_call.1} parent=1 // pred_check
      _
    $region3: #{tpu_custom_call.1} parent=1 // pred_check_branch
      %25 = sbr.rel (0) target = $region5
    $region4: #{tpu_custom_call.1} parent=1 // pred_region
      %s27 = ssub.s32 256, 256
      %28 = vsyncadd [#allocation3], %s27
      %s29 = sshll.u32 [#allocation2], 4
      %s30 = int_to_ptr.vmem [resolvable:$true] %s29
      %35 = dma.hbm_to_vmem [thread:$0]  %s0, 256, %s30, [#allocation3], 128, 128, 8
    $region5: #{tpu_custom_call.1} parent=1 // pred_fallthru
      _
    // Predicated region
    $region6: #{tpu_custom_call.1} parent=1 // pred_check
      _
    $region7: #{tpu_custom_call.1} parent=1 // pred_check_branch
      %37 = sbr.rel (0) target = $region9
    $region8: #{tpu_custom_call.1} parent=1 // pred_region
      %s39 = ssub.s32 1024, 1024
      %40 = vsyncadd [#allocation6], %s39
      %s41 = sshll.u32 [#allocation5], 4
      %s42 = int_to_ptr.vmem [resolvable:$true] %s41
      %47 = dma.hbm_to_vmem [thread:$0]  %s1, 1024, %s42, [#allocation6], 64, 64, 4
    $region9: #{tpu_custom_call.1} parent=1 // pred_fallthru
      _
    // Predicated region
    $region10: #{tpu_custom_call.1} parent=1 // pred_check
      _
    $region11: #{tpu_custom_call.1} parent=1 // pred_check_branch
      %49 = sbr.rel (0) target = $region13
    $region12: #{tpu_custom_call.1} parent=1 // pred_region
      %s51 = ssub.s32 16, 16
      %52 = vsyncadd [#allocation6], %s51
      %s54 = sshll.u32 [#allocation7], 4
      %s55 = int_to_ptr.vmem [resolvable:$true] %s54
      %57 = dma.hbm_to_vmem [thread:$0]  %s2, 16, %s55, [#allocation6]
    $region13: #{tpu_custom_call.1} parent=1 // pred_fallthru
      _
    // Predicated region
    $region14: #{tpu_custom_call.1} parent=1 // pred_check
      _
    $region15: #{tpu_custom_call.1} parent=1 // pred_check_branch
      %59 = sbr.rel (0) target = $region17
    $region16: #{tpu_custom_call.1} parent=1 // pred_region
      %s61 = ssub.s32 1024, 1024
      %62 = vsyncadd [#allocation9], %s61
      %s63 = sshll.u32 [#allocation8], 4
      %s64 = int_to_ptr.vmem [resolvable:$true] %s63
      %69 = dma.hbm_to_vmem [thread:$0]  %s3, 1024, %s64, [#allocation9], 64, 64, 4
    $region17: #{tpu_custom_call.1} parent=1 // pred_fallthru
      _
    // Predicated region
    $region18: #{tpu_custom_call.1} parent=1 // pred_check
      _
    $region19: #{tpu_custom_call.1} parent=1 // pred_check_branch
      %71 = sbr.rel (0) target = $region21
    $region20: #{tpu_custom_call.1} parent=1 // pred_region
      _
    $region21: #{tpu_custom_call.1} parent=1 // pred_fallthru
      _
    // Predicated region
    $region22: #{tpu_custom_call.1} parent=1 // pred_check
      _
    $region23: #{tpu_custom_call.1} parent=1 // pred_check_branch
      %73 = sbr.rel (0) target = $region25
    $region24: #{tpu_custom_call.1} parent=1 // pred_region
      %s75 = ssub.s32 3072, 3072
      %76 = vsyncadd [#allocation9], %s75
      %s77 = sshll.u32 [#allocation10], 4
      %s78 = int_to_ptr.vmem [resolvable:$true] %s77
      %83 = dma.hbm_to_vmem [thread:$0]  %s5, 3072, %s78, [#allocation9], 192, 192, 12
    $region25: #{tpu_custom_call.1} parent=1 // pred_fallthru
      _
    // Predicated region
    $region26: #{tpu_custom_call.1} parent=1 // pred_check
      _
    $region27: #{tpu_custom_call.1} parent=1 // pred_check_branch
      %85 = sbr.rel (0) target = $region29
    $region28: #{tpu_custom_call.1} parent=1 // pred_region
      _
    $region29: #{tpu_custom_call.1} parent=1 // pred_fallthru
      _
    // Predicated region
    $region30: #{tpu_custom_call.1} parent=1 // pred_check
      _
    $region31: #{tpu_custom_call.1} parent=1 // pred_check_branch
      %87 = sbr.rel (0) target = $region33
    $region32: #{tpu_custom_call.1} parent=1 // pred_region
      %s89 = ssub.s32 3072, 3072
      %90 = vsyncadd [#allocation12], %s89
      %s91 = sshll.u32 [#allocation11], 4
      %s92 = int_to_ptr.vmem [resolvable:$true] %s91
      %97 = dma.hbm_to_vmem [thread:$0]  %s7, 3072, %s92, [#allocation12], 192, 192, 12
    $region33: #{tpu_custom_call.1} parent=1 // pred_fallthru
      _
    // Predicated region
    $region34: #{tpu_custom_call.1} parent=1 // pred_check
      _
    $region35: #{tpu_custom_call.1} parent=1 // pred_check_branch
      %99 = sbr.rel (0) target = $region37
    $region36: #{tpu_custom_call.1} parent=1 // pred_region
      _
    $region37: #{tpu_custom_call.1} parent=1 // pred_fallthru
      _
    // Predicated region
    $region38: #{tpu_custom_call.1} parent=1 // pred_check
      _
    $region39: #{tpu_custom_call.1} parent=1 // pred_check_branch
      %101 = sbr.rel (0) target = $region41
    $region40: #{tpu_custom_call.1} parent=1 // pred_region
      %s103 = ssub.s32 8192, 8192
      %104 = vsyncadd [#allocation12], %s103
      %s105 = sshll.u32 [#allocation13], 4
      %s106 = int_to_ptr.vmem [resolvable:$true] %s105
      %111 = dma.hbm_to_vmem [thread:$0]  %s9, 8192, %s106, [#allocation12], 256, 256, 16
    $region41: #{tpu_custom_call.1} parent=1 // pred_fallthru
      _
    // Predicated region
    $region42: #{tpu_custom_call.1} parent=1 // pred_check
      _
    $region43: #{tpu_custom_call.1} parent=1 // pred_check_branch
      %113 = sbr.rel (0) target = $region45
    $region44: #{tpu_custom_call.1} parent=1 // pred_region
      _
    $region45: #{tpu_custom_call.1} parent=1 // pred_fallthru
      _
    // Predicated region
    $region46: #{tpu_custom_call.1} parent=1 // pred_check
      _
    $region47: #{tpu_custom_call.1} parent=1 // pred_check_branch
      %115 = sbr.rel (0) target = $region49
    $region48: #{tpu_custom_call.1} parent=1 // pred_region
      %s117 = ssub.s32 1024, 1024
      %118 = vsyncadd [#allocation15], %s117
      %s119 = sshll.u32 [#allocation14], 4
      %s120 = int_to_ptr.vmem [resolvable:$true] %s119
      %125 = dma.hbm_to_vmem [thread:$0]  %s11, 1024, %s120, [#allocation15], 64, 64, 4
    $region49: #{tpu_custom_call.1} parent=1 // pred_fallthru
      _
    // Predicated region
    $region50: #{tpu_custom_call.1} parent=1 // pred_check
      _
    $region51: #{tpu_custom_call.1} parent=1 // pred_check_branch
      %127 = sbr.rel (0) target = $region53
    $region52: #{tpu_custom_call.1} parent=1 // pred_region
      _
    $region53: #{tpu_custom_call.1} parent=1 // pred_fallthru
      _
    // Predicated region
    $region54: #{tpu_custom_call.1} parent=1 // pred_check
      _
    $region55: #{tpu_custom_call.1} parent=1 // pred_check_branch
      %129 = sbr.rel (0) target = $region57
    $region56: #{tpu_custom_call.1} parent=1 // pred_region
      %130 = dma.done [#allocation3], 256
    $region57: #{tpu_custom_call.1} parent=1 // pred_fallthru
      _
    // Predicated region
    $region58: #{tpu_custom_call.1} parent=1 // pred_check
      _
    $region59: #{tpu_custom_call.1} parent=1 // pred_check_branch
      %132 = sbr.rel (0) target = $region61
    $region60: #{tpu_custom_call.1} parent=1 // pred_region
      %133 = dma.done [#allocation6], 1024
    $region61: #{tpu_custom_call.1} parent=1 // pred_fallthru
      _
    // Predicated region
    $region62: #{tpu_custom_call.1} parent=1 // pred_check
      _
    $region63: #{tpu_custom_call.1} parent=1 // pred_check_branch
      %135 = sbr.rel (0) target = $region65
    $region64: #{tpu_custom_call.1} parent=1 // pred_region
      %136 = dma.done [#allocation6], 16
    $region65: #{tpu_custom_call.1} parent=1 // pred_fallthru
      _
    // Predicated region
    $region66: #{tpu_custom_call.1} parent=1 // pred_check
      _
    $region67: #{tpu_custom_call.1} parent=1 // pred_check_branch
      %138 = sbr.rel (0) target = $region69
    $region68: #{tpu_custom_call.1} parent=1 // pred_region
      %139 = dma.done [#allocation9], 1024
    $region69: #{tpu_custom_call.1} parent=1 // pred_fallthru
      _
    // Predicated region
    $region70: #{tpu_custom_call.1} parent=1 // pred_check
      _
    $region71: #{tpu_custom_call.1} parent=1 // pred_check_branch
      %141 = sbr.rel (0) target = $region73
    $region72: #{tpu_custom_call.1} parent=1 // pred_region
      %142 = dma.done [#allocation9], 3072
    $region73: #{tpu_custom_call.1} parent=1 // pred_fallthru
      _
    // Predicated region
    $region74: #{tpu_custom_call.1} parent=1 // pred_check
      _
    $region75: #{tpu_custom_call.1} parent=1 // pred_check_branch
      %144 = sbr.rel (0) target = $region77
    $region76: #{tpu_custom_call.1} parent=1 // pred_region
      %145 = dma.done [#allocation12], 3072
    $region77: #{tpu_custom_call.1} parent=1 // pred_fallthru
      _
    // Predicated region
    $region78: #{tpu_custom_call.1} parent=1 // pred_check
      _
    $region79: #{tpu_custom_call.1} parent=1 // pred_check_branch
      %147 = sbr.rel (0) target = $region81
    $region80: #{tpu_custom_call.1} parent=1 // pred_region
      %148 = dma.done [#allocation12], 8192
    $region81: #{tpu_custom_call.1} parent=1 // pred_fallthru
      _
    // Predicated region
    $region82: #{tpu_custom_call.1} parent=1 // pred_check
      _
    $region83: #{tpu_custom_call.1} parent=1 // pred_check_branch
      %150 = sbr.rel (0) target = $region85
    $region84: #{tpu_custom_call.1} parent=1 // pred_region
      %151 = dma.done [#allocation15], 1024
    $region85: #{tpu_custom_call.1} parent=1 // pred_fallthru
      _
    %v153 = vld [vmem:[#allocation2] sm:$0xff]
    %v154 = vld [vmem:[#allocation2 + $0x8] sm:$0xff]
    %v157 = vunpack.c.l.b16 %v153
    %v158 = vunpack.c.l.b16 %v154
    %v159 = vpack.c.b16 %v158, %v157
    %v161 = vunpack.c.h.b16 %v153
    %v162 = vunpack.c.h.b16 %v154
    %v163 = vpack.c.b16 %v162, %v161
    %164 = vrot.lane.b32.xlu0 %v159, 120
    %v165 = vpop.permute.xlu0 %164
    %166 = vrot.lane.b32.xlu0 %v163, 120
    %v167 = vpop.permute.xlu0 %166
    %vm168 = vcmask 982016
    %v169 = vsel %vm168, %v165, %v167
    %171 = vrot.lane.b32.xlu0 %v159, 112
    %v172 = vpop.permute.xlu0 %171
    %173 = vrot.lane.b32.xlu0 %v163, 112
    %v174 = vpop.permute.xlu0 %173
    %vm175 = vcmask 916480
    %v176 = vsel %vm175, %v172, %v174
    %178 = vrot.lane.b32.xlu0 %v159, 104
    %v179 = vpop.permute.xlu0 %178
    %180 = vrot.lane.b32.xlu0 %v163, 104
    %v181 = vpop.permute.xlu0 %180
    %vm182 = vcmask 850944
    %v183 = vsel %vm182, %v179, %v181
    %185 = vrot.lane.b32.xlu0 %v159, 96
    %v186 = vpop.permute.xlu0 %185
    %187 = vrot.lane.b32.xlu0 %v163, 96
    %v188 = vpop.permute.xlu0 %187
    %vm189 = vcmask 785408
    %v190 = vsel %vm189, %v186, %v188
    %192 = vrot.lane.b32.xlu0 %v159, 88
    %v193 = vpop.permute.xlu0 %192
    %194 = vrot.lane.b32.xlu0 %v163, 88
    %v195 = vpop.permute.xlu0 %194
    %vm196 = vcmask 719872
    %v197 = vsel %vm196, %v193, %v195
    %199 = vrot.lane.b32.xlu0 %v159, 80
    %v200 = vpop.permute.xlu0 %199
    %201 = vrot.lane.b32.xlu0 %v163, 80
    %v202 = vpop.permute.xlu0 %201
    %vm203 = vcmask 654336
    %v204 = vsel %vm203, %v200, %v202
    %206 = vrot.lane.b32.xlu0 %v159, 72
    %v207 = vpop.permute.xlu0 %206
    %208 = vrot.lane.b32.xlu0 %v163, 72
    %v209 = vpop.permute.xlu0 %208
    %vm210 = vcmask 588800
    %v211 = vsel %vm210, %v207, %v209
    %213 = vrot.lane.b32.xlu0 %v159, 64
    %v214 = vpop.permute.xlu0 %213
    %215 = vrot.lane.b32.xlu0 %v163, 64
    %v216 = vpop.permute.xlu0 %215
    %vm217 = vcmask 523264
    %v218 = vsel %vm217, %v214, %v216
    %220 = vrot.lane.b32.xlu0 %v159, 56
    %v221 = vpop.permute.xlu0 %220
    %222 = vrot.lane.b32.xlu0 %v163, 56
    %v223 = vpop.permute.xlu0 %222
    %vm224 = vcmask 457728
    %v225 = vsel %vm224, %v221, %v223
    %227 = vrot.lane.b32.xlu0 %v159, 48
    %v228 = vpop.permute.xlu0 %227
    %229 = vrot.lane.b32.xlu0 %v163, 48
    %v230 = vpop.permute.xlu0 %229
    %vm231 = vcmask 392192
    %v232 = vsel %vm231, %v228, %v230
    %234 = vrot.lane.b32.xlu0 %v159, 40
    %v235 = vpop.permute.xlu0 %234
    %236 = vrot.lane.b32.xlu0 %v163, 40
    %v237 = vpop.permute.xlu0 %236
    %vm238 = vcmask 326656
    %v239 = vsel %vm238, %v235, %v237
    %241 = vrot.lane.b32.xlu0 %v159, 32
    %v242 = vpop.permute.xlu0 %241
    %243 = vrot.lane.b32.xlu0 %v163, 32
    %v244 = vpop.permute.xlu0 %243
    %vm245 = vcmask 261120
    %v246 = vsel %vm245, %v242, %v244
    %v248 = vld [vmem:[#allocation5] sm:$0xf]
    %v249 = vld [vmem:[#allocation5 + $0x4] sm:$0xf]
    %v250 = vld [vmem:[#allocation5 + $0x8] sm:$0xf]
    %v251 = vld [vmem:[#allocation5 + $0xc] sm:$0xf]
    %v252 = vld [vmem:[#allocation5 + $0x10] sm:$0xf]
    %v253 = vld [vmem:[#allocation5 + $0x14] sm:$0xf]
    %v254 = vld [vmem:[#allocation5 + $0x18] sm:$0xf]
    %v255 = vld [vmem:[#allocation5 + $0x1c] sm:$0xf]
    %v256 = vld [vmem:[#allocation5 + $0x20] sm:$0xf]
    %v257 = vld [vmem:[#allocation5 + $0x24] sm:$0xf]
    %v258 = vld [vmem:[#allocation5 + $0x28] sm:$0xf]
    %v259 = vld [vmem:[#allocation5 + $0x2c] sm:$0xf]
    %v260 = vld [vmem:[#allocation5 + $0x30] sm:$0xf]
    %v261 = vld [vmem:[#allocation5 + $0x34] sm:$0xf]
    %v262 = vld [vmem:[#allocation5 + $0x38] sm:$0xf]
    %v263 = vld [vmem:[#allocation5 + $0x3c] sm:$0xf]
    %v264 = vld [vmem:[#allocation7] sm:$0x1]
    %v266 = vlaneseq
    %v267 = vshrl.u32 %v266, 7
    %v268 = vsub.s32 0, %v267
    %v269 = vrot.slane %v264, %v268
    %v287 = vunpack.c.l.b16 %v248
    %v288 = vunpack.c.l.b16 %v249
    %v289 = vunpack.c.l.b16 %v250
    %v290 = vunpack.c.l.b16 %v251
    %v291 = vunpack.c.l.b16 %v252
    %v292 = vunpack.c.l.b16 %v253
    %v293 = vunpack.c.l.b16 %v254
    %v294 = vunpack.c.l.b16 %v255
    %v295 = vunpack.c.l.b16 %v256
    %v296 = vunpack.c.l.b16 %v257
    %v297 = vunpack.c.l.b16 %v258
    %v298 = vunpack.c.l.b16 %v259
    %v299 = vunpack.c.l.b16 %v260
    %v300 = vunpack.c.l.b16 %v261
    %v301 = vunpack.c.l.b16 %v262
    %v302 = vunpack.c.l.b16 %v263
    %v303 = vpack.c.b16 %v288, %v287
    %v304 = vpack.c.b16 %v290, %v289
    %v305 = vpack.c.b16 %v292, %v291
    %v306 = vpack.c.b16 %v294, %v293
    %v307 = vpack.c.b16 %v296, %v295
    %v308 = vpack.c.b16 %v298, %v297
    %v309 = vpack.c.b16 %v300, %v299
    %v310 = vpack.c.b16 %v302, %v301
    %319 = vmatprep.subr.bf16.mxu0 0
    %320 = vmatpush1.bf16.msra.mxu0 %v303
    %321 = vmatprep.subr.bf16.mxu0 0
    %322 = vmatpush1.bf16.msra.mxu0 %v304
    %323 = vmatprep.subr.bf16.mxu0 0
    %324 = vmatpush1.bf16.msra.mxu0 %v305
    %325 = vmatprep.subr.bf16.mxu0 0
    %326 = vmatpush1.bf16.msra.mxu0 %v306
    %327 = vmatprep.subr.bf16.mxu0 0
    %328 = vmatpush1.bf16.msra.mxu0 %v307
    %329 = vmatprep.subr.bf16.mxu0 0
    %330 = vmatpush1.bf16.msra.mxu0 %v308
    %331 = vmatprep.subr.bf16.mxu0 0
    %332 = vmatpush1.bf16.msra.mxu0 %v309
    %333 = vmatprep.subr.bf16.mxu0 0
    %334 = vmatpush1.bf16.msra.mxu0 %v310
    %335 = vmatprep.subr.bf16.mxu0 0
    %336 = vmatpush1.bf16.msra.mxu0 0
    %337 = vmatprep.subr.bf16.mxu0 0
    %338 = vmatpush1.bf16.msra.mxu0 0
    %339 = vmatprep.subr.bf16.mxu0 0
    %340 = vmatpush1.bf16.msra.mxu0 0
    %341 = vmatprep.subr.bf16.mxu0 0
    %342 = vmatpush1.bf16.msra.mxu0 0
    %343 = vmatprep.subr.bf16.mxu0 0
    %344 = vmatpush1.bf16.msra.mxu0 0
    %345 = vmatprep.subr.bf16.mxu0 0
    %346 = vmatpush1.bf16.msra.mxu0 0
    %347 = vmatprep.subr.bf16.mxu0 0
    %348 = vmatpush1.bf16.msra.mxu0 0
    %349 = vmatprep.subr.bf16.mxu0 0
    %350 = vmatpush1.bf16.msra.mxu0 0
    %351 = vmatprep.mubr.bf16.mxu0 0
    %352 = vmatmul.mubr.bf16.gmra.mrb[0].mxu0 %v159
    %v353 = vpop.f32.mrb[0].mxu0
    %v354 = vadd.f32 %v269, %v353
    %v355 = vpop.f32.mrb[0].mxu0
    %v356 = vpop.f32.mrb[0].mxu0
    %v357 = vadd.f32 %v269, %v356
    %v358 = vpop.f32.mrb[0].mxu0
    %359 = vmatprep.mubr.bf16.mxu0 0
    %360 = vmatmul.mubr.bf16.gmra.mrb[0].mxu0 %v169
    %v361 = vpop.f32.mrb[0].mxu0
    %v362 = vadd.f32 %v269, %v361
    %v363 = vpop.f32.mrb[0].mxu0
    %v364 = vpop.f32.mrb[0].mxu0
    %v365 = vadd.f32 %v269, %v364
    %v366 = vpop.f32.mrb[0].mxu0
    %367 = vmatprep.mubr.bf16.mxu0 0
    %368 = vmatmul.mubr.bf16.gmra.mrb[0].mxu0 %v176
    %v369 = vpop.f32.mrb[0].mxu0
    %v370 = vadd.f32 %v269, %v369
    %v371 = vpop.f32.mrb[0].mxu0
    %v372 = vpop.f32.mrb[0].mxu0
    %v373 = vadd.f32 %v269, %v372
    %v374 = vpop.f32.mrb[0].mxu0
    %375 = vmatprep.mubr.bf16.mxu0 0
    %376 = vmatmul.mubr.bf16.gmra.mrb[0].mxu0 %v183
    %v377 = vpop.f32.mrb[0].mxu0
    %v378 = vadd.f32 %v269, %v377
    %v379 = vpop.f32.mrb[0].mxu0
    %v380 = vpop.f32.mrb[0].mxu0
    %v381 = vadd.f32 %v269, %v380
    %v382 = vpop.f32.mrb[0].mxu0
    %383 = vmatprep.mubr.bf16.mxu0 0
    %384 = vmatmul.mubr.bf16.gmra.mrb[0].mxu0 %v190
    %v385 = vpop.f32.mrb[0].mxu0
    %v386 = vadd.f32 %v269, %v385
    %v387 = vpop.f32.mrb[0].mxu0
    %v388 = vpop.f32.mrb[0].mxu0
    %v389 = vadd.f32 %v269, %v388
    %v390 = vpop.f32.mrb[0].mxu0
    %391 = vmatprep.mubr.bf16.mxu0 0
    %392 = vmatmul.mubr.bf16.gmra.mrb[0].mxu0 %v197
    %v393 = vpop.f32.mrb[0].mxu0
    %v394 = vadd.f32 %v269, %v393
    %v395 = vpop.f32.mrb[0].mxu0
    %v396 = vpop.f32.mrb[0].mxu0
    %v397 = vadd.f32 %v269, %v396
    %v398 = vpop.f32.mrb[0].mxu0
    %399 = vmatprep.mubr.bf16.mxu0 0
    %400 = vmatmul.mubr.bf16.gmra.mrb[0].mxu0 %v204
    %v401 = vpop.f32.mrb[0].mxu0
    %v402 = vadd.f32 %v269, %v401
    %v403 = vpop.f32.mrb[0].mxu0
    %v404 = vpop.f32.mrb[0].mxu0
    %v405 = vadd.f32 %v269, %v404
    %v406 = vpop.f32.mrb[0].mxu0
    %407 = vmatprep.mubr.bf16.mxu0 0
    %408 = vmatmul.mubr.bf16.gmra.mrb[0].mxu0 %v211
    %v409 = vpop.f32.mrb[0].mxu0
    %v410 = vadd.f32 %v269, %v409
    %v411 = vpop.f32.mrb[0].mxu0
    %v412 = vpop.f32.mrb[0].mxu0
    %v413 = vadd.f32 %v269, %v412
    %v414 = vpop.f32.mrb[0].mxu0
    %415 = vmatprep.mubr.bf16.mxu0 0
    %416 = vmatmul.mubr.bf16.gmra.mrb[0].mxu0 %v218
    %v417 = vpop.f32.mrb[0].mxu0
    %v418 = vadd.f32 %v269, %v417
    %v419 = vpop.f32.mrb[0].mxu0
    %v420 = vpop.f32.mrb[0].mxu0
    %v421 = vadd.f32 %v269, %v420
    %v422 = vpop.f32.mrb[0].mxu0
    %423 = vmatprep.mubr.bf16.mxu0 0
    %424 = vmatmul.mubr.bf16.gmra.mrb[0].mxu0 %v225
    %v425 = vpop.f32.mrb[0].mxu0
    %v426 = vadd.f32 %v269, %v425
    %v427 = vpop.f32.mrb[0].mxu0
    %v428 = vpop.f32.mrb[0].mxu0
    %v429 = vadd.f32 %v269, %v428
    %v430 = vpop.f32.mrb[0].mxu0
    %431 = vmatprep.mubr.bf16.mxu0 0
    %432 = vmatmul.mubr.bf16.gmra.mrb[0].mxu0 %v232
    %v433 = vpop.f32.mrb[0].mxu0
    %v434 = vadd.f32 %v269, %v433
    %v435 = vpop.f32.mrb[0].mxu0
    %v436 = vpop.f32.mrb[0].mxu0
    %v437 = vadd.f32 %v269, %v436
    %v438 = vpop.f32.mrb[0].mxu0
    %439 = vmatprep.mubr.bf16.mxu0 0
    %440 = vmatmul.mubr.bf16.gmra.mrb[0].mxu0 %v239
    %v441 = vpop.f32.mrb[0].mxu0
    %v442 = vadd.f32 %v269, %v441
    %v443 = vpop.f32.mrb[0].mxu0
    %v444 = vpop.f32.mrb[0].mxu0
    %v445 = vadd.f32 %v269, %v444
    %v446 = vpop.f32.mrb[0].mxu0
    %447 = vmatprep.mubr.bf16.mxu0 0
    %448 = vmatmul.mubr.bf16.gmra.mrb[0].mxu0 %v246
    %v449 = vpop.f32.mrb[0].mxu0
    %v450 = vadd.f32 %v269, %v449
    %v451 = vpop.f32.mrb[0].mxu0
    %v452 = vpop.f32.mrb[0].mxu0
    %v453 = vadd.f32 %v269, %v452
    %v454 = vpop.f32.mrb[0].mxu0
    %455 = vdwg.mxu0
    %v456 = vmax.f32 %v354, 0.0
    %v457 = vmax.f32 %v357, 0.0
    %v458 = vmax.f32 %v362, 0.0
    %v459 = vmax.f32 %v365, 0.0
    %v460 = vmax.f32 %v370, 0.0
    %v461 = vmax.f32 %v373, 0.0
    %v462 = vmax.f32 %v378, 0.0
    %v463 = vmax.f32 %v381, 0.0
    %v464 = vmax.f32 %v386, 0.0
    %v465 = vmax.f32 %v389, 0.0
    %v466 = vmax.f32 %v394, 0.0
    %v467 = vmax.f32 %v397, 0.0
    %v468 = vmax.f32 %v402, 0.0
    %v469 = vmax.f32 %v405, 0.0
    %v470 = vmax.f32 %v410, 0.0
    %v471 = vmax.f32 %v413, 0.0
    %v472 = vmax.f32 %v418, 0.0
    %v473 = vmax.f32 %v421, 0.0
    %v474 = vmax.f32 %v426, 0.0
    %v475 = vmax.f32 %v429, 0.0
    %v476 = vmax.f32 %v434, 0.0
    %v477 = vmax.f32 %v437, 0.0
    %v478 = vmax.f32 %v442, 0.0
    %v479 = vmax.f32 %v445, 0.0
    %v480 = vmax.f32 %v450, 0.0
    %v481 = vmax.f32 %v453, 0.0
    %v482 = vadd.f32 %v456, %v458
    %v483 = vadd.f32 %v482, %v460
    %v484 = vadd.f32 %v483, %v462
    %v485 = vadd.f32 %v484, %v464
    %v486 = vadd.f32 %v485, %v466
    %v487 = vadd.f32 %v486, %v468
    %v488 = vadd.f32 %v487, %v470
    %v489 = vadd.f32 %v488, %v472
    %v490 = vadd.f32 %v489, %v474
    %v491 = vadd.f32 %v490, %v476
    %v492 = vadd.f32 %v491, %v478
    %v493 = vadd.f32 %v492, %v480
    %v494 = vadd.f32 %v457, %v459
    %v495 = vadd.f32 %v494, %v461
    %v496 = vadd.f32 %v495, %v463
    %v497 = vadd.f32 %v496, %v465
    %v498 = vadd.f32 %v497, %v467
    %v499 = vadd.f32 %v498, %v469
    %v500 = vadd.f32 %v499, %v471
    %v501 = vadd.f32 %v500, %v473
    %v502 = vadd.f32 %v501, %v475
    %v503 = vadd.f32 %v502, %v477
    %v504 = vadd.f32 %v503, %v479
    %v505 = vadd.f32 %v504, %v481
    %v506 = vmul.f32 %v493, 0.07692308
    %v507 = vmul.f32 %v505, 0.07692308
    %v508 = vpack.c.bf16 %v507, %v506
    %v509 = vld [vmem:[#allocation8] sm:$0xf]
    %v510 = vld [vmem:[#allocation8 + $0x4] sm:$0xf]
    %v511 = vld [vmem:[#allocation8 + $0x8] sm:$0xf]
    %v512 = vld [vmem:[#allocation8 + $0xc] sm:$0xf]
    %v513 = vld [vmem:[#allocation8 + $0x10] sm:$0xf]
    %v514 = vld [vmem:[#allocation8 + $0x14] sm:$0xf]
    %v515 = vld [vmem:[#allocation8 + $0x18] sm:$0xf]
    %v516 = vld [vmem:[#allocation8 + $0x1c] sm:$0xf]
    %v517 = vld [vmem:[#allocation8 + $0x20] sm:$0xf]
    %v518 = vld [vmem:[#allocation8 + $0x24] sm:$0xf]
    %v519 = vld [vmem:[#allocation8 + $0x28] sm:$0xf]
    %v520 = vld [vmem:[#allocation8 + $0x2c] sm:$0xf]
    %v521 = vld [vmem:[#allocation8 + $0x30] sm:$0xf]
    %v522 = vld [vmem:[#allocation8 + $0x34] sm:$0xf]
    %v523 = vld [vmem:[#allocation8 + $0x38] sm:$0xf]
    %v524 = vld [vmem:[#allocation8 + $0x3c] sm:$0xf]
    %v525 = vld [vmem:[%s4] sm:$0x1]
    %v527 = vlaneseq
    %v528 = vshrl.u32 %v527, 7
    %v529 = vsub.s32 0, %v528
    %v530 = vrot.slane %v525, %v529
    %v548 = vunpack.c.l.b16 %v509
    %v549 = vunpack.c.l.b16 %v510
    %v550 = vunpack.c.l.b16 %v511
    %v551 = vunpack.c.l.b16 %v512
    %v552 = vunpack.c.l.b16 %v513
    %v553 = vunpack.c.l.b16 %v514
    %v554 = vunpack.c.l.b16 %v515
    %v555 = vunpack.c.l.b16 %v516
    %v556 = vunpack.c.l.b16 %v517
    %v557 = vunpack.c.l.b16 %v518
    %v558 = vunpack.c.l.b16 %v519
    %v559 = vunpack.c.l.b16 %v520
    %v560 = vunpack.c.l.b16 %v521
    %v561 = vunpack.c.l.b16 %v522
    %v562 = vunpack.c.l.b16 %v523
    %v563 = vunpack.c.l.b16 %v524
    %v564 = vpack.c.b16 %v549, %v548
    %v565 = vpack.c.b16 %v551, %v550
    %v566 = vpack.c.b16 %v553, %v552
    %v567 = vpack.c.b16 %v555, %v554
    %v568 = vpack.c.b16 %v557, %v556
    %v569 = vpack.c.b16 %v559, %v558
    %v570 = vpack.c.b16 %v561, %v560
    %v571 = vpack.c.b16 %v563, %v562
    %580 = vmatprep.subr.bf16.mxu0 0
    %581 = vmatpush1.bf16.msra.mxu0 %v564
    %582 = vmatprep.subr.bf16.mxu0 0
    %583 = vmatpush1.bf16.msra.mxu0 %v565
    %584 = vmatprep.subr.bf16.mxu0 0
    %585 = vmatpush1.bf16.msra.mxu0 %v566
    %586 = vmatprep.subr.bf16.mxu0 0
    %587 = vmatpush1.bf16.msra.mxu0 %v567
    %588 = vmatprep.subr.bf16.mxu0 0
    %589 = vmatpush1.bf16.msra.mxu0 %v568
    %590 = vmatprep.subr.bf16.mxu0 0
    %591 = vmatpush1.bf16.msra.mxu0 %v569
    %592 = vmatprep.subr.bf16.mxu0 0
    %593 = vmatpush1.bf16.msra.mxu0 %v570
    %594 = vmatprep.subr.bf16.mxu0 0
    %595 = vmatpush1.bf16.msra.mxu0 %v571
    %596 = vmatprep.subr.bf16.mxu0 0
    %597 = vmatpush1.bf16.msra.mxu0 0
    %598 = vmatprep.subr.bf16.mxu0 0
    %599 = vmatpush1.bf16.msra.mxu0 0
    %600 = vmatprep.subr.bf16.mxu0 0
    %601 = vmatpush1.bf16.msra.mxu0 0
    %602 = vmatprep.subr.bf16.mxu0 0
    %603 = vmatpush1.bf16.msra.mxu0 0
    %604 = vmatprep.subr.bf16.mxu0 0
    %605 = vmatpush1.bf16.msra.mxu0 0
    %606 = vmatprep.subr.bf16.mxu0 0
    %607 = vmatpush1.bf16.msra.mxu0 0
    %608 = vmatprep.subr.bf16.mxu0 0
    %609 = vmatpush1.bf16.msra.mxu0 0
    %610 = vmatprep.subr.bf16.mxu0 0
    %611 = vmatpush1.bf16.msra.mxu0 0
    %612 = vmatprep.mubr.bf16.mxu0 0
    %613 = vmatmul.mubr.bf16.gmra.mrb[0].mxu0 %v508
    %v614 = vpop.f32.mrb[0].mxu0
    %v615 = vadd.f32 %v530, %v614
    %v616 = vpop.f32.mrb[0].mxu0
    %v617 = vpop.f32.mrb[0].mxu0
    %v618 = vadd.f32 %v530, %v617
    %v619 = vpop.f32.mrb[0].mxu0
    %620 = vdwg.mxu0
    %v621 = vmax.f32 %v615, 0.0
    %v622 = vmax.f32 %v618, 0.0
    %v623 = vpack.c.bf16 %v622, %v621
    %v624 = vld [vmem:[#allocation10] sm:$0xff]
    %v625 = vld [vmem:[#allocation10 + $0x8] sm:$0xf]
    %v626 = vld [vmem:[#allocation10 + $0xc] sm:$0xff]
    %v627 = vld [vmem:[#allocation10 + $0x14] sm:$0xf]
    %v628 = vld [vmem:[#allocation10 + $0x18] sm:$0xff]
    %v629 = vld [vmem:[#allocation10 + $0x20] sm:$0xf]
    %v630 = vld [vmem:[#allocation10 + $0x24] sm:$0xff]
    %v631 = vld [vmem:[#allocation10 + $0x2c] sm:$0xf]
    %v632 = vld [vmem:[#allocation10 + $0x30] sm:$0xff]
    %v633 = vld [vmem:[#allocation10 + $0x38] sm:$0xf]
    %v634 = vld [vmem:[#allocation10 + $0x3c] sm:$0xff]
    %v635 = vld [vmem:[#allocation10 + $0x44] sm:$0xf]
    %v636 = vld [vmem:[#allocation10 + $0x48] sm:$0xff]
    %v637 = vld [vmem:[#allocation10 + $0x50] sm:$0xf]
    %v638 = vld [vmem:[#allocation10 + $0x54] sm:$0xff]
    %v639 = vld [vmem:[#allocation10 + $0x5c] sm:$0xf]
    %v640 = vld [vmem:[#allocation10 + $0x60] sm:$0xff]
    %v641 = vld [vmem:[#allocation10 + $0x68] sm:$0xf]
    %v642 = vld [vmem:[#allocation10 + $0x6c] sm:$0xff]
    %v643 = vld [vmem:[#allocation10 + $0x74] sm:$0xf]
    %v644 = vld [vmem:[#allocation10 + $0x78] sm:$0xff]
    %v645 = vld [vmem:[#allocation10 + $0x80] sm:$0xf]
    %v646 = vld [vmem:[#allocation10 + $0x84] sm:$0xff]
    %v647 = vld [vmem:[#allocation10 + $0x8c] sm:$0xf]
    %v648 = vld [vmem:[#allocation10 + $0x90] sm:$0xff]
    %v649 = vld [vmem:[#allocation10 + $0x98] sm:$0xf]
    %v650 = vld [vmem:[#allocation10 + $0x9c] sm:$0xff]
    %v651 = vld [vmem:[#allocation10 + $0xa4] sm:$0xf]
    %v652 = vld [vmem:[#allocation10 + $0xa8] sm:$0xff]
    %v653 = vld [vmem:[#allocation10 + $0xb0] sm:$0xf]
    %v654 = vld [vmem:[#allocation10 + $0xb4] sm:$0xff]
    %v655 = vld [vmem:[#allocation10 + $0xbc] sm:$0xf]
    %v656 = vld [vmem:[%s6] sm:$0x7]
    %v658 = vlaneseq
    %v659 = vshrl.u32 %v658, 7
    %v660 = vsub.s32 0, %v659
    %v661 = vrot.slane %v656, %v660
    %v662 = vlaneseq
    %v663 = vshrl.u32 %v662, 7
    %v664 = vsub.s32 1, %v663
    %v665 = vrot.slane %v656, %v664
    %v666 = vlaneseq
    %v667 = vshrl.u32 %v666, 7
    %v668 = vsub.s32 2, %v667
    %v669 = vrot.slane %v656, %v668
    %v705 = vunpack.c.l.b16 %v624
    %v706 = vunpack.c.h.b16 %v624
    %v707 = vunpack.c.l.b16 %v625
    %v708 = vunpack.c.l.b16 %v626
    %v709 = vunpack.c.h.b16 %v626
    %v710 = vunpack.c.l.b16 %v627
    %v711 = vunpack.c.l.b16 %v628
    %v712 = vunpack.c.h.b16 %v628
    %v713 = vunpack.c.l.b16 %v629
    %v714 = vunpack.c.l.b16 %v630
    %v715 = vunpack.c.h.b16 %v630
    %v716 = vunpack.c.l.b16 %v631
    %v717 = vunpack.c.l.b16 %v632
    %v718 = vunpack.c.h.b16 %v632
    %v719 = vunpack.c.l.b16 %v633
    %v720 = vunpack.c.l.b16 %v634
    %v721 = vunpack.c.h.b16 %v634
    %v722 = vunpack.c.l.b16 %v635
    %v723 = vunpack.c.l.b16 %v636
    %v724 = vunpack.c.h.b16 %v636
    %v725 = vunpack.c.l.b16 %v637
    %v726 = vunpack.c.l.b16 %v638
    %v727 = vunpack.c.h.b16 %v638
    %v728 = vunpack.c.l.b16 %v639
    %v729 = vunpack.c.l.b16 %v640
    %v730 = vunpack.c.h.b16 %v640
    %v731 = vunpack.c.l.b16 %v641
    %v732 = vunpack.c.l.b16 %v642
    %v733 = vunpack.c.h.b16 %v642
    %v734 = vunpack.c.l.b16 %v643
    %v735 = vunpack.c.l.b16 %v644
    %v736 = vunpack.c.h.b16 %v644
    %v737 = vunpack.c.l.b16 %v645
    %v738 = vunpack.c.l.b16 %v646
    %v739 = vunpack.c.h.b16 %v646
    %v740 = vunpack.c.l.b16 %v647
    %v741 = vunpack.c.l.b16 %v648
    %v742 = vunpack.c.h.b16 %v648
    %v743 = vunpack.c.l.b16 %v649
    %v744 = vunpack.c.l.b16 %v650
    %v745 = vunpack.c.h.b16 %v650
    %v746 = vunpack.c.l.b16 %v651
    %v747 = vunpack.c.l.b16 %v652
    %v748 = vunpack.c.h.b16 %v652
    %v749 = vunpack.c.l.b16 %v653
    %v750 = vunpack.c.l.b16 %v654
    %v751 = vunpack.c.h.b16 %v654
    %v752 = vunpack.c.l.b16 %v655
    %v753 = vpack.c.b16 %v708, %v705
    %v754 = vpack.c.b16 %v709, %v706
    %v755 = vpack.c.b16 %v710, %v707
    %v756 = vpack.c.b16 %v714, %v711
    %v757 = vpack.c.b16 %v715, %v712
    %v758 = vpack.c.b16 %v716, %v713
    %v759 = vpack.c.b16 %v720, %v717
    %v760 = vpack.c.b16 %v721, %v718
    %v761 = vpack.c.b16 %v722, %v719
    %v762 = vpack.c.b16 %v726, %v723
    %v763 = vpack.c.b16 %v727, %v724
    %v764 = vpack.c.b16 %v728, %v725
    %v765 = vpack.c.b16 %v732, %v729
    %v766 = vpack.c.b16 %v733, %v730
    %v767 = vpack.c.b16 %v734, %v731
    %v768 = vpack.c.b16 %v738, %v735
    %v769 = vpack.c.b16 %v739, %v736
    %v770 = vpack.c.b16 %v740, %v737
    %v771 = vpack.c.b16 %v744, %v741
    %v772 = vpack.c.b16 %v745, %v742
    %v773 = vpack.c.b16 %v746, %v743
    %v774 = vpack.c.b16 %v750, %v747
    %v775 = vpack.c.b16 %v751, %v748
    %v776 = vpack.c.b16 %v752, %v749
    %801 = vmatprep.subr.bf16.mxu0 %v754
    %802 = vmatpush1.bf16.msra.mxu0 %v753
    %803 = vmatprep.subr.bf16.mxu0 %v757
    %804 = vmatpush1.bf16.msra.mxu0 %v756
    %805 = vmatprep.subr.bf16.mxu0 %v760
    %806 = vmatpush1.bf16.msra.mxu0 %v759
    %807 = vmatprep.subr.bf16.mxu0 %v763
    %808 = vmatpush1.bf16.msra.mxu0 %v762
    %809 = vmatprep.subr.bf16.mxu0 %v766
    %810 = vmatpush1.bf16.msra.mxu0 %v765
    %811 = vmatprep.subr.bf16.mxu0 %v769
    %812 = vmatpush1.bf16.msra.mxu0 %v768
    %813 = vmatprep.subr.bf16.mxu0 %v772
    %814 = vmatpush1.bf16.msra.mxu0 %v771
    %815 = vmatprep.subr.bf16.mxu0 %v775
    %816 = vmatpush1.bf16.msra.mxu0 %v774
    %817 = vmatprep.subr.bf16.mxu0 0
    %818 = vmatpush1.bf16.msra.mxu0 0
    %819 = vmatprep.subr.bf16.mxu0 0
    %820 = vmatpush1.bf16.msra.mxu0 0
    %821 = vmatprep.subr.bf16.mxu0 0
    %822 = vmatpush1.bf16.msra.mxu0 0
    %823 = vmatprep.subr.bf16.mxu0 0
    %824 = vmatpush1.bf16.msra.mxu0 0
    %825 = vmatprep.subr.bf16.mxu0 0
    %826 = vmatpush1.bf16.msra.mxu0 0
    %827 = vmatprep.subr.bf16.mxu0 0
    %828 = vmatpush1.bf16.msra.mxu0 0
    %829 = vmatprep.subr.bf16.mxu0 0
    %830 = vmatpush1.bf16.msra.mxu0 0
    %831 = vmatprep.subr.bf16.mxu0 0
    %832 = vmatpush1.bf16.msra.mxu0 0
    %833 = vmatprep.mubr.bf16.mxu0 0
    %834 = vmatmul.mubr.bf16.gmra.mrb[0].mxu0 %v623
    %v835 = vpop.f32.mrb[0].mxu0
    %v836 = vadd.f32 %v661, %v835
    %v837 = vpop.f32.mrb[0].mxu0
    %v838 = vadd.f32 %v665, %v837
    %v839 = vpop.f32.mrb[0].mxu0
    %v840 = vadd.f32 %v661, %v839
    %v841 = vpop.f32.mrb[0].mxu0
    %v842 = vadd.f32 %v665, %v841
    %843 = vdwg.mxu0
    %844 = vmatprep.subr.bf16.mxu0 0
    %845 = vmatpush1.bf16.msra.mxu0 %v755
    %846 = vmatprep.subr.bf16.mxu0 0
    %847 = vmatpush1.bf16.msra.mxu0 %v758
    %848 = vmatprep.subr.bf16.mxu0 0
    %849 = vmatpush1.bf16.msra.mxu0 %v761
    %850 = vmatprep.subr.bf16.mxu0 0
    %851 = vmatpush1.bf16.msra.mxu0 %v764
    %852 = vmatprep.subr.bf16.mxu0 0
    %853 = vmatpush1.bf16.msra.mxu0 %v767
    %854 = vmatprep.subr.bf16.mxu0 0
    %855 = vmatpush1.bf16.msra.mxu0 %v770
    %856 = vmatprep.subr.bf16.mxu0 0
    %857 = vmatpush1.bf16.msra.mxu0 %v773
    %858 = vmatprep.subr.bf16.mxu0 0
    %859 = vmatpush1.bf16.msra.mxu0 %v776
    %860 = vmatprep.subr.bf16.mxu0 0
    %861 = vmatpush1.bf16.msra.mxu0 0
    %862 = vmatprep.subr.bf16.mxu0 0
    %863 = vmatpush1.bf16.msra.mxu0 0
    %864 = vmatprep.subr.bf16.mxu0 0
    %865 = vmatpush1.bf16.msra.mxu0 0
    %866 = vmatprep.subr.bf16.mxu0 0
    %867 = vmatpush1.bf16.msra.mxu0 0
    %868 = vmatprep.subr.bf16.mxu0 0
    %869 = vmatpush1.bf16.msra.mxu0 0
    %870 = vmatprep.subr.bf16.mxu0 0
    %871 = vmatpush1.bf16.msra.mxu0 0
    %872 = vmatprep.subr.bf16.mxu0 0
    %873 = vmatpush1.bf16.msra.mxu0 0
    %874 = vmatprep.subr.bf16.mxu0 0
    %875 = vmatpush1.bf16.msra.mxu0 0
    %876 = vmatprep.mubr.bf16.mxu0 0
    %877 = vmatmul.mubr.bf16.gmra.mrb[0].mxu0 %v623
    %v878 = vpop.f32.mrb[0].mxu0
    %v879 = vadd.f32 %v669, %v878
    %v880 = vpop.f32.mrb[0].mxu0
    %v881 = vpop.f32.mrb[0].mxu0
    %v882 = vadd.f32 %v669, %v881
    %v883 = vpop.f32.mrb[0].mxu0
    %884 = vdwg.mxu0
    %v885 = vld [vmem:[#allocation11] sm:$0xff]
    %v886 = vld [vmem:[#allocation11 + $0x8] sm:$0xf]
    %v887 = vld [vmem:[#allocation11 + $0xc] sm:$0xff]
    %v888 = vld [vmem:[#allocation11 + $0x14] sm:$0xf]
    %v889 = vld [vmem:[#allocation11 + $0x18] sm:$0xff]
    %v890 = vld [vmem:[#allocation11 + $0x20] sm:$0xf]
    %v891 = vld [vmem:[#allocation11 + $0x24] sm:$0xff]
    %v892 = vld [vmem:[#allocation11 + $0x2c] sm:$0xf]
    %v893 = vld [vmem:[#allocation11 + $0x30] sm:$0xff]
    %v894 = vld [vmem:[#allocation11 + $0x38] sm:$0xf]
    %v895 = vld [vmem:[#allocation11 + $0x3c] sm:$0xff]
    %v896 = vld [vmem:[#allocation11 + $0x44] sm:$0xf]
    %v897 = vld [vmem:[#allocation11 + $0x48] sm:$0xff]
    %v898 = vld [vmem:[#allocation11 + $0x50] sm:$0xf]
    %v899 = vld [vmem:[#allocation11 + $0x54] sm:$0xff]
    %v900 = vld [vmem:[#allocation11 + $0x5c] sm:$0xf]
    %v901 = vld [vmem:[#allocation11 + $0x60] sm:$0xff]
    %v902 = vld [vmem:[#allocation11 + $0x68] sm:$0xf]
    %v903 = vld [vmem:[#allocation11 + $0x6c] sm:$0xff]
    %v904 = vld [vmem:[#allocation11 + $0x74] sm:$0xf]
    %v905 = vld [vmem:[#allocation11 + $0x78] sm:$0xff]
    %v906 = vld [vmem:[#allocation11 + $0x80] sm:$0xf]
    %v907 = vld [vmem:[#allocation11 + $0x84] sm:$0xff]
    %v908 = vld [vmem:[#allocation11 + $0x8c] sm:$0xf]
    %v909 = vld [vmem:[#allocation11 + $0x90] sm:$0xff]
    %v910 = vld [vmem:[#allocation11 + $0x98] sm:$0xf]
    %v911 = vld [vmem:[#allocation11 + $0x9c] sm:$0xff]
    %v912 = vld [vmem:[#allocation11 + $0xa4] sm:$0xf]
    %v913 = vld [vmem:[#allocation11 + $0xa8] sm:$0xff]
    %v914 = vld [vmem:[#allocation11 + $0xb0] sm:$0xf]
    %v915 = vld [vmem:[#allocation11 + $0xb4] sm:$0xff]
    %v916 = vld [vmem:[#allocation11 + $0xbc] sm:$0xf]
    %v917 = vld [vmem:[%s8] sm:$0x7]
    %v918 = vld [vmem:[#allocation13] sm:$0xff]
    %v919 = vld [vmem:[#allocation13 + $0x8] sm:$0xff]
    %v920 = vld [vmem:[#allocation13 + $0x10] sm:$0xff]
    %v921 = vld [vmem:[#allocation13 + $0x18] sm:$0xff]
    %v922 = vld [vmem:[#allocation13 + $0x20] sm:$0xff]
    %v923 = vld [vmem:[#allocation13 + $0x28] sm:$0xff]
    %v924 = vld [vmem:[#allocation13 + $0x30] sm:$0xff]
    %v925 = vld [vmem:[#allocation13 + $0x38] sm:$0xff]
    %v926 = vld [vmem:[#allocation13 + $0x40] sm:$0xff]
    %v927 = vld [vmem:[#allocation13 + $0x48] sm:$0xff]
    %v928 = vld [vmem:[#allocation13 + $0x50] sm:$0xff]
    %v929 = vld [vmem:[#allocation13 + $0x58] sm:$0xff]
    %v930 = vld [vmem:[#allocation13 + $0x60] sm:$0xff]
    %v931 = vld [vmem:[#allocation13 + $0x68] sm:$0xff]
    %v932 = vld [vmem:[#allocation13 + $0x70] sm:$0xff]
    %v933 = vld [vmem:[#allocation13 + $0x78] sm:$0xff]
    %v934 = vld [vmem:[#allocation13 + $0x80] sm:$0xff]
    %v935 = vld [vmem:[#allocation13 + $0x88] sm:$0xff]
    %v936 = vld [vmem:[#allocation13 + $0x90] sm:$0xff]
    %v937 = vld [vmem:[#allocation13 + $0x98] sm:$0xff]
    %v938 = vld [vmem:[#allocation13 + $0xa0] sm:$0xff]
    %v939 = vld [vmem:[#allocation13 + $0xa8] sm:$0xff]
    %v940 = vld [vmem:[#allocation13 + $0xb0] sm:$0xff]
    %v941 = vld [vmem:[#allocation13 + $0xb8] sm:$0xff]
    %v942 = vld [vmem:[#allocation13 + $0xc0] sm:$0xff]
    %v943 = vld [vmem:[#allocation13 + $0xc8] sm:$0xff]
    %v944 = vld [vmem:[#allocation13 + $0xd0] sm:$0xff]
    %v945 = vld [vmem:[#allocation13 + $0xd8] sm:$0xff]
    %v946 = vld [vmem:[#allocation13 + $0xe0] sm:$0xff]
    %v947 = vld [vmem:[#allocation13 + $0xe8] sm:$0xff]
    %v948 = vld [vmem:[#allocation13 + $0xf0] sm:$0xff]
    %v949 = vld [vmem:[#allocation13 + $0xf8] sm:$0xff]
    %v950 = vld [vmem:[#allocation13 + $0x100] sm:$0xff]
    %v951 = vld [vmem:[#allocation13 + $0x108] sm:$0xff]
    %v952 = vld [vmem:[#allocation13 + $0x110] sm:$0xff]
    %v953 = vld [vmem:[#allocation13 + $0x118] sm:$0xff]
    %v954 = vld [vmem:[#allocation13 + $0x120] sm:$0xff]
    %v955 = vld [vmem:[#allocation13 + $0x128] sm:$0xff]
    %v956 = vld [vmem:[#allocation13 + $0x130] sm:$0xff]
    %v957 = vld [vmem:[#allocation13 + $0x138] sm:$0xff]
    %v958 = vld [vmem:[#allocation13 + $0x140] sm:$0xff]
    %v959 = vld [vmem:[#allocation13 + $0x148] sm:$0xff]
    %v960 = vld [vmem:[#allocation13 + $0x150] sm:$0xff]
    %v961 = vld [vmem:[#allocation13 + $0x158] sm:$0xff]
    %v962 = vld [vmem:[#allocation13 + $0x160] sm:$0xff]
    %v963 = vld [vmem:[#allocation13 + $0x168] sm:$0xff]
    %v964 = vld [vmem:[#allocation13 + $0x170] sm:$0xff]
    %v965 = vld [vmem:[#allocation13 + $0x178] sm:$0xff]
    %v966 = vld [vmem:[#allocation13 + $0x180] sm:$0xff]
    %v967 = vld [vmem:[#allocation13 + $0x188] sm:$0xff]
    %v968 = vld [vmem:[#allocation13 + $0x190] sm:$0xff]
    %v969 = vld [vmem:[#allocation13 + $0x198] sm:$0xff]
    %v970 = vld [vmem:[#allocation13 + $0x1a0] sm:$0xff]
    %v971 = vld [vmem:[#allocation13 + $0x1a8] sm:$0xff]
    %v972 = vld [vmem:[#allocation13 + $0x1b0] sm:$0xff]
    %v973 = vld [vmem:[#allocation13 + $0x1b8] sm:$0xff]
    %v974 = vld [vmem:[#allocation13 + $0x1c0] sm:$0xff]
    %v975 = vld [vmem:[#allocation13 + $0x1c8] sm:$0xff]
    %v976 = vld [vmem:[#allocation13 + $0x1d0] sm:$0xff]
    %v977 = vld [vmem:[#allocation13 + $0x1d8] sm:$0xff]
    %v978 = vld [vmem:[#allocation13 + $0x1e0] sm:$0xff]
    %v979 = vld [vmem:[#allocation13 + $0x1e8] sm:$0xff]
    %v980 = vld [vmem:[#allocation13 + $0x1f0] sm:$0xff]
    %v981 = vld [vmem:[#allocation13 + $0x1f8] sm:$0xff]
    %v982 = vld [vmem:[%s10] sm:$0xf]
    %v984 = vlaneseq
    %v985 = vshrl.u32 %v984, 7
    %v986 = vsub.s32 0, %v985
    %v987 = vrot.slane %v917, %v986
    %v988 = vlaneseq
    %v989 = vshrl.u32 %v988, 7
    %v990 = vsub.s32 1, %v989
    %v991 = vrot.slane %v917, %v990
    %v992 = vlaneseq
    %v993 = vshrl.u32 %v992, 7
    %v994 = vsub.s32 2, %v993
    %v995 = vrot.slane %v917, %v994
    %v1031 = vunpack.c.l.b16 %v885
    %v1032 = vunpack.c.h.b16 %v885
    %v1033 = vunpack.c.l.b16 %v886
    %v1034 = vunpack.c.l.b16 %v887
    %v1035 = vunpack.c.h.b16 %v887
    %v1036 = vunpack.c.l.b16 %v888
    %v1037 = vunpack.c.l.b16 %v889
    %v1038 = vunpack.c.h.b16 %v889
    %v1039 = vunpack.c.l.b16 %v890
    %v1040 = vunpack.c.l.b16 %v891
    %v1041 = vunpack.c.h.b16 %v891
    %v1042 = vunpack.c.l.b16 %v892
    %v1043 = vunpack.c.l.b16 %v893
    %v1044 = vunpack.c.h.b16 %v893
    %v1045 = vunpack.c.l.b16 %v894
    %v1046 = vunpack.c.l.b16 %v895
    %v1047 = vunpack.c.h.b16 %v895
    %v1048 = vunpack.c.l.b16 %v896
    %v1049 = vunpack.c.l.b16 %v897
    %v1050 = vunpack.c.h.b16 %v897
    %v1051 = vunpack.c.l.b16 %v898
    %v1052 = vunpack.c.l.b16 %v899
    %v1053 = vunpack.c.h.b16 %v899
    %v1054 = vunpack.c.l.b16 %v900
    %v1055 = vunpack.c.l.b16 %v901
    %v1056 = vunpack.c.h.b16 %v901
    %v1057 = vunpack.c.l.b16 %v902
    %v1058 = vunpack.c.l.b16 %v903
    %v1059 = vunpack.c.h.b16 %v903
    %v1060 = vunpack.c.l.b16 %v904
    %v1061 = vunpack.c.l.b16 %v905
    %v1062 = vunpack.c.h.b16 %v905
    %v1063 = vunpack.c.l.b16 %v906
    %v1064 = vunpack.c.l.b16 %v907
    %v1065 = vunpack.c.h.b16 %v907
    %v1066 = vunpack.c.l.b16 %v908
    %v1067 = vunpack.c.l.b16 %v909
    %v1068 = vunpack.c.h.b16 %v909
    %v1069 = vunpack.c.l.b16 %v910
    %v1070 = vunpack.c.l.b16 %v911
    %v1071 = vunpack.c.h.b16 %v911
    %v1072 = vunpack.c.l.b16 %v912
    %v1073 = vunpack.c.l.b16 %v913
    %v1074 = vunpack.c.h.b16 %v913
    %v1075 = vunpack.c.l.b16 %v914
    %v1076 = vunpack.c.l.b16 %v915
    %v1077 = vunpack.c.h.b16 %v915
    %v1078 = vunpack.c.l.b16 %v916
    %v1079 = vpack.c.b16 %v1034, %v1031
    %v1080 = vpack.c.b16 %v1035, %v1032
    %v1081 = vpack.c.b16 %v1036, %v1033
    %v1082 = vpack.c.b16 %v1040, %v1037
    %v1083 = vpack.c.b16 %v1041, %v1038
    %v1084 = vpack.c.b16 %v1042, %v1039
    %v1085 = vpack.c.b16 %v1046, %v1043
    %v1086 = vpack.c.b16 %v1047, %v1044
    %v1087 = vpack.c.b16 %v1048, %v1045
    %v1088 = vpack.c.b16 %v1052, %v1049
    %v1089 = vpack.c.b16 %v1053, %v1050
    %v1090 = vpack.c.b16 %v1054, %v1051
    %v1091 = vpack.c.b16 %v1058, %v1055
    %v1092 = vpack.c.b16 %v1059, %v1056
    %v1093 = vpack.c.b16 %v1060, %v1057
    %v1094 = vpack.c.b16 %v1064, %v1061
    %v1095 = vpack.c.b16 %v1065, %v1062
    %v1096 = vpack.c.b16 %v1066, %v1063
    %v1097 = vpack.c.b16 %v1070, %v1067
    %v1098 = vpack.c.b16 %v1071, %v1068
    %v1099 = vpack.c.b16 %v1072, %v1069
    %v1100 = vpack.c.b16 %v1076, %v1073
    %v1101 = vpack.c.b16 %v1077, %v1074
    %v1102 = vpack.c.b16 %v1078, %v1075
    %1127 = vmatprep.subr.bf16.mxu0 %v1080
    %1128 = vmatpush1.bf16.msra.mxu0 %v1079
    %1129 = vmatprep.subr.bf16.mxu0 %v1083
    %1130 = vmatpush1.bf16.msra.mxu0 %v1082
    %1131 = vmatprep.subr.bf16.mxu0 %v1086
    %1132 = vmatpush1.bf16.msra.mxu0 %v1085
    %1133 = vmatprep.subr.bf16.mxu0 %v1089
    %1134 = vmatpush1.bf16.msra.mxu0 %v1088
    %1135 = vmatprep.subr.bf16.mxu0 %v1092
    %1136 = vmatpush1.bf16.msra.mxu0 %v1091
    %1137 = vmatprep.subr.bf16.mxu0 %v1095
    %1138 = vmatpush1.bf16.msra.mxu0 %v1094
    %1139 = vmatprep.subr.bf16.mxu0 %v1098
    %1140 = vmatpush1.bf16.msra.mxu0 %v1097
    %1141 = vmatprep.subr.bf16.mxu0 %v1101
    %1142 = vmatpush1.bf16.msra.mxu0 %v1100
    %1143 = vmatprep.subr.bf16.mxu0 0
    %1144 = vmatpush1.bf16.msra.mxu0 0
    %1145 = vmatprep.subr.bf16.mxu0 0
    %1146 = vmatpush1.bf16.msra.mxu0 0
    %1147 = vmatprep.subr.bf16.mxu0 0
    %1148 = vmatpush1.bf16.msra.mxu0 0
    %1149 = vmatprep.subr.bf16.mxu0 0
    %1150 = vmatpush1.bf16.msra.mxu0 0
    %1151 = vmatprep.subr.bf16.mxu0 0
    %1152 = vmatpush1.bf16.msra.mxu0 0
    %1153 = vmatprep.subr.bf16.mxu0 0
    %1154 = vmatpush1.bf16.msra.mxu0 0
    %1155 = vmatprep.subr.bf16.mxu0 0
    %1156 = vmatpush1.bf16.msra.mxu0 0
    %1157 = vmatprep.subr.bf16.mxu0 0
    %1158 = vmatpush1.bf16.msra.mxu0 0
    %1159 = vmatprep.mubr.bf16.mxu0 0
    %1160 = vmatmul.mubr.bf16.gmra.mrb[0].mxu0 0
    %v1161 = vpop.f32.mrb[0].mxu0
    %v1162 = vadd.f32 %v987, %v1161
    %v1163 = vpop.f32.mrb[0].mxu0
    %v1164 = vadd.f32 %v991, %v1163
    %v1165 = vpop.f32.mrb[0].mxu0
    %v1166 = vpop.f32.mrb[0].mxu0
    %1167 = vdwg.mxu0
    %1168 = vmatprep.subr.bf16.mxu0 0
    %1169 = vmatpush1.bf16.msra.mxu0 %v1081
    %1170 = vmatprep.subr.bf16.mxu0 0
    %1171 = vmatpush1.bf16.msra.mxu0 %v1084
    %1172 = vmatprep.subr.bf16.mxu0 0
    %1173 = vmatpush1.bf16.msra.mxu0 %v1087
    %1174 = vmatprep.subr.bf16.mxu0 0
    %1175 = vmatpush1.bf16.msra.mxu0 %v1090
    %1176 = vmatprep.subr.bf16.mxu0 0
    %1177 = vmatpush1.bf16.msra.mxu0 %v1093
    %1178 = vmatprep.subr.bf16.mxu0 0
    %1179 = vmatpush1.bf16.msra.mxu0 %v1096
    %1180 = vmatprep.subr.bf16.mxu0 0
    %1181 = vmatpush1.bf16.msra.mxu0 %v1099
    %1182 = vmatprep.subr.bf16.mxu0 0
    %1183 = vmatpush1.bf16.msra.mxu0 %v1102
    %1184 = vmatprep.subr.bf16.mxu0 0
    %1185 = vmatpush1.bf16.msra.mxu0 0
    %1186 = vmatprep.subr.bf16.mxu0 0
    %1187 = vmatpush1.bf16.msra.mxu0 0
    %1188 = vmatprep.subr.bf16.mxu0 0
    %1189 = vmatpush1.bf16.msra.mxu0 0
    %1190 = vmatprep.subr.bf16.mxu0 0
    %1191 = vmatpush1.bf16.msra.mxu0 0
    %1192 = vmatprep.subr.bf16.mxu0 0
    %1193 = vmatpush1.bf16.msra.mxu0 0
    %1194 = vmatprep.subr.bf16.mxu0 0
    %1195 = vmatpush1.bf16.msra.mxu0 0
    %1196 = vmatprep.subr.bf16.mxu0 0
    %1197 = vmatpush1.bf16.msra.mxu0 0
    %1198 = vmatprep.subr.bf16.mxu0 0
    %1199 = vmatpush1.bf16.msra.mxu0 0
    %1200 = vmatprep.mubr.bf16.mxu0 0
    %1201 = vmatmul.mubr.bf16.gmra.mrb[0].mxu0 0
    %v1202 = vpop.f32.mrb[0].mxu0
    %v1203 = vadd.f32 %v995, %v1202
    %v1204 = vpop.f32.mrb[0].mxu0
    %v1205 = vpop.f32.mrb[0].mxu0
    %v1206 = vpop.f32.mrb[0].mxu0
    %1207 = vdwg.mxu0
    %v1208 = vadd.f32 %v836, %v1162
    %v1209 = vxor.u32 %v1208, 2147483648
    %v1210 = vmul.f32 %v1209, 1.442695
    %v1211 = vpow.pop %v1210
    %v1212 = vadd.f32 %v1211, 1.0
    %v1213 = vrcp.pop %v1212
    %v1214 = vmul.f32 1.0, %v1213
    %v1215 = vadd.f32 %v838, %v1164
    %v1216 = vxor.u32 %v1215, 2147483648
    %v1217 = vmul.f32 %v1216, 1.442695
    %v1218 = vpow.pop %v1217
    %v1219 = vadd.f32 %v1218, 1.0
    %v1220 = vrcp.pop %v1219
    %v1221 = vmul.f32 1.0, %v1220
    %v1222 = vmul.f32 %v1214, %v1203
    %v1223 = vadd.f32 %v879, %v1222
    %v1224 = vtanh.pop %v1223
    %v1225 = vsub.f32 1.0, %v1221
    %v1226 = vmul.f32 %v1225, %v1224
    %v1227 = vmul.f32 %v1221, 0.0
    %v1228 = vadd.f32 %v1226, %v1227
    %v1229 = vpack.c.bf16 %v1228, %v1228
    %1230 = vmatprep.subr.bf16.mxu0 %v1080
    %1231 = vmatpush1.bf16.msra.mxu0 %v1079
    %1232 = vmatprep.subr.bf16.mxu0 %v1083
    %1233 = vmatpush1.bf16.msra.mxu0 %v1082
    %1234 = vmatprep.subr.bf16.mxu0 %v1086
    %1235 = vmatpush1.bf16.msra.mxu0 %v1085
    %1236 = vmatprep.subr.bf16.mxu0 %v1089
    %1237 = vmatpush1.bf16.msra.mxu0 %v1088
    %1238 = vmatprep.subr.bf16.mxu0 %v1092
    %1239 = vmatpush1.bf16.msra.mxu0 %v1091
    %1240 = vmatprep.subr.bf16.mxu0 %v1095
    %1241 = vmatpush1.bf16.msra.mxu0 %v1094
    %1242 = vmatprep.subr.bf16.mxu0 %v1098
    %1243 = vmatpush1.bf16.msra.mxu0 %v1097
    %1244 = vmatprep.subr.bf16.mxu0 %v1101
    %1245 = vmatpush1.bf16.msra.mxu0 %v1100
    %1246 = vmatprep.subr.bf16.mxu0 0
    %1247 = vmatpush1.bf16.msra.mxu0 0
    %1248 = vmatprep.subr.bf16.mxu0 0
    %1249 = vmatpush1.bf16.msra.mxu0 0
    %1250 = vmatprep.subr.bf16.mxu0 0
    %1251 = vmatpush1.bf16.msra.mxu0 0
    %1252 = vmatprep.subr.bf16.mxu0 0
    %1253 = vmatpush1.bf16.msra.mxu0 0
    %1254 = vmatprep.subr.bf16.mxu0 0
    %1255 = vmatpush1.bf16.msra.mxu0 0
    %1256 = vmatprep.subr.bf16.mxu0 0
    %1257 = vmatpush1.bf16.msra.mxu0 0
    %1258 = vmatprep.subr.bf16.mxu0 0
    %1259 = vmatpush1.bf16.msra.mxu0 0
    %1260 = vmatprep.subr.bf16.mxu0 0
    %1261 = vmatpush1.bf16.msra.mxu0 0
    %1262 = vmatprep.mubr.bf16.mxu0 0
    %1263 = vmatmul.mubr.bf16.gmra.mrb[0].mxu0 %v1229
    %v1264 = vpop.f32.mrb[0].mxu0
    %v1265 = vadd.f32 %v987, %v1264
    %v1266 = vpop.f32.mrb[0].mxu0
    %v1267 = vadd.f32 %v991, %v1266
    %v1268 = vpop.f32.mrb[0].mxu0
    %v1269 = vpop.f32.mrb[0].mxu0
    %1270 = vdwg.mxu0
    %1271 = vmatprep.subr.bf16.mxu0 0
    %1272 = vmatpush1.bf16.msra.mxu0 %v1081
    %1273 = vmatprep.subr.bf16.mxu0 0
    %1274 = vmatpush1.bf16.msra.mxu0 %v1084
    %1275 = vmatprep.subr.bf16.mxu0 0
    %1276 = vmatpush1.bf16.msra.mxu0 %v1087
    %1277 = vmatprep.subr.bf16.mxu0 0
    %1278 = vmatpush1.bf16.msra.mxu0 %v1090
    %1279 = vmatprep.subr.bf16.mxu0 0
    %1280 = vmatpush1.bf16.msra.mxu0 %v1093
    %1281 = vmatprep.subr.bf16.mxu0 0
    %1282 = vmatpush1.bf16.msra.mxu0 %v1096
    %1283 = vmatprep.subr.bf16.mxu0 0
    %1284 = vmatpush1.bf16.msra.mxu0 %v1099
    %1285 = vmatprep.subr.bf16.mxu0 0
    %1286 = vmatpush1.bf16.msra.mxu0 %v1102
    %1287 = vmatprep.subr.bf16.mxu0 0
    %1288 = vmatpush1.bf16.msra.mxu0 0
    %1289 = vmatprep.subr.bf16.mxu0 0
    %1290 = vmatpush1.bf16.msra.mxu0 0
    %1291 = vmatprep.subr.bf16.mxu0 0
    %1292 = vmatpush1.bf16.msra.mxu0 0
    %1293 = vmatprep.subr.bf16.mxu0 0
    %1294 = vmatpush1.bf16.msra.mxu0 0
    %1295 = vmatprep.subr.bf16.mxu0 0
    %1296 = vmatpush1.bf16.msra.mxu0 0
    %1297 = vmatprep.subr.bf16.mxu0 0
    %1298 = vmatpush1.bf16.msra.mxu0 0
    %1299 = vmatprep.subr.bf16.mxu0 0
    %1300 = vmatpush1.bf16.msra.mxu0 0
    %1301 = vmatprep.subr.bf16.mxu0 0
    %1302 = vmatpush1.bf16.msra.mxu0 0
    %1303 = vmatprep.mubr.bf16.mxu0 0
    %1304 = vmatmul.mubr.bf16.gmra.mrb[0].mxu0 %v1229
    %v1305 = vpop.f32.mrb[0].mxu0
    %v1306 = vadd.f32 %v995, %v1305
    %v1307 = vpop.f32.mrb[0].mxu0
    %v1308 = vpop.f32.mrb[0].mxu0
    %v1309 = vpop.f32.mrb[0].mxu0
    %1310 = vdwg.mxu0
    %v1312 = vrot.slane %v1265, 6
    %v1314 = vadd.f32 %v836, %v1312
    %v1315 = vxor.u32 %v1314, 2147483648
    %v1316 = vmul.f32 %v1315, 1.442695
    %v1317 = vpow.pop %v1316
    %v1318 = vadd.f32 %v1317, 1.0
    %v1319 = vrcp.pop %v1318
    %v1320 = vmul.f32 1.0, %v1319
    %v1322 = vrot.slane %v1267, 6
    %v1324 = vadd.f32 %v838, %v1322
    %v1325 = vxor.u32 %v1324, 2147483648
    %v1326 = vmul.f32 %v1325, 1.442695
    %v1327 = vpow.pop %v1326
    %v1328 = vadd.f32 %v1327, 1.0
    %v1329 = vrcp.pop %v1328
    %v1330 = vmul.f32 1.0, %v1329
    %v1332 = vrot.slane %v1306, 6
    %v1334 = vmul.f32 %v1320, %v1332
    %v1335 = vadd.f32 %v879, %v1334
    %v1336 = vtanh.pop %v1335
    %v1337 = vsub.f32 1.0, %v1330
    %v1338 = vmul.f32 %v1337, %v1336
    %v1340 = vrot.slane %v1228, 6
    %v1342 = vmul.f32 %v1330, %v1340
    %v1343 = vadd.f32 %v1338, %v1342
    %v1344 = vpack.c.bf16 0.0, 0.0
    %v1346 = vlaneseq
    %v1347 = vshrl.u32 %v1346, 7
    %v1348 = vsub.s32 0, %v1347
    %v1349 = vrot.slane %v982, %v1348
    %v1350 = vlaneseq
    %v1351 = vshrl.u32 %v1350, 7
    %v1352 = vsub.s32 1, %v1351
    %v1353 = vrot.slane %v982, %v1352
    %v1354 = vlaneseq
    %v1355 = vshrl.u32 %v1354, 7
    %v1356 = vsub.s32 2, %v1355
    %v1357 = vrot.slane %v982, %v1356
    %v1358 = vlaneseq
    %v1359 = vshrl.u32 %v1358, 7
    %v1360 = vsub.s32 3, %v1359
    %v1361 = vrot.slane %v982, %v1360
    %v1430 = vunpack.c.l.b16 %v918
    %v1431 = vunpack.c.h.b16 %v918
    %v1432 = vunpack.c.l.b16 %v919
    %v1433 = vunpack.c.h.b16 %v919
    %v1434 = vunpack.c.l.b16 %v920
    %v1435 = vunpack.c.h.b16 %v920
    %v1436 = vunpack.c.l.b16 %v921
    %v1437 = vunpack.c.h.b16 %v921
    %v1438 = vunpack.c.l.b16 %v922
    %v1439 = vunpack.c.h.b16 %v922
    %v1440 = vunpack.c.l.b16 %v923
    %v1441 = vunpack.c.h.b16 %v923
    %v1442 = vunpack.c.l.b16 %v924
    %v1443 = vunpack.c.h.b16 %v924
    %v1444 = vunpack.c.l.b16 %v925
    %v1445 = vunpack.c.h.b16 %v925
    %v1446 = vunpack.c.l.b16 %v926
    %v1447 = vunpack.c.h.b16 %v926
    %v1448 = vunpack.c.l.b16 %v927
    %v1449 = vunpack.c.h.b16 %v927
    %v1450 = vunpack.c.l.b16 %v928
    %v1451 = vunpack.c.h.b16 %v928
    %v1452 = vunpack.c.l.b16 %v929
    %v1453 = vunpack.c.h.b16 %v929
    %v1454 = vunpack.c.l.b16 %v930
    %v1455 = vunpack.c.h.b16 %v930
    %v1456 = vunpack.c.l.b16 %v931
    %v1457 = vunpack.c.h.b16 %v931
    %v1458 = vunpack.c.l.b16 %v932
    %v1459 = vunpack.c.h.b16 %v932
    %v1460 = vunpack.c.l.b16 %v933
    %v1461 = vunpack.c.h.b16 %v933
    %v1462 = vunpack.c.l.b16 %v934
    %v1463 = vunpack.c.h.b16 %v934
    %v1464 = vunpack.c.l.b16 %v935
    %v1465 = vunpack.c.h.b16 %v935
    %v1466 = vunpack.c.l.b16 %v936
    %v1467 = vunpack.c.h.b16 %v936
    %v1468 = vunpack.c.l.b16 %v937
    %v1469 = vunpack.c.h.b16 %v937
    %v1470 = vunpack.c.l.b16 %v938
    %v1471 = vunpack.c.h.b16 %v938
    %v1472 = vunpack.c.l.b16 %v939
    %v1473 = vunpack.c.h.b16 %v939
    %v1474 = vunpack.c.l.b16 %v940
    %v1475 = vunpack.c.h.b16 %v940
    %v1476 = vunpack.c.l.b16 %v941
    %v1477 = vunpack.c.h.b16 %v941
    %v1478 = vunpack.c.l.b16 %v942
    %v1479 = vunpack.c.h.b16 %v942
    %v1480 = vunpack.c.l.b16 %v943
    %v1481 = vunpack.c.h.b16 %v943
    %v1482 = vunpack.c.l.b16 %v944
    %v1483 = vunpack.c.h.b16 %v944
    %v1484 = vunpack.c.l.b16 %v945
    %v1485 = vunpack.c.h.b16 %v945
    %v1486 = vunpack.c.l.b16 %v946
    %v1487 = vunpack.c.h.b16 %v946
    %v1488 = vunpack.c.l.b16 %v947
    %v1489 = vunpack.c.h.b16 %v947
    %v1490 = vunpack.c.l.b16 %v948
    %v1491 = vunpack.c.h.b16 %v948
    %v1492 = vunpack.c.l.b16 %v949
    %v1493 = vunpack.c.h.b16 %v949
    %v1494 = vunpack.c.l.b16 %v950
    %v1495 = vunpack.c.h.b16 %v950
    %v1496 = vunpack.c.l.b16 %v951
    %v1497 = vunpack.c.h.b16 %v951
    %v1498 = vunpack.c.l.b16 %v952
    %v1499 = vunpack.c.h.b16 %v952
    %v1500 = vunpack.c.l.b16 %v953
    %v1501 = vunpack.c.h.b16 %v953
    %v1502 = vunpack.c.l.b16 %v954
    %v1503 = vunpack.c.h.b16 %v954
    %v1504 = vunpack.c.l.b16 %v955
    %v1505 = vunpack.c.h.b16 %v955
    %v1506 = vunpack.c.l.b16 %v956
    %v1507 = vunpack.c.h.b16 %v956
    %v1508 = vunpack.c.l.b16 %v957
    %v1509 = vunpack.c.h.b16 %v957
    %v1510 = vunpack.c.l.b16 %v958
    %v1511 = vunpack.c.h.b16 %v958
    %v1512 = vunpack.c.l.b16 %v959
    %v1513 = vunpack.c.h.b16 %v959
    %v1514 = vunpack.c.l.b16 %v960
    %v1515 = vunpack.c.h.b16 %v960
    %v1516 = vunpack.c.l.b16 %v961
    %v1517 = vunpack.c.h.b16 %v961
    %v1518 = vunpack.c.l.b16 %v962
    %v1519 = vunpack.c.h.b16 %v962
    %v1520 = vunpack.c.l.b16 %v963
    %v1521 = vunpack.c.h.b16 %v963
    %v1522 = vunpack.c.l.b16 %v964
    %v1523 = vunpack.c.h.b16 %v964
    %v1524 = vunpack.c.l.b16 %v965
    %v1525 = vunpack.c.h.b16 %v965
    %v1526 = vunpack.c.l.b16 %v966
    %v1527 = vunpack.c.h.b16 %v966
    %v1528 = vunpack.c.l.b16 %v967
    %v1529 = vunpack.c.h.b16 %v967
    %v1530 = vunpack.c.l.b16 %v968
    %v1531 = vunpack.c.h.b16 %v968
    %v1532 = vunpack.c.l.b16 %v969
    %v1533 = vunpack.c.h.b16 %v969
    %v1534 = vunpack.c.l.b16 %v970
    %v1535 = vunpack.c.h.b16 %v970
    %v1536 = vunpack.c.l.b16 %v971
    %v1537 = vunpack.c.h.b16 %v971
    %v1538 = vunpack.c.l.b16 %v972
    %v1539 = vunpack.c.h.b16 %v972
    %v1540 = vunpack.c.l.b16 %v973
    %v1541 = vunpack.c.h.b16 %v973
    %v1542 = vunpack.c.l.b16 %v974
    %v1543 = vunpack.c.h.b16 %v974
    %v1544 = vunpack.c.l.b16 %v975
    %v1545 = vunpack.c.h.b16 %v975
    %v1546 = vunpack.c.l.b16 %v976
    %v1547 = vunpack.c.h.b16 %v976
    %v1548 = vunpack.c.l.b16 %v977
    %v1549 = vunpack.c.h.b16 %v977
    %v1550 = vunpack.c.l.b16 %v978
    %v1551 = vunpack.c.h.b16 %v978
    %v1552 = vunpack.c.l.b16 %v979
    %v1553 = vunpack.c.h.b16 %v979
    %v1554 = vunpack.c.l.b16 %v980
    %v1555 = vunpack.c.h.b16 %v980
    %v1556 = vunpack.c.l.b16 %v981
    %v1557 = vunpack.c.h.b16 %v981
    %v1558 = vpack.c.b16 %v1434, %v1430
    %v1559 = vpack.c.b16 %v1435, %v1431
    %v1560 = vpack.c.b16 %v1436, %v1432
    %v1561 = vpack.c.b16 %v1437, %v1433
    %v1562 = vpack.c.b16 %v1442, %v1438
    %v1563 = vpack.c.b16 %v1443, %v1439
    %v1564 = vpack.c.b16 %v1444, %v1440
    %v1565 = vpack.c.b16 %v1445, %v1441
    %v1566 = vpack.c.b16 %v1450, %v1446
    %v1567 = vpack.c.b16 %v1451, %v1447
    %v1568 = vpack.c.b16 %v1452, %v1448
    %v1569 = vpack.c.b16 %v1453, %v1449
    %v1570 = vpack.c.b16 %v1458, %v1454
    %v1571 = vpack.c.b16 %v1459, %v1455
    %v1572 = vpack.c.b16 %v1460, %v1456
    %v1573 = vpack.c.b16 %v1461, %v1457
    %v1574 = vpack.c.b16 %v1466, %v1462
    %v1575 = vpack.c.b16 %v1467, %v1463
    %v1576 = vpack.c.b16 %v1468, %v1464
    %v1577 = vpack.c.b16 %v1469, %v1465
    %v1578 = vpack.c.b16 %v1474, %v1470
    %v1579 = vpack.c.b16 %v1475, %v1471
    %v1580 = vpack.c.b16 %v1476, %v1472
    %v1581 = vpack.c.b16 %v1477, %v1473
    %v1582 = vpack.c.b16 %v1482, %v1478
    %v1583 = vpack.c.b16 %v1483, %v1479
    %v1584 = vpack.c.b16 %v1484, %v1480
    %v1585 = vpack.c.b16 %v1485, %v1481
    %v1586 = vpack.c.b16 %v1490, %v1486
    %v1587 = vpack.c.b16 %v1491, %v1487
    %v1588 = vpack.c.b16 %v1492, %v1488
    %v1589 = vpack.c.b16 %v1493, %v1489
    %v1590 = vpack.c.b16 %v1498, %v1494
    %v1591 = vpack.c.b16 %v1499, %v1495
    %v1592 = vpack.c.b16 %v1500, %v1496
    %v1593 = vpack.c.b16 %v1501, %v1497
    %v1594 = vpack.c.b16 %v1506, %v1502
    %v1595 = vpack.c.b16 %v1507, %v1503
    %v1596 = vpack.c.b16 %v1508, %v1504
    %v1597 = vpack.c.b16 %v1509, %v1505
    %v1598 = vpack.c.b16 %v1514, %v1510
    %v1599 = vpack.c.b16 %v1515, %v1511
    %v1600 = vpack.c.b16 %v1516, %v1512
    %v1601 = vpack.c.b16 %v1517, %v1513
    %v1602 = vpack.c.b16 %v1522, %v1518
    %v1603 = vpack.c.b16 %v1523, %v1519
    %v1604 = vpack.c.b16 %v1524, %v1520
    %v1605 = vpack.c.b16 %v1525, %v1521
    %v1606 = vpack.c.b16 %v1530, %v1526
    %v1607 = vpack.c.b16 %v1531, %v1527
    %v1608 = vpack.c.b16 %v1532, %v1528
    %v1609 = vpack.c.b16 %v1533, %v1529
    %v1610 = vpack.c.b16 %v1538, %v1534
    %v1611 = vpack.c.b16 %v1539, %v1535
    %v1612 = vpack.c.b16 %v1540, %v1536
    %v1613 = vpack.c.b16 %v1541, %v1537
    %v1614 = vpack.c.b16 %v1546, %v1542
    %v1615 = vpack.c.b16 %v1547, %v1543
    %v1616 = vpack.c.b16 %v1548, %v1544
    %v1617 = vpack.c.b16 %v1549, %v1545
    %v1618 = vpack.c.b16 %v1554, %v1550
    %v1619 = vpack.c.b16 %v1555, %v1551
    %v1620 = vpack.c.b16 %v1556, %v1552
    %v1621 = vpack.c.b16 %v1557, %v1553
    %1686 = vmatprep.subr.bf16.mxu0 %v1559
    %1687 = vmatpush1.bf16.msra.mxu0 %v1558
    %1688 = vmatprep.subr.bf16.mxu0 %v1563
    %1689 = vmatpush1.bf16.msra.mxu0 %v1562
    %1690 = vmatprep.subr.bf16.mxu0 %v1567
    %1691 = vmatpush1.bf16.msra.mxu0 %v1566
    %1692 = vmatprep.subr.bf16.mxu0 %v1571
    %1693 = vmatpush1.bf16.msra.mxu0 %v1570
    %1694 = vmatprep.subr.bf16.mxu0 %v1575
    %1695 = vmatpush1.bf16.msra.mxu0 %v1574
    %1696 = vmatprep.subr.bf16.mxu0 %v1579
    %1697 = vmatpush1.bf16.msra.mxu0 %v1578
    %1698 = vmatprep.subr.bf16.mxu0 %v1583
    %1699 = vmatpush1.bf16.msra.mxu0 %v1582
    %1700 = vmatprep.subr.bf16.mxu0 %v1587
    %1701 = vmatpush1.bf16.msra.mxu0 %v1586
    %1702 = vmatprep.subr.bf16.mxu0 %v1591
    %1703 = vmatpush1.bf16.msra.mxu0 %v1590
    %1704 = vmatprep.subr.bf16.mxu0 %v1595
    %1705 = vmatpush1.bf16.msra.mxu0 %v1594
    %1706 = vmatprep.subr.bf16.mxu0 %v1599
    %1707 = vmatpush1.bf16.msra.mxu0 %v1598
    %1708 = vmatprep.subr.bf16.mxu0 %v1603
    %1709 = vmatpush1.bf16.msra.mxu0 %v1602
    %1710 = vmatprep.subr.bf16.mxu0 %v1607
    %1711 = vmatpush1.bf16.msra.mxu0 %v1606
    %1712 = vmatprep.subr.bf16.mxu0 %v1611
    %1713 = vmatpush1.bf16.msra.mxu0 %v1610
    %1714 = vmatprep.subr.bf16.mxu0 %v1615
    %1715 = vmatpush1.bf16.msra.mxu0 %v1614
    %1716 = vmatprep.subr.bf16.mxu0 %v1619
    %1717 = vmatpush1.bf16.msra.mxu0 %v1618
    %1718 = vmatprep.mubr.bf16.mxu0 %v1344
    %1719 = vmatmul.mubr.bf16.gmra.mrb[0].mxu0 %v1229
    %v1720 = vpop.f32.mrb[0].mxu0
    %v1721 = vadd.f32 %v1349, %v1720
    %v1722 = vpop.f32.mrb[0].mxu0
    %v1723 = vadd.f32 %v1353, %v1722
    %v1724 = vpop.f32.mrb[0].mxu0
    %v1725 = vpop.f32.mrb[0].mxu0
    %1726 = vdwg.mxu0
    %1727 = vmatprep.subr.bf16.mxu0 %v1561
    %1728 = vmatpush1.bf16.msra.mxu0 %v1560
    %1729 = vmatprep.subr.bf16.mxu0 %v1565
    %1730 = vmatpush1.bf16.msra.mxu0 %v1564
    %1731 = vmatprep.subr.bf16.mxu0 %v1569
    %1732 = vmatpush1.bf16.msra.mxu0 %v1568
    %1733 = vmatprep.subr.bf16.mxu0 %v1573
    %1734 = vmatpush1.bf16.msra.mxu0 %v1572
    %1735 = vmatprep.subr.bf16.mxu0 %v1577
    %1736 = vmatpush1.bf16.msra.mxu0 %v1576
    %1737 = vmatprep.subr.bf16.mxu0 %v1581
    %1738 = vmatpush1.bf16.msra.mxu0 %v1580
    %1739 = vmatprep.subr.bf16.mxu0 %v1585
    %1740 = vmatpush1.bf16.msra.mxu0 %v1584
    %1741 = vmatprep.subr.bf16.mxu0 %v1589
    %1742 = vmatpush1.bf16.msra.mxu0 %v1588
    %1743 = vmatprep.subr.bf16.mxu0 %v1593
    %1744 = vmatpush1.bf16.msra.mxu0 %v1592
    %1745 = vmatprep.subr.bf16.mxu0 %v1597
    %1746 = vmatpush1.bf16.msra.mxu0 %v1596
    %1747 = vmatprep.subr.bf16.mxu0 %v1601
    %1748 = vmatpush1.bf16.msra.mxu0 %v1600
    %1749 = vmatprep.subr.bf16.mxu0 %v1605
    %1750 = vmatpush1.bf16.msra.mxu0 %v1604
    %1751 = vmatprep.subr.bf16.mxu0 %v1609
    %1752 = vmatpush1.bf16.msra.mxu0 %v1608
    %1753 = vmatprep.subr.bf16.mxu0 %v1613
    %1754 = vmatpush1.bf16.msra.mxu0 %v1612
    %1755 = vmatprep.subr.bf16.mxu0 %v1617
    %1756 = vmatpush1.bf16.msra.mxu0 %v1616
    %1757 = vmatprep.subr.bf16.mxu0 %v1621
    %1758 = vmatpush1.bf16.msra.mxu0 %v1620
    %1759 = vmatprep.mubr.bf16.mxu0 %v1344
    %1760 = vmatmul.mubr.bf16.gmra.mrb[0].mxu0 %v1229
    %v1761 = vpop.f32.mrb[0].mxu0
    %v1762 = vadd.f32 %v1357, %v1761
    %v1763 = vpop.f32.mrb[0].mxu0
    %v1764 = vadd.f32 %v1361, %v1763
    %v1765 = vpop.f32.mrb[0].mxu0
    %v1766 = vpop.f32.mrb[0].mxu0
    %1767 = vdwg.mxu0
    %v1768 = vxor.u32 %v1721, 2147483648
    %v1769 = vmul.f32 %v1768, 1.442695
    %v1770 = vpow.pop %v1769
    %v1771 = vadd.f32 %v1770, 1.0
    %v1772 = vrcp.pop %v1771
    %v1773 = vmul.f32 1.0, %v1772
    %v1774 = vxor.u32 %v1723, 2147483648
    %v1775 = vmul.f32 %v1774, 1.442695
    %v1776 = vpow.pop %v1775
    %v1777 = vadd.f32 %v1776, 1.0
    %v1778 = vrcp.pop %v1777
    %v1779 = vmul.f32 1.0, %v1778
    %v1780 = vmul.f32 %v1773, %v1764
    %v1781 = vadd.f32 %v1762, %v1780
    %v1782 = vtanh.pop %v1781
    %v1783 = vsub.f32 1.0, %v1779
    %v1784 = vmul.f32 %v1783, %v1782
    %v1785 = vmul.f32 %v1779, 0.0
    %v1786 = vadd.f32 %v1784, %v1785
    %v1787 = vpack.c.bf16 %v1343, %v1343
    %v1789 = vrot.slane %v1787, 1
    %1791 = vmatprep.subr.bf16.mxu0 %v1080
    %1792 = vmatpush1.bf16.msra.mxu0 %v1079
    %1793 = vmatprep.subr.bf16.mxu0 %v1083
    %1794 = vmatpush1.bf16.msra.mxu0 %v1082
    %1795 = vmatprep.subr.bf16.mxu0 %v1086
    %1796 = vmatpush1.bf16.msra.mxu0 %v1085
    %1797 = vmatprep.subr.bf16.mxu0 %v1089
    %1798 = vmatpush1.bf16.msra.mxu0 %v1088
    %1799 = vmatprep.subr.bf16.mxu0 %v1092
    %1800 = vmatpush1.bf16.msra.mxu0 %v1091
    %1801 = vmatprep.subr.bf16.mxu0 %v1095
    %1802 = vmatpush1.bf16.msra.mxu0 %v1094
    %1803 = vmatprep.subr.bf16.mxu0 %v1098
    %1804 = vmatpush1.bf16.msra.mxu0 %v1097
    %1805 = vmatprep.subr.bf16.mxu0 %v1101
    %1806 = vmatpush1.bf16.msra.mxu0 %v1100
    %1807 = vmatprep.subr.bf16.mxu0 0
    %1808 = vmatpush1.bf16.msra.mxu0 0
    %1809 = vmatprep.subr.bf16.mxu0 0
    %1810 = vmatpush1.bf16.msra.mxu0 0
    %1811 = vmatprep.subr.bf16.mxu0 0
    %1812 = vmatpush1.bf16.msra.mxu0 0
    %1813 = vmatprep.subr.bf16.mxu0 0
    %1814 = vmatpush1.bf16.msra.mxu0 0
    %1815 = vmatprep.subr.bf16.mxu0 0
    %1816 = vmatpush1.bf16.msra.mxu0 0
    %1817 = vmatprep.subr.bf16.mxu0 0
    %1818 = vmatpush1.bf16.msra.mxu0 0
    %1819 = vmatprep.subr.bf16.mxu0 0
    %1820 = vmatpush1.bf16.msra.mxu0 0
    %1821 = vmatprep.subr.bf16.mxu0 0
    %1822 = vmatpush1.bf16.msra.mxu0 0
    %1823 = vmatprep.mubr.bf16.mxu0 0
    %1824 = vmatmul.mubr.bf16.gmra.mrb[0].mxu0 %v1789
    %v1825 = vpop.f32.mrb[0].mxu0
    %v1826 = vadd.f32 %v987, %v1825
    %v1827 = vpop.f32.mrb[0].mxu0
    %v1828 = vadd.f32 %v991, %v1827
    %v1829 = vpop.f32.mrb[0].mxu0
    %v1830 = vpop.f32.mrb[0].mxu0
    %1831 = vdwg.mxu0
    %1832 = vmatprep.subr.bf16.mxu0 0
    %1833 = vmatpush1.bf16.msra.mxu0 %v1081
    %1834 = vmatprep.subr.bf16.mxu0 0
    %1835 = vmatpush1.bf16.msra.mxu0 %v1084
    %1836 = vmatprep.subr.bf16.mxu0 0
    %1837 = vmatpush1.bf16.msra.mxu0 %v1087
    %1838 = vmatprep.subr.bf16.mxu0 0
    %1839 = vmatpush1.bf16.msra.mxu0 %v1090
    %1840 = vmatprep.subr.bf16.mxu0 0
    %1841 = vmatpush1.bf16.msra.mxu0 %v1093
    %1842 = vmatprep.subr.bf16.mxu0 0
    %1843 = vmatpush1.bf16.msra.mxu0 %v1096
    %1844 = vmatprep.subr.bf16.mxu0 0
    %1845 = vmatpush1.bf16.msra.mxu0 %v1099
    %1846 = vmatprep.subr.bf16.mxu0 0
    %1847 = vmatpush1.bf16.msra.mxu0 %v1102
    %1848 = vmatprep.subr.bf16.mxu0 0
    %1849 = vmatpush1.bf16.msra.mxu0 0
    %1850 = vmatprep.subr.bf16.mxu0 0
    %1851 = vmatpush1.bf16.msra.mxu0 0
    %1852 = vmatprep.subr.bf16.mxu0 0
    %1853 = vmatpush1.bf16.msra.mxu0 0
    %1854 = vmatprep.subr.bf16.mxu0 0
    %1855 = vmatpush1.bf16.msra.mxu0 0
    %1856 = vmatprep.subr.bf16.mxu0 0
    %1857 = vmatpush1.bf16.msra.mxu0 0
    %1858 = vmatprep.subr.bf16.mxu0 0
    %1859 = vmatpush1.bf16.msra.mxu0 0
    %1860 = vmatprep.subr.bf16.mxu0 0
    %1861 = vmatpush1.bf16.msra.mxu0 0
    %1862 = vmatprep.subr.bf16.mxu0 0
    %1863 = vmatpush1.bf16.msra.mxu0 0
    %1864 = vmatprep.mubr.bf16.mxu0 0
    %1865 = vmatmul.mubr.bf16.gmra.mrb[0].mxu0 %v1789
    %v1866 = vpop.f32.mrb[0].mxu0
    %v1867 = vadd.f32 %v995, %v1866
    %v1868 = vpop.f32.mrb[0].mxu0
    %v1869 = vpop.f32.mrb[0].mxu0
    %v1870 = vpop.f32.mrb[0].mxu0
    %1871 = vdwg.mxu0
    %v1873 = vrot.slane %v1826, 4
    %v1875 = vadd.f32 %v836, %v1873
    %v1876 = vxor.u32 %v1875, 2147483648
    %v1877 = vmul.f32 %v1876, 1.442695
    %v1878 = vpow.pop %v1877
    %v1879 = vadd.f32 %v1878, 1.0
    %v1880 = vrcp.pop %v1879
    %v1881 = vmul.f32 1.0, %v1880
    %v1883 = vrot.slane %v1828, 4
    %v1885 = vadd.f32 %v838, %v1883
    %v1886 = vxor.u32 %v1885, 2147483648
    %v1887 = vmul.f32 %v1886, 1.442695
    %v1888 = vpow.pop %v1887
    %v1889 = vadd.f32 %v1888, 1.0
    %v1890 = vrcp.pop %v1889
    %v1891 = vmul.f32 1.0, %v1890
    %v1893 = vrot.slane %v1867, 4
    %v1895 = vmul.f32 %v1881, %v1893
    %v1896 = vadd.f32 %v879, %v1895
    %v1897 = vtanh.pop %v1896
    %v1898 = vsub.f32 1.0, %v1891
    %v1899 = vmul.f32 %v1898, %v1897
    %v1901 = vrot.slane %v1343, 6
    %v1903 = vmul.f32 %v1891, %v1901
    %v1904 = vadd.f32 %v1899, %v1903
    %v1906 = vrot.slane %v1786, 6
    %v1908 = vpack.c.bf16 %v1906, %v1906
    %v1910 = vrot.slane %v1908, 1
    %1912 = vmatprep.subr.bf16.mxu0 %v1559
    %1913 = vmatpush1.bf16.msra.mxu0 %v1558
    %1914 = vmatprep.subr.bf16.mxu0 %v1563
    %1915 = vmatpush1.bf16.msra.mxu0 %v1562
    %1916 = vmatprep.subr.bf16.mxu0 %v1567
    %1917 = vmatpush1.bf16.msra.mxu0 %v1566
    %1918 = vmatprep.subr.bf16.mxu0 %v1571
    %1919 = vmatpush1.bf16.msra.mxu0 %v1570
    %1920 = vmatprep.subr.bf16.mxu0 %v1575
    %1921 = vmatpush1.bf16.msra.mxu0 %v1574
    %1922 = vmatprep.subr.bf16.mxu0 %v1579
    %1923 = vmatpush1.bf16.msra.mxu0 %v1578
    %1924 = vmatprep.subr.bf16.mxu0 %v1583
    %1925 = vmatpush1.bf16.msra.mxu0 %v1582
    %1926 = vmatprep.subr.bf16.mxu0 %v1587
    %1927 = vmatpush1.bf16.msra.mxu0 %v1586
    %1928 = vmatprep.subr.bf16.mxu0 %v1591
    %1929 = vmatpush1.bf16.msra.mxu0 %v1590
    %1930 = vmatprep.subr.bf16.mxu0 %v1595
    %1931 = vmatpush1.bf16.msra.mxu0 %v1594
    %1932 = vmatprep.subr.bf16.mxu0 %v1599
    %1933 = vmatpush1.bf16.msra.mxu0 %v1598
    %1934 = vmatprep.subr.bf16.mxu0 %v1603
    %1935 = vmatpush1.bf16.msra.mxu0 %v1602
    %1936 = vmatprep.subr.bf16.mxu0 %v1607
    %1937 = vmatpush1.bf16.msra.mxu0 %v1606
    %1938 = vmatprep.subr.bf16.mxu0 %v1611
    %1939 = vmatpush1.bf16.msra.mxu0 %v1610
    %1940 = vmatprep.subr.bf16.mxu0 %v1615
    %1941 = vmatpush1.bf16.msra.mxu0 %v1614
    %1942 = vmatprep.subr.bf16.mxu0 %v1619
    %1943 = vmatpush1.bf16.msra.mxu0 %v1618
    %1944 = vmatprep.mubr.bf16.mxu0 %v1910
    %1945 = vmatmul.mubr.bf16.gmra.mrb[0].mxu0 %v1789
    %v1946 = vpop.f32.mrb[0].mxu0
    %v1947 = vadd.f32 %v1349, %v1946
    %v1948 = vpop.f32.mrb[0].mxu0
    %v1949 = vadd.f32 %v1353, %v1948
    %v1950 = vpop.f32.mrb[0].mxu0
    %v1951 = vpop.f32.mrb[0].mxu0
    %1952 = vdwg.mxu0
    %1953 = vmatprep.subr.bf16.mxu0 %v1561
    %1954 = vmatpush1.bf16.msra.mxu0 %v1560
    %1955 = vmatprep.subr.bf16.mxu0 %v1565
    %1956 = vmatpush1.bf16.msra.mxu0 %v1564
    %1957 = vmatprep.subr.bf16.mxu0 %v1569
    %1958 = vmatpush1.bf16.msra.mxu0 %v1568
    %1959 = vmatprep.subr.bf16.mxu0 %v1573
    %1960 = vmatpush1.bf16.msra.mxu0 %v1572
    %1961 = vmatprep.subr.bf16.mxu0 %v1577
    %1962 = vmatpush1.bf16.msra.mxu0 %v1576
    %1963 = vmatprep.subr.bf16.mxu0 %v1581
    %1964 = vmatpush1.bf16.msra.mxu0 %v1580
    %1965 = vmatprep.subr.bf16.mxu0 %v1585
    %1966 = vmatpush1.bf16.msra.mxu0 %v1584
    %1967 = vmatprep.subr.bf16.mxu0 %v1589
    %1968 = vmatpush1.bf16.msra.mxu0 %v1588
    %1969 = vmatprep.subr.bf16.mxu0 %v1593
    %1970 = vmatpush1.bf16.msra.mxu0 %v1592
    %1971 = vmatprep.subr.bf16.mxu0 %v1597
    %1972 = vmatpush1.bf16.msra.mxu0 %v1596
    %1973 = vmatprep.subr.bf16.mxu0 %v1601
    %1974 = vmatpush1.bf16.msra.mxu0 %v1600
    %1975 = vmatprep.subr.bf16.mxu0 %v1605
    %1976 = vmatpush1.bf16.msra.mxu0 %v1604
    %1977 = vmatprep.subr.bf16.mxu0 %v1609
    %1978 = vmatpush1.bf16.msra.mxu0 %v1608
    %1979 = vmatprep.subr.bf16.mxu0 %v1613
    %1980 = vmatpush1.bf16.msra.mxu0 %v1612
    %1981 = vmatprep.subr.bf16.mxu0 %v1617
    %1982 = vmatpush1.bf16.msra.mxu0 %v1616
    %1983 = vmatprep.subr.bf16.mxu0 %v1621
    %1984 = vmatpush1.bf16.msra.mxu0 %v1620
    %1985 = vmatprep.mubr.bf16.mxu0 %v1910
    %1986 = vmatmul.mubr.bf16.gmra.mrb[0].mxu0 %v1789
    %v1987 = vpop.f32.mrb[0].mxu0
    %v1988 = vadd.f32 %v1357, %v1987
    %v1989 = vpop.f32.mrb[0].mxu0
    %v1990 = vadd.f32 %v1361, %v1989
    %v1991 = vpop.f32.mrb[0].mxu0
    %v1992 = vpop.f32.mrb[0].mxu0
    %1993 = vdwg.mxu0
    %v1994 = vxor.u32 %v1947, 2147483648
    %v1995 = vmul.f32 %v1994, 1.442695
    %v1996 = vpow.pop %v1995
    %v1997 = vadd.f32 %v1996, 1.0
    %v1998 = vrcp.pop %v1997
    %v1999 = vmul.f32 1.0, %v1998
    %v2000 = vxor.u32 %v1949, 2147483648
    %v2001 = vmul.f32 %v2000, 1.442695
    %v2002 = vpow.pop %v2001
    %v2003 = vadd.f32 %v2002, 1.0
    %v2004 = vrcp.pop %v2003
    %v2005 = vmul.f32 1.0, %v2004
    %v2006 = vmul.f32 %v1999, %v1990
    %v2007 = vadd.f32 %v1988, %v2006
    %v2008 = vtanh.pop %v2007
    %v2009 = vsub.f32 1.0, %v2005
    %v2010 = vmul.f32 %v2009, %v2008
    %v2011 = vmul.f32 %v2005, %v1786
    %v2012 = vadd.f32 %v2010, %v2011
    %v2013 = vpack.c.bf16 %v1904, %v1904
    %v2015 = vrot.slane %v2013, 2
    %2017 = vmatprep.subr.bf16.mxu0 %v1080
    %2018 = vmatpush1.bf16.msra.mxu0 %v1079
    %2019 = vmatprep.subr.bf16.mxu0 %v1083
    %2020 = vmatpush1.bf16.msra.mxu0 %v1082
    %2021 = vmatprep.subr.bf16.mxu0 %v1086
    %2022 = vmatpush1.bf16.msra.mxu0 %v1085
    %2023 = vmatprep.subr.bf16.mxu0 %v1089
    %2024 = vmatpush1.bf16.msra.mxu0 %v1088
    %2025 = vmatprep.subr.bf16.mxu0 %v1092
    %2026 = vmatpush1.bf16.msra.mxu0 %v1091
    %2027 = vmatprep.subr.bf16.mxu0 %v1095
    %2028 = vmatpush1.bf16.msra.mxu0 %v1094
    %2029 = vmatprep.subr.bf16.mxu0 %v1098
    %2030 = vmatpush1.bf16.msra.mxu0 %v1097
    %2031 = vmatprep.subr.bf16.mxu0 %v1101
    %2032 = vmatpush1.bf16.msra.mxu0 %v1100
    %2033 = vmatprep.subr.bf16.mxu0 0
    %2034 = vmatpush1.bf16.msra.mxu0 0
    %2035 = vmatprep.subr.bf16.mxu0 0
    %2036 = vmatpush1.bf16.msra.mxu0 0
    %2037 = vmatprep.subr.bf16.mxu0 0
    %2038 = vmatpush1.bf16.msra.mxu0 0
    %2039 = vmatprep.subr.bf16.mxu0 0
    %2040 = vmatpush1.bf16.msra.mxu0 0
    %2041 = vmatprep.subr.bf16.mxu0 0
    %2042 = vmatpush1.bf16.msra.mxu0 0
    %2043 = vmatprep.subr.bf16.mxu0 0
    %2044 = vmatpush1.bf16.msra.mxu0 0
    %2045 = vmatprep.subr.bf16.mxu0 0
    %2046 = vmatpush1.bf16.msra.mxu0 0
    %2047 = vmatprep.subr.bf16.mxu0 0
    %2048 = vmatpush1.bf16.msra.mxu0 0
    %2049 = vmatprep.mubr.bf16.mxu0 0
    %2050 = vmatmul.mubr.bf16.gmra.mrb[0].mxu0 %v2015
    %v2051 = vpop.f32.mrb[0].mxu0
    %v2052 = vadd.f32 %v987, %v2051
    %v2053 = vpop.f32.mrb[0].mxu0
    %v2054 = vadd.f32 %v991, %v2053
    %v2055 = vpop.f32.mrb[0].mxu0
    %v2056 = vpop.f32.mrb[0].mxu0
    %2057 = vdwg.mxu0
    %2058 = vmatprep.subr.bf16.mxu0 0
    %2059 = vmatpush1.bf16.msra.mxu0 %v1081
    %2060 = vmatprep.subr.bf16.mxu0 0
    %2061 = vmatpush1.bf16.msra.mxu0 %v1084
    %2062 = vmatprep.subr.bf16.mxu0 0
    %2063 = vmatpush1.bf16.msra.mxu0 %v1087
    %2064 = vmatprep.subr.bf16.mxu0 0
    %2065 = vmatpush1.bf16.msra.mxu0 %v1090
    %2066 = vmatprep.subr.bf16.mxu0 0
    %2067 = vmatpush1.bf16.msra.mxu0 %v1093
    %2068 = vmatprep.subr.bf16.mxu0 0
    %2069 = vmatpush1.bf16.msra.mxu0 %v1096
    %2070 = vmatprep.subr.bf16.mxu0 0
    %2071 = vmatpush1.bf16.msra.mxu0 %v1099
    %2072 = vmatprep.subr.bf16.mxu0 0
    %2073 = vmatpush1.bf16.msra.mxu0 %v1102
    %2074 = vmatprep.subr.bf16.mxu0 0
    %2075 = vmatpush1.bf16.msra.mxu0 0
    %2076 = vmatprep.subr.bf16.mxu0 0
    %2077 = vmatpush1.bf16.msra.mxu0 0
    %2078 = vmatprep.subr.bf16.mxu0 0
    %2079 = vmatpush1.bf16.msra.mxu0 0
    %2080 = vmatprep.subr.bf16.mxu0 0
    %2081 = vmatpush1.bf16.msra.mxu0 0
    %2082 = vmatprep.subr.bf16.mxu0 0
    %2083 = vmatpush1.bf16.msra.mxu0 0
    %2084 = vmatprep.subr.bf16.mxu0 0
    %2085 = vmatpush1.bf16.msra.mxu0 0
    %2086 = vmatprep.subr.bf16.mxu0 0
    %2087 = vmatpush1.bf16.msra.mxu0 0
    %2088 = vmatprep.subr.bf16.mxu0 0
    %2089 = vmatpush1.bf16.msra.mxu0 0
    %2090 = vmatprep.mubr.bf16.mxu0 0
    %2091 = vmatmul.mubr.bf16.gmra.mrb[0].mxu0 %v2015
    %v2092 = vpop.f32.mrb[0].mxu0
    %v2093 = vadd.f32 %v995, %v2092
    %v2094 = vpop.f32.mrb[0].mxu0
    %v2095 = vpop.f32.mrb[0].mxu0
    %v2096 = vpop.f32.mrb[0].mxu0
    %2097 = vdwg.mxu0
    %v2099 = vrot.slane %v2052, 2
    %v2101 = vadd.f32 %v836, %v2099
    %v2102 = vxor.u32 %v2101, 2147483648
    %v2103 = vmul.f32 %v2102, 1.442695
    %v2104 = vpow.pop %v2103
    %v2105 = vadd.f32 %v2104, 1.0
    %v2106 = vrcp.pop %v2105
    %v2107 = vmul.f32 1.0, %v2106
    %v2109 = vrot.slane %v2054, 2
    %v2111 = vadd.f32 %v838, %v2109
    %v2112 = vxor.u32 %v2111, 2147483648
    %v2113 = vmul.f32 %v2112, 1.442695
    %v2114 = vpow.pop %v2113
    %v2115 = vadd.f32 %v2114, 1.0
    %v2116 = vrcp.pop %v2115
    %v2117 = vmul.f32 1.0, %v2116
    %v2119 = vrot.slane %v2093, 2
    %v2121 = vmul.f32 %v2107, %v2119
    %v2122 = vadd.f32 %v879, %v2121
    %v2123 = vtanh.pop %v2122
    %v2124 = vsub.f32 1.0, %v2117
    %v2125 = vmul.f32 %v2124, %v2123
    %v2127 = vrot.slane %v1904, 6
    %v2129 = vmul.f32 %v2117, %v2127
    %v2130 = vadd.f32 %v2125, %v2129
    %v2132 = vrot.slane %v2012, 4
    %v2134 = vpack.c.bf16 %v2132, %v2132
    %v2136 = vrot.slane %v2134, 2
    %2138 = vmatprep.subr.bf16.mxu0 %v1559
    %2139 = vmatpush1.bf16.msra.mxu0 %v1558
    %2140 = vmatprep.subr.bf16.mxu0 %v1563
    %2141 = vmatpush1.bf16.msra.mxu0 %v1562
    %2142 = vmatprep.subr.bf16.mxu0 %v1567
    %2143 = vmatpush1.bf16.msra.mxu0 %v1566
    %2144 = vmatprep.subr.bf16.mxu0 %v1571
    %2145 = vmatpush1.bf16.msra.mxu0 %v1570
    %2146 = vmatprep.subr.bf16.mxu0 %v1575
    %2147 = vmatpush1.bf16.msra.mxu0 %v1574
    %2148 = vmatprep.subr.bf16.mxu0 %v1579
    %2149 = vmatpush1.bf16.msra.mxu0 %v1578
    %2150 = vmatprep.subr.bf16.mxu0 %v1583
    %2151 = vmatpush1.bf16.msra.mxu0 %v1582
    %2152 = vmatprep.subr.bf16.mxu0 %v1587
    %2153 = vmatpush1.bf16.msra.mxu0 %v1586
    %2154 = vmatprep.subr.bf16.mxu0 %v1591
    %2155 = vmatpush1.bf16.msra.mxu0 %v1590
    %2156 = vmatprep.subr.bf16.mxu0 %v1595
    %2157 = vmatpush1.bf16.msra.mxu0 %v1594
    %2158 = vmatprep.subr.bf16.mxu0 %v1599
    %2159 = vmatpush1.bf16.msra.mxu0 %v1598
    %2160 = vmatprep.subr.bf16.mxu0 %v1603
    %2161 = vmatpush1.bf16.msra.mxu0 %v1602
    %2162 = vmatprep.subr.bf16.mxu0 %v1607
    %2163 = vmatpush1.bf16.msra.mxu0 %v1606
    %2164 = vmatprep.subr.bf16.mxu0 %v1611
    %2165 = vmatpush1.bf16.msra.mxu0 %v1610
    %2166 = vmatprep.subr.bf16.mxu0 %v1615
    %2167 = vmatpush1.bf16.msra.mxu0 %v1614
    %2168 = vmatprep.subr.bf16.mxu0 %v1619
    %2169 = vmatpush1.bf16.msra.mxu0 %v1618
    %2170 = vmatprep.mubr.bf16.mxu0 %v2136
    %2171 = vmatmul.mubr.bf16.gmra.mrb[0].mxu0 %v2015
    %v2172 = vpop.f32.mrb[0].mxu0
    %v2173 = vadd.f32 %v1349, %v2172
    %v2174 = vpop.f32.mrb[0].mxu0
    %v2175 = vadd.f32 %v1353, %v2174
    %v2176 = vpop.f32.mrb[0].mxu0
    %v2177 = vpop.f32.mrb[0].mxu0
    %2178 = vdwg.mxu0
    %2179 = vmatprep.subr.bf16.mxu0 %v1561
    %2180 = vmatpush1.bf16.msra.mxu0 %v1560
    %2181 = vmatprep.subr.bf16.mxu0 %v1565
    %2182 = vmatpush1.bf16.msra.mxu0 %v1564
    %2183 = vmatprep.subr.bf16.mxu0 %v1569
    %2184 = vmatpush1.bf16.msra.mxu0 %v1568
    %2185 = vmatprep.subr.bf16.mxu0 %v1573
    %2186 = vmatpush1.bf16.msra.mxu0 %v1572
    %2187 = vmatprep.subr.bf16.mxu0 %v1577
    %2188 = vmatpush1.bf16.msra.mxu0 %v1576
    %2189 = vmatprep.subr.bf16.mxu0 %v1581
    %2190 = vmatpush1.bf16.msra.mxu0 %v1580
    %2191 = vmatprep.subr.bf16.mxu0 %v1585
    %2192 = vmatpush1.bf16.msra.mxu0 %v1584
    %2193 = vmatprep.subr.bf16.mxu0 %v1589
    %2194 = vmatpush1.bf16.msra.mxu0 %v1588
    %2195 = vmatprep.subr.bf16.mxu0 %v1593
    %2196 = vmatpush1.bf16.msra.mxu0 %v1592
    %2197 = vmatprep.subr.bf16.mxu0 %v1597
    %2198 = vmatpush1.bf16.msra.mxu0 %v1596
    %2199 = vmatprep.subr.bf16.mxu0 %v1601
    %2200 = vmatpush1.bf16.msra.mxu0 %v1600
    %2201 = vmatprep.subr.bf16.mxu0 %v1605
    %2202 = vmatpush1.bf16.msra.mxu0 %v1604
    %2203 = vmatprep.subr.bf16.mxu0 %v1609
    %2204 = vmatpush1.bf16.msra.mxu0 %v1608
    %2205 = vmatprep.subr.bf16.mxu0 %v1613
    %2206 = vmatpush1.bf16.msra.mxu0 %v1612
    %2207 = vmatprep.subr.bf16.mxu0 %v1617
    %2208 = vmatpush1.bf16.msra.mxu0 %v1616
    %2209 = vmatprep.subr.bf16.mxu0 %v1621
    %2210 = vmatpush1.bf16.msra.mxu0 %v1620
    %2211 = vmatprep.mubr.bf16.mxu0 %v2136
    %2212 = vmatmul.mubr.bf16.gmra.mrb[0].mxu0 %v2015
    %v2213 = vpop.f32.mrb[0].mxu0
    %v2214 = vadd.f32 %v1357, %v2213
    %v2215 = vpop.f32.mrb[0].mxu0
    %v2216 = vadd.f32 %v1361, %v2215
    %v2217 = vpop.f32.mrb[0].mxu0
    %v2218 = vpop.f32.mrb[0].mxu0
    %2219 = vdwg.mxu0
    %v2220 = vxor.u32 %v2173, 2147483648
    %v2221 = vmul.f32 %v2220, 1.442695
    %v2222 = vpow.pop %v2221
    %v2223 = vadd.f32 %v2222, 1.0
    %v2224 = vrcp.pop %v2223
    %v2225 = vmul.f32 1.0, %v2224
    %v2226 = vxor.u32 %v2175, 2147483648
    %v2227 = vmul.f32 %v2226, 1.442695
    %v2228 = vpow.pop %v2227
    %v2229 = vadd.f32 %v2228, 1.0
    %v2230 = vrcp.pop %v2229
    %v2231 = vmul.f32 1.0, %v2230
    %v2232 = vmul.f32 %v2225, %v2216
    %v2233 = vadd.f32 %v2214, %v2232
    %v2234 = vtanh.pop %v2233
    %v2235 = vsub.f32 1.0, %v2231
    %v2236 = vmul.f32 %v2235, %v2234
    %v2237 = vmul.f32 %v2231, %v2012
    %v2238 = vadd.f32 %v2236, %v2237
    %v2239 = vpack.c.bf16 %v2130, %v2130
    %v2241 = vrot.slane %v2239, 3
    %2243 = vmatprep.subr.bf16.mxu0 %v1080
    %2244 = vmatpush1.bf16.msra.mxu0 %v1079
    %2245 = vmatprep.subr.bf16.mxu0 %v1083
    %2246 = vmatpush1.bf16.msra.mxu0 %v1082
    %2247 = vmatprep.subr.bf16.mxu0 %v1086
    %2248 = vmatpush1.bf16.msra.mxu0 %v1085
    %2249 = vmatprep.subr.bf16.mxu0 %v1089
    %2250 = vmatpush1.bf16.msra.mxu0 %v1088
    %2251 = vmatprep.subr.bf16.mxu0 %v1092
    %2252 = vmatpush1.bf16.msra.mxu0 %v1091
    %2253 = vmatprep.subr.bf16.mxu0 %v1095
    %2254 = vmatpush1.bf16.msra.mxu0 %v1094
    %2255 = vmatprep.subr.bf16.mxu0 %v1098
    %2256 = vmatpush1.bf16.msra.mxu0 %v1097
    %2257 = vmatprep.subr.bf16.mxu0 %v1101
    %2258 = vmatpush1.bf16.msra.mxu0 %v1100
    %2259 = vmatprep.subr.bf16.mxu0 0
    %2260 = vmatpush1.bf16.msra.mxu0 0
    %2261 = vmatprep.subr.bf16.mxu0 0
    %2262 = vmatpush1.bf16.msra.mxu0 0
    %2263 = vmatprep.subr.bf16.mxu0 0
    %2264 = vmatpush1.bf16.msra.mxu0 0
    %2265 = vmatprep.subr.bf16.mxu0 0
    %2266 = vmatpush1.bf16.msra.mxu0 0
    %2267 = vmatprep.subr.bf16.mxu0 0
    %2268 = vmatpush1.bf16.msra.mxu0 0
    %2269 = vmatprep.subr.bf16.mxu0 0
    %2270 = vmatpush1.bf16.msra.mxu0 0
    %2271 = vmatprep.subr.bf16.mxu0 0
    %2272 = vmatpush1.bf16.msra.mxu0 0
    %2273 = vmatprep.subr.bf16.mxu0 0
    %2274 = vmatpush1.bf16.msra.mxu0 0
    %2275 = vmatprep.mubr.bf16.mxu0 0
    %2276 = vmatmul.mubr.bf16.gmra.mrb[0].mxu0 %v2241
    %v2277 = vpop.f32.mrb[0].mxu0
    %v2278 = vadd.f32 %v987, %v2277
    %v2279 = vpop.f32.mrb[0].mxu0
    %v2280 = vadd.f32 %v991, %v2279
    %v2281 = vpop.f32.mrb[0].mxu0
    %v2282 = vpop.f32.mrb[0].mxu0
    %2283 = vdwg.mxu0
    %2284 = vmatprep.subr.bf16.mxu0 0
    %2285 = vmatpush1.bf16.msra.mxu0 %v1081
    %2286 = vmatprep.subr.bf16.mxu0 0
    %2287 = vmatpush1.bf16.msra.mxu0 %v1084
    %2288 = vmatprep.subr.bf16.mxu0 0
    %2289 = vmatpush1.bf16.msra.mxu0 %v1087
    %2290 = vmatprep.subr.bf16.mxu0 0
    %2291 = vmatpush1.bf16.msra.mxu0 %v1090
    %2292 = vmatprep.subr.bf16.mxu0 0
    %2293 = vmatpush1.bf16.msra.mxu0 %v1093
    %2294 = vmatprep.subr.bf16.mxu0 0
    %2295 = vmatpush1.bf16.msra.mxu0 %v1096
    %2296 = vmatprep.subr.bf16.mxu0 0
    %2297 = vmatpush1.bf16.msra.mxu0 %v1099
    %2298 = vmatprep.subr.bf16.mxu0 0
    %2299 = vmatpush1.bf16.msra.mxu0 %v1102
    %2300 = vmatprep.subr.bf16.mxu0 0
    %2301 = vmatpush1.bf16.msra.mxu0 0
    %2302 = vmatprep.subr.bf16.mxu0 0
    %2303 = vmatpush1.bf16.msra.mxu0 0
    %2304 = vmatprep.subr.bf16.mxu0 0
    %2305 = vmatpush1.bf16.msra.mxu0 0
    %2306 = vmatprep.subr.bf16.mxu0 0
    %2307 = vmatpush1.bf16.msra.mxu0 0
    %2308 = vmatprep.subr.bf16.mxu0 0
    %2309 = vmatpush1.bf16.msra.mxu0 0
    %2310 = vmatprep.subr.bf16.mxu0 0
    %2311 = vmatpush1.bf16.msra.mxu0 0
    %2312 = vmatprep.subr.bf16.mxu0 0
    %2313 = vmatpush1.bf16.msra.mxu0 0
    %2314 = vmatprep.subr.bf16.mxu0 0
    %2315 = vmatpush1.bf16.msra.mxu0 0
    %2316 = vmatprep.mubr.bf16.mxu0 0
    %2317 = vmatmul.mubr.bf16.gmra.mrb[0].mxu0 %v2241
    %v2318 = vpop.f32.mrb[0].mxu0
    %v2319 = vadd.f32 %v995, %v2318
    %v2320 = vpop.f32.mrb[0].mxu0
    %v2321 = vpop.f32.mrb[0].mxu0
    %v2322 = vpop.f32.mrb[0].mxu0
    %2323 = vdwg.mxu0
    %v2324 = vadd.f32 %v840, %v2278
    %v2325 = vxor.u32 %v2324, 2147483648
    %v2326 = vmul.f32 %v2325, 1.442695
    %v2327 = vpow.pop %v2326
    %v2328 = vadd.f32 %v2327, 1.0
    %v2329 = vrcp.pop %v2328
    %v2330 = vmul.f32 1.0, %v2329
    %v2331 = vadd.f32 %v842, %v2280
    %v2332 = vxor.u32 %v2331, 2147483648
    %v2333 = vmul.f32 %v2332, 1.442695
    %v2334 = vpow.pop %v2333
    %v2335 = vadd.f32 %v2334, 1.0
    %v2336 = vrcp.pop %v2335
    %v2337 = vmul.f32 1.0, %v2336
    %v2338 = vmul.f32 %v2330, %v2319
    %v2339 = vadd.f32 %v882, %v2338
    %v2340 = vtanh.pop %v2339
    %v2341 = vsub.f32 1.0, %v2337
    %v2342 = vmul.f32 %v2341, %v2340
    %v2344 = vrot.slane %v2130, 6
    %v2346 = vmul.f32 %v2337, %v2344
    %v2347 = vadd.f32 %v2342, %v2346
    %v2349 = vrot.slane %v2238, 2
    %v2351 = vpack.c.bf16 %v2349, %v2349
    %v2353 = vrot.slane %v2351, 3
    %2355 = vmatprep.subr.bf16.mxu0 %v1559
    %2356 = vmatpush1.bf16.msra.mxu0 %v1558
    %2357 = vmatprep.subr.bf16.mxu0 %v1563
    %2358 = vmatpush1.bf16.msra.mxu0 %v1562
    %2359 = vmatprep.subr.bf16.mxu0 %v1567
    %2360 = vmatpush1.bf16.msra.mxu0 %v1566
    %2361 = vmatprep.subr.bf16.mxu0 %v1571
    %2362 = vmatpush1.bf16.msra.mxu0 %v1570
    %2363 = vmatprep.subr.bf16.mxu0 %v1575
    %2364 = vmatpush1.bf16.msra.mxu0 %v1574
    %2365 = vmatprep.subr.bf16.mxu0 %v1579
    %2366 = vmatpush1.bf16.msra.mxu0 %v1578
    %2367 = vmatprep.subr.bf16.mxu0 %v1583
    %2368 = vmatpush1.bf16.msra.mxu0 %v1582
    %2369 = vmatprep.subr.bf16.mxu0 %v1587
    %2370 = vmatpush1.bf16.msra.mxu0 %v1586
    %2371 = vmatprep.subr.bf16.mxu0 %v1591
    %2372 = vmatpush1.bf16.msra.mxu0 %v1590
    %2373 = vmatprep.subr.bf16.mxu0 %v1595
    %2374 = vmatpush1.bf16.msra.mxu0 %v1594
    %2375 = vmatprep.subr.bf16.mxu0 %v1599
    %2376 = vmatpush1.bf16.msra.mxu0 %v1598
    %2377 = vmatprep.subr.bf16.mxu0 %v1603
    %2378 = vmatpush1.bf16.msra.mxu0 %v1602
    %2379 = vmatprep.subr.bf16.mxu0 %v1607
    %2380 = vmatpush1.bf16.msra.mxu0 %v1606
    %2381 = vmatprep.subr.bf16.mxu0 %v1611
    %2382 = vmatpush1.bf16.msra.mxu0 %v1610
    %2383 = vmatprep.subr.bf16.mxu0 %v1615
    %2384 = vmatpush1.bf16.msra.mxu0 %v1614
    %2385 = vmatprep.subr.bf16.mxu0 %v1619
    %2386 = vmatpush1.bf16.msra.mxu0 %v1618
    %2387 = vmatprep.mubr.bf16.mxu0 %v2353
    %2388 = vmatmul.mubr.bf16.gmra.mrb[0].mxu0 %v2241
    %v2389 = vpop.f32.mrb[0].mxu0
    %v2390 = vadd.f32 %v1349, %v2389
    %v2391 = vpop.f32.mrb[0].mxu0
    %v2392 = vadd.f32 %v1353, %v2391
    %v2393 = vpop.f32.mrb[0].mxu0
    %v2394 = vpop.f32.mrb[0].mxu0
    %2395 = vdwg.mxu0
    %2396 = vmatprep.subr.bf16.mxu0 %v1561
    %2397 = vmatpush1.bf16.msra.mxu0 %v1560
    %2398 = vmatprep.subr.bf16.mxu0 %v1565
    %2399 = vmatpush1.bf16.msra.mxu0 %v1564
    %2400 = vmatprep.subr.bf16.mxu0 %v1569
    %2401 = vmatpush1.bf16.msra.mxu0 %v1568
    %2402 = vmatprep.subr.bf16.mxu0 %v1573
    %2403 = vmatpush1.bf16.msra.mxu0 %v1572
    %2404 = vmatprep.subr.bf16.mxu0 %v1577
    %2405 = vmatpush1.bf16.msra.mxu0 %v1576
    %2406 = vmatprep.subr.bf16.mxu0 %v1581
    %2407 = vmatpush1.bf16.msra.mxu0 %v1580
    %2408 = vmatprep.subr.bf16.mxu0 %v1585
    %2409 = vmatpush1.bf16.msra.mxu0 %v1584
    %2410 = vmatprep.subr.bf16.mxu0 %v1589
    %2411 = vmatpush1.bf16.msra.mxu0 %v1588
    %2412 = vmatprep.subr.bf16.mxu0 %v1593
    %2413 = vmatpush1.bf16.msra.mxu0 %v1592
    %2414 = vmatprep.subr.bf16.mxu0 %v1597
    %2415 = vmatpush1.bf16.msra.mxu0 %v1596
    %2416 = vmatprep.subr.bf16.mxu0 %v1601
    %2417 = vmatpush1.bf16.msra.mxu0 %v1600
    %2418 = vmatprep.subr.bf16.mxu0 %v1605
    %2419 = vmatpush1.bf16.msra.mxu0 %v1604
    %2420 = vmatprep.subr.bf16.mxu0 %v1609
    %2421 = vmatpush1.bf16.msra.mxu0 %v1608
    %2422 = vmatprep.subr.bf16.mxu0 %v1613
    %2423 = vmatpush1.bf16.msra.mxu0 %v1612
    %2424 = vmatprep.subr.bf16.mxu0 %v1617
    %2425 = vmatpush1.bf16.msra.mxu0 %v1616
    %2426 = vmatprep.subr.bf16.mxu0 %v1621
    %2427 = vmatpush1.bf16.msra.mxu0 %v1620
    %2428 = vmatprep.mubr.bf16.mxu0 %v2353
    %2429 = vmatmul.mubr.bf16.gmra.mrb[0].mxu0 %v2241
    %v2430 = vpop.f32.mrb[0].mxu0
    %v2431 = vadd.f32 %v1357, %v2430
    %v2432 = vpop.f32.mrb[0].mxu0
    %v2433 = vadd.f32 %v1361, %v2432
    %v2434 = vpop.f32.mrb[0].mxu0
    %v2435 = vpop.f32.mrb[0].mxu0
    %2436 = vdwg.mxu0
    %v2437 = vxor.u32 %v2390, 2147483648
    %v2438 = vmul.f32 %v2437, 1.442695
    %v2439 = vpow.pop %v2438
    %v2440 = vadd.f32 %v2439, 1.0
    %v2441 = vrcp.pop %v2440
    %v2442 = vmul.f32 1.0, %v2441
    %v2443 = vxor.u32 %v2392, 2147483648
    %v2444 = vmul.f32 %v2443, 1.442695
    %v2445 = vpow.pop %v2444
    %v2446 = vadd.f32 %v2445, 1.0
    %v2447 = vrcp.pop %v2446
    %v2448 = vmul.f32 1.0, %v2447
    %v2449 = vmul.f32 %v2442, %v2433
    %v2450 = vadd.f32 %v2431, %v2449
    %v2451 = vtanh.pop %v2450
    %v2452 = vsub.f32 1.0, %v2448
    %v2453 = vmul.f32 %v2452, %v2451
    %v2454 = vmul.f32 %v2448, %v2238
    %v2455 = vadd.f32 %v2453, %v2454
    %v2456 = vpack.c.bf16 %v2347, %v2347
    %2457 = vmatprep.subr.bf16.mxu0 %v1080
    %2458 = vmatpush1.bf16.msra.mxu0 %v1079
    %2459 = vmatprep.subr.bf16.mxu0 %v1083
    %2460 = vmatpush1.bf16.msra.mxu0 %v1082
    %2461 = vmatprep.subr.bf16.mxu0 %v1086
    %2462 = vmatpush1.bf16.msra.mxu0 %v1085
    %2463 = vmatprep.subr.bf16.mxu0 %v1089
    %2464 = vmatpush1.bf16.msra.mxu0 %v1088
    %2465 = vmatprep.subr.bf16.mxu0 %v1092
    %2466 = vmatpush1.bf16.msra.mxu0 %v1091
    %2467 = vmatprep.subr.bf16.mxu0 %v1095
    %2468 = vmatpush1.bf16.msra.mxu0 %v1094
    %2469 = vmatprep.subr.bf16.mxu0 %v1098
    %2470 = vmatpush1.bf16.msra.mxu0 %v1097
    %2471 = vmatprep.subr.bf16.mxu0 %v1101
    %2472 = vmatpush1.bf16.msra.mxu0 %v1100
    %2473 = vmatprep.subr.bf16.mxu0 0
    %2474 = vmatpush1.bf16.msra.mxu0 0
    %2475 = vmatprep.subr.bf16.mxu0 0
    %2476 = vmatpush1.bf16.msra.mxu0 0
    %2477 = vmatprep.subr.bf16.mxu0 0
    %2478 = vmatpush1.bf16.msra.mxu0 0
    %2479 = vmatprep.subr.bf16.mxu0 0
    %2480 = vmatpush1.bf16.msra.mxu0 0
    %2481 = vmatprep.subr.bf16.mxu0 0
    %2482 = vmatpush1.bf16.msra.mxu0 0
    %2483 = vmatprep.subr.bf16.mxu0 0
    %2484 = vmatpush1.bf16.msra.mxu0 0
    %2485 = vmatprep.subr.bf16.mxu0 0
    %2486 = vmatpush1.bf16.msra.mxu0 0
    %2487 = vmatprep.subr.bf16.mxu0 0
    %2488 = vmatpush1.bf16.msra.mxu0 0
    %2489 = vmatprep.mubr.bf16.mxu0 0
    %2490 = vmatmul.mubr.bf16.gmra.mrb[0].mxu0 %v2456
    %v2491 = vpop.f32.mrb[0].mxu0
    %v2492 = vadd.f32 %v987, %v2491
    %v2493 = vpop.f32.mrb[0].mxu0
    %v2494 = vadd.f32 %v991, %v2493
    %v2495 = vpop.f32.mrb[0].mxu0
    %v2496 = vpop.f32.mrb[0].mxu0
    %2497 = vdwg.mxu0
    %2498 = vmatprep.subr.bf16.mxu0 0
    %2499 = vmatpush1.bf16.msra.mxu0 %v1081
    %2500 = vmatprep.subr.bf16.mxu0 0
    %2501 = vmatpush1.bf16.msra.mxu0 %v1084
    %2502 = vmatprep.subr.bf16.mxu0 0
    %2503 = vmatpush1.bf16.msra.mxu0 %v1087
    %2504 = vmatprep.subr.bf16.mxu0 0
    %2505 = vmatpush1.bf16.msra.mxu0 %v1090
    %2506 = vmatprep.subr.bf16.mxu0 0
    %2507 = vmatpush1.bf16.msra.mxu0 %v1093
    %2508 = vmatprep.subr.bf16.mxu0 0
    %2509 = vmatpush1.bf16.msra.mxu0 %v1096
    %2510 = vmatprep.subr.bf16.mxu0 0
    %2511 = vmatpush1.bf16.msra.mxu0 %v1099
    %2512 = vmatprep.subr.bf16.mxu0 0
    %2513 = vmatpush1.bf16.msra.mxu0 %v1102
    %2514 = vmatprep.subr.bf16.mxu0 0
    %2515 = vmatpush1.bf16.msra.mxu0 0
    %2516 = vmatprep.subr.bf16.mxu0 0
    %2517 = vmatpush1.bf16.msra.mxu0 0
    %2518 = vmatprep.subr.bf16.mxu0 0
    %2519 = vmatpush1.bf16.msra.mxu0 0
    %2520 = vmatprep.subr.bf16.mxu0 0
    %2521 = vmatpush1.bf16.msra.mxu0 0
    %2522 = vmatprep.subr.bf16.mxu0 0
    %2523 = vmatpush1.bf16.msra.mxu0 0
    %2524 = vmatprep.subr.bf16.mxu0 0
    %2525 = vmatpush1.bf16.msra.mxu0 0
    %2526 = vmatprep.subr.bf16.mxu0 0
    %2527 = vmatpush1.bf16.msra.mxu0 0
    %2528 = vmatprep.subr.bf16.mxu0 0
    %2529 = vmatpush1.bf16.msra.mxu0 0
    %2530 = vmatprep.mubr.bf16.mxu0 0
    %2531 = vmatmul.mubr.bf16.gmra.mrb[0].mxu0 %v2456
    %v2532 = vpop.f32.mrb[0].mxu0
    %v2533 = vadd.f32 %v995, %v2532
    %v2534 = vpop.f32.mrb[0].mxu0
    %v2535 = vpop.f32.mrb[0].mxu0
    %v2536 = vpop.f32.mrb[0].mxu0
    %2537 = vdwg.mxu0
    %v2539 = vrot.slane %v2492, 6
    %v2541 = vadd.f32 %v840, %v2539
    %v2542 = vxor.u32 %v2541, 2147483648
    %v2543 = vmul.f32 %v2542, 1.442695
    %v2544 = vpow.pop %v2543
    %v2545 = vadd.f32 %v2544, 1.0
    %v2546 = vrcp.pop %v2545
    %v2547 = vmul.f32 1.0, %v2546
    %v2549 = vrot.slane %v2494, 6
    %v2551 = vadd.f32 %v842, %v2549
    %v2552 = vxor.u32 %v2551, 2147483648
    %v2553 = vmul.f32 %v2552, 1.442695
    %v2554 = vpow.pop %v2553
    %v2555 = vadd.f32 %v2554, 1.0
    %v2556 = vrcp.pop %v2555
    %v2557 = vmul.f32 1.0, %v2556
    %v2559 = vrot.slane %v2533, 6
    %v2561 = vmul.f32 %v2547, %v2559
    %v2562 = vadd.f32 %v882, %v2561
    %v2563 = vtanh.pop %v2562
    %v2564 = vsub.f32 1.0, %v2557
    %v2565 = vmul.f32 %v2564, %v2563
    %v2567 = vrot.slane %v2347, 6
    %v2569 = vmul.f32 %v2557, %v2567
    %v2570 = vadd.f32 %v2565, %v2569
    %v2571 = vpack.c.bf16 %v2455, %v2455
    %2572 = vmatprep.subr.bf16.mxu0 %v1559
    %2573 = vmatpush1.bf16.msra.mxu0 %v1558
    %2574 = vmatprep.subr.bf16.mxu0 %v1563
    %2575 = vmatpush1.bf16.msra.mxu0 %v1562
    %2576 = vmatprep.subr.bf16.mxu0 %v1567
    %2577 = vmatpush1.bf16.msra.mxu0 %v1566
    %2578 = vmatprep.subr.bf16.mxu0 %v1571
    %2579 = vmatpush1.bf16.msra.mxu0 %v1570
    %2580 = vmatprep.subr.bf16.mxu0 %v1575
    %2581 = vmatpush1.bf16.msra.mxu0 %v1574
    %2582 = vmatprep.subr.bf16.mxu0 %v1579
    %2583 = vmatpush1.bf16.msra.mxu0 %v1578
    %2584 = vmatprep.subr.bf16.mxu0 %v1583
    %2585 = vmatpush1.bf16.msra.mxu0 %v1582
    %2586 = vmatprep.subr.bf16.mxu0 %v1587
    %2587 = vmatpush1.bf16.msra.mxu0 %v1586
    %2588 = vmatprep.subr.bf16.mxu0 %v1591
    %2589 = vmatpush1.bf16.msra.mxu0 %v1590
    %2590 = vmatprep.subr.bf16.mxu0 %v1595
    %2591 = vmatpush1.bf16.msra.mxu0 %v1594
    %2592 = vmatprep.subr.bf16.mxu0 %v1599
    %2593 = vmatpush1.bf16.msra.mxu0 %v1598
    %2594 = vmatprep.subr.bf16.mxu0 %v1603
    %2595 = vmatpush1.bf16.msra.mxu0 %v1602
    %2596 = vmatprep.subr.bf16.mxu0 %v1607
    %2597 = vmatpush1.bf16.msra.mxu0 %v1606
    %2598 = vmatprep.subr.bf16.mxu0 %v1611
    %2599 = vmatpush1.bf16.msra.mxu0 %v1610
    %2600 = vmatprep.subr.bf16.mxu0 %v1615
    %2601 = vmatpush1.bf16.msra.mxu0 %v1614
    %2602 = vmatprep.subr.bf16.mxu0 %v1619
    %2603 = vmatpush1.bf16.msra.mxu0 %v1618
    %2604 = vmatprep.mubr.bf16.mxu0 %v2571
    %2605 = vmatmul.mubr.bf16.gmra.mrb[0].mxu0 %v2456
    %v2606 = vpop.f32.mrb[0].mxu0
    %v2607 = vadd.f32 %v1349, %v2606
    %v2608 = vpop.f32.mrb[0].mxu0
    %v2609 = vadd.f32 %v1353, %v2608
    %v2610 = vpop.f32.mrb[0].mxu0
    %v2611 = vpop.f32.mrb[0].mxu0
    %2612 = vdwg.mxu0
    %2613 = vmatprep.subr.bf16.mxu0 %v1561
    %2614 = vmatpush1.bf16.msra.mxu0 %v1560
    %2615 = vmatprep.subr.bf16.mxu0 %v1565
    %2616 = vmatpush1.bf16.msra.mxu0 %v1564
    %2617 = vmatprep.subr.bf16.mxu0 %v1569
    %2618 = vmatpush1.bf16.msra.mxu0 %v1568
    %2619 = vmatprep.subr.bf16.mxu0 %v1573
    %2620 = vmatpush1.bf16.msra.mxu0 %v1572
    %2621 = vmatprep.subr.bf16.mxu0 %v1577
    %2622 = vmatpush1.bf16.msra.mxu0 %v1576
    %2623 = vmatprep.subr.bf16.mxu0 %v1581
    %2624 = vmatpush1.bf16.msra.mxu0 %v1580
    %2625 = vmatprep.subr.bf16.mxu0 %v1585
    %2626 = vmatpush1.bf16.msra.mxu0 %v1584
    %2627 = vmatprep.subr.bf16.mxu0 %v1589
    %2628 = vmatpush1.bf16.msra.mxu0 %v1588
    %2629 = vmatprep.subr.bf16.mxu0 %v1593
    %2630 = vmatpush1.bf16.msra.mxu0 %v1592
    %2631 = vmatprep.subr.bf16.mxu0 %v1597
    %2632 = vmatpush1.bf16.msra.mxu0 %v1596
    %2633 = vmatprep.subr.bf16.mxu0 %v1601
    %2634 = vmatpush1.bf16.msra.mxu0 %v1600
    %2635 = vmatprep.subr.bf16.mxu0 %v1605
    %2636 = vmatpush1.bf16.msra.mxu0 %v1604
    %2637 = vmatprep.subr.bf16.mxu0 %v1609
    %2638 = vmatpush1.bf16.msra.mxu0 %v1608
    %2639 = vmatprep.subr.bf16.mxu0 %v1613
    %2640 = vmatpush1.bf16.msra.mxu0 %v1612
    %2641 = vmatprep.subr.bf16.mxu0 %v1617
    %2642 = vmatpush1.bf16.msra.mxu0 %v1616
    %2643 = vmatprep.subr.bf16.mxu0 %v1621
    %2644 = vmatpush1.bf16.msra.mxu0 %v1620
    %2645 = vmatprep.mubr.bf16.mxu0 %v2571
    %2646 = vmatmul.mubr.bf16.gmra.mrb[0].mxu0 %v2456
    %v2647 = vpop.f32.mrb[0].mxu0
    %v2648 = vadd.f32 %v1357, %v2647
    %v2649 = vpop.f32.mrb[0].mxu0
    %v2650 = vadd.f32 %v1361, %v2649
    %v2651 = vpop.f32.mrb[0].mxu0
    %v2652 = vpop.f32.mrb[0].mxu0
    %2653 = vdwg.mxu0
    %v2654 = vxor.u32 %v2607, 2147483648
    %v2655 = vmul.f32 %v2654, 1.442695
    %v2656 = vpow.pop %v2655
    %v2657 = vadd.f32 %v2656, 1.0
    %v2658 = vrcp.pop %v2657
    %v2659 = vmul.f32 1.0, %v2658
    %v2660 = vxor.u32 %v2609, 2147483648
    %v2661 = vmul.f32 %v2660, 1.442695
    %v2662 = vpow.pop %v2661
    %v2663 = vadd.f32 %v2662, 1.0
    %v2664 = vrcp.pop %v2663
    %v2665 = vmul.f32 1.0, %v2664
    %v2666 = vmul.f32 %v2659, %v2650
    %v2667 = vadd.f32 %v2648, %v2666
    %v2668 = vtanh.pop %v2667
    %v2669 = vsub.f32 1.0, %v2665
    %v2670 = vmul.f32 %v2669, %v2668
    %v2671 = vmul.f32 %v2665, %v2455
    %v2672 = vadd.f32 %v2670, %v2671
    %v2673 = vpack.c.bf16 %v2570, %v2570
    %v2675 = vrot.slane %v2673, 1
    %2677 = vmatprep.subr.bf16.mxu0 %v1080
    %2678 = vmatpush1.bf16.msra.mxu0 %v1079
    %2679 = vmatprep.subr.bf16.mxu0 %v1083
    %2680 = vmatpush1.bf16.msra.mxu0 %v1082
    %2681 = vmatprep.subr.bf16.mxu0 %v1086
    %2682 = vmatpush1.bf16.msra.mxu0 %v1085
    %2683 = vmatprep.subr.bf16.mxu0 %v1089
    %2684 = vmatpush1.bf16.msra.mxu0 %v1088
    %2685 = vmatprep.subr.bf16.mxu0 %v1092
    %2686 = vmatpush1.bf16.msra.mxu0 %v1091
    %2687 = vmatprep.subr.bf16.mxu0 %v1095
    %2688 = vmatpush1.bf16.msra.mxu0 %v1094
    %2689 = vmatprep.subr.bf16.mxu0 %v1098
    %2690 = vmatpush1.bf16.msra.mxu0 %v1097
    %2691 = vmatprep.subr.bf16.mxu0 %v1101
    %2692 = vmatpush1.bf16.msra.mxu0 %v1100
    %2693 = vmatprep.subr.bf16.mxu0 0
    %2694 = vmatpush1.bf16.msra.mxu0 0
    %2695 = vmatprep.subr.bf16.mxu0 0
    %2696 = vmatpush1.bf16.msra.mxu0 0
    %2697 = vmatprep.subr.bf16.mxu0 0
    %2698 = vmatpush1.bf16.msra.mxu0 0
    %2699 = vmatprep.subr.bf16.mxu0 0
    %2700 = vmatpush1.bf16.msra.mxu0 0
    %2701 = vmatprep.subr.bf16.mxu0 0
    %2702 = vmatpush1.bf16.msra.mxu0 0
    %2703 = vmatprep.subr.bf16.mxu0 0
    %2704 = vmatpush1.bf16.msra.mxu0 0
    %2705 = vmatprep.subr.bf16.mxu0 0
    %2706 = vmatpush1.bf16.msra.mxu0 0
    %2707 = vmatprep.subr.bf16.mxu0 0
    %2708 = vmatpush1.bf16.msra.mxu0 0
    %2709 = vmatprep.mubr.bf16.mxu0 0
    %2710 = vmatmul.mubr.bf16.gmra.mrb[0].mxu0 %v2675
    %v2711 = vpop.f32.mrb[0].mxu0
    %v2712 = vadd.f32 %v987, %v2711
    %v2713 = vpop.f32.mrb[0].mxu0
    %v2714 = vadd.f32 %v991, %v2713
    %v2715 = vpop.f32.mrb[0].mxu0
    %v2716 = vpop.f32.mrb[0].mxu0
    %2717 = vdwg.mxu0
    %2718 = vmatprep.subr.bf16.mxu0 0
    %2719 = vmatpush1.bf16.msra.mxu0 %v1081
    %2720 = vmatprep.subr.bf16.mxu0 0
    %2721 = vmatpush1.bf16.msra.mxu0 %v1084
    %2722 = vmatprep.subr.bf16.mxu0 0
    %2723 = vmatpush1.bf16.msra.mxu0 %v1087
    %2724 = vmatprep.subr.bf16.mxu0 0
    %2725 = vmatpush1.bf16.msra.mxu0 %v1090
    %2726 = vmatprep.subr.bf16.mxu0 0
    %2727 = vmatpush1.bf16.msra.mxu0 %v1093
    %2728 = vmatprep.subr.bf16.mxu0 0
    %2729 = vmatpush1.bf16.msra.mxu0 %v1096
    %2730 = vmatprep.subr.bf16.mxu0 0
    %2731 = vmatpush1.bf16.msra.mxu0 %v1099
    %2732 = vmatprep.subr.bf16.mxu0 0
    %2733 = vmatpush1.bf16.msra.mxu0 %v1102
    %2734 = vmatprep.subr.bf16.mxu0 0
    %2735 = vmatpush1.bf16.msra.mxu0 0
    %2736 = vmatprep.subr.bf16.mxu0 0
    %2737 = vmatpush1.bf16.msra.mxu0 0
    %2738 = vmatprep.subr.bf16.mxu0 0
    %2739 = vmatpush1.bf16.msra.mxu0 0
    %2740 = vmatprep.subr.bf16.mxu0 0
    %2741 = vmatpush1.bf16.msra.mxu0 0
    %2742 = vmatprep.subr.bf16.mxu0 0
    %2743 = vmatpush1.bf16.msra.mxu0 0
    %2744 = vmatprep.subr.bf16.mxu0 0
    %2745 = vmatpush1.bf16.msra.mxu0 0
    %2746 = vmatprep.subr.bf16.mxu0 0
    %2747 = vmatpush1.bf16.msra.mxu0 0
    %2748 = vmatprep.subr.bf16.mxu0 0
    %2749 = vmatpush1.bf16.msra.mxu0 0
    %2750 = vmatprep.mubr.bf16.mxu0 0
    %2751 = vmatmul.mubr.bf16.gmra.mrb[0].mxu0 %v2675
    %v2752 = vpop.f32.mrb[0].mxu0
    %v2753 = vadd.f32 %v995, %v2752
    %v2754 = vpop.f32.mrb[0].mxu0
    %v2755 = vpop.f32.mrb[0].mxu0
    %v2756 = vpop.f32.mrb[0].mxu0
    %2757 = vdwg.mxu0
    %v2759 = vrot.slane %v2712, 4
    %v2761 = vadd.f32 %v840, %v2759
    %v2762 = vxor.u32 %v2761, 2147483648
    %v2763 = vmul.f32 %v2762, 1.442695
    %v2764 = vpow.pop %v2763
    %v2765 = vadd.f32 %v2764, 1.0
    %v2766 = vrcp.pop %v2765
    %v2767 = vmul.f32 1.0, %v2766
    %v2769 = vrot.slane %v2714, 4
    %v2771 = vadd.f32 %v842, %v2769
    %v2772 = vxor.u32 %v2771, 2147483648
    %v2773 = vmul.f32 %v2772, 1.442695
    %v2774 = vpow.pop %v2773
    %v2775 = vadd.f32 %v2774, 1.0
    %v2776 = vrcp.pop %v2775
    %v2777 = vmul.f32 1.0, %v2776
    %v2779 = vrot.slane %v2753, 4
    %v2781 = vmul.f32 %v2767, %v2779
    %v2782 = vadd.f32 %v882, %v2781
    %v2783 = vtanh.pop %v2782
    %v2784 = vsub.f32 1.0, %v2777
    %v2785 = vmul.f32 %v2784, %v2783
    %v2787 = vrot.slane %v2570, 6
    %v2789 = vmul.f32 %v2777, %v2787
    %v2790 = vadd.f32 %v2785, %v2789
    %v2792 = vrot.slane %v2672, 6
    %v2794 = vpack.c.bf16 %v2792, %v2792
    %v2796 = vrot.slane %v2794, 1
    %2798 = vmatprep.subr.bf16.mxu0 %v1559
    %2799 = vmatpush1.bf16.msra.mxu0 %v1558
    %2800 = vmatprep.subr.bf16.mxu0 %v1563
    %2801 = vmatpush1.bf16.msra.mxu0 %v1562
    %2802 = vmatprep.subr.bf16.mxu0 %v1567
    %2803 = vmatpush1.bf16.msra.mxu0 %v1566
    %2804 = vmatprep.subr.bf16.mxu0 %v1571
    %2805 = vmatpush1.bf16.msra.mxu0 %v1570
    %2806 = vmatprep.subr.bf16.mxu0 %v1575
    %2807 = vmatpush1.bf16.msra.mxu0 %v1574
    %2808 = vmatprep.subr.bf16.mxu0 %v1579
    %2809 = vmatpush1.bf16.msra.mxu0 %v1578
    %2810 = vmatprep.subr.bf16.mxu0 %v1583
    %2811 = vmatpush1.bf16.msra.mxu0 %v1582
    %2812 = vmatprep.subr.bf16.mxu0 %v1587
    %2813 = vmatpush1.bf16.msra.mxu0 %v1586
    %2814 = vmatprep.subr.bf16.mxu0 %v1591
    %2815 = vmatpush1.bf16.msra.mxu0 %v1590
    %2816 = vmatprep.subr.bf16.mxu0 %v1595
    %2817 = vmatpush1.bf16.msra.mxu0 %v1594
    %2818 = vmatprep.subr.bf16.mxu0 %v1599
    %2819 = vmatpush1.bf16.msra.mxu0 %v1598
    %2820 = vmatprep.subr.bf16.mxu0 %v1603
    %2821 = vmatpush1.bf16.msra.mxu0 %v1602
    %2822 = vmatprep.subr.bf16.mxu0 %v1607
    %2823 = vmatpush1.bf16.msra.mxu0 %v1606
    %2824 = vmatprep.subr.bf16.mxu0 %v1611
    %2825 = vmatpush1.bf16.msra.mxu0 %v1610
    %2826 = vmatprep.subr.bf16.mxu0 %v1615
    %2827 = vmatpush1.bf16.msra.mxu0 %v1614
    %2828 = vmatprep.subr.bf16.mxu0 %v1619
    %2829 = vmatpush1.bf16.msra.mxu0 %v1618
    %2830 = vmatprep.mubr.bf16.mxu0 %v2796
    %2831 = vmatmul.mubr.bf16.gmra.mrb[0].mxu0 %v2675
    %v2832 = vpop.f32.mrb[0].mxu0
    %v2833 = vadd.f32 %v1349, %v2832
    %v2834 = vpop.f32.mrb[0].mxu0
    %v2835 = vadd.f32 %v1353, %v2834
    %v2836 = vpop.f32.mrb[0].mxu0
    %v2837 = vpop.f32.mrb[0].mxu0
    %2838 = vdwg.mxu0
    %2839 = vmatprep.subr.bf16.mxu0 %v1561
    %2840 = vmatpush1.bf16.msra.mxu0 %v1560
    %2841 = vmatprep.subr.bf16.mxu0 %v1565
    %2842 = vmatpush1.bf16.msra.mxu0 %v1564
    %2843 = vmatprep.subr.bf16.mxu0 %v1569
    %2844 = vmatpush1.bf16.msra.mxu0 %v1568
    %2845 = vmatprep.subr.bf16.mxu0 %v1573
    %2846 = vmatpush1.bf16.msra.mxu0 %v1572
    %2847 = vmatprep.subr.bf16.mxu0 %v1577
    %2848 = vmatpush1.bf16.msra.mxu0 %v1576
    %2849 = vmatprep.subr.bf16.mxu0 %v1581
    %2850 = vmatpush1.bf16.msra.mxu0 %v1580
    %2851 = vmatprep.subr.bf16.mxu0 %v1585
    %2852 = vmatpush1.bf16.msra.mxu0 %v1584
    %2853 = vmatprep.subr.bf16.mxu0 %v1589
    %2854 = vmatpush1.bf16.msra.mxu0 %v1588
    %2855 = vmatprep.subr.bf16.mxu0 %v1593
    %2856 = vmatpush1.bf16.msra.mxu0 %v1592
    %2857 = vmatprep.subr.bf16.mxu0 %v1597
    %2858 = vmatpush1.bf16.msra.mxu0 %v1596
    %2859 = vmatprep.subr.bf16.mxu0 %v1601
    %2860 = vmatpush1.bf16.msra.mxu0 %v1600
    %2861 = vmatprep.subr.bf16.mxu0 %v1605
    %2862 = vmatpush1.bf16.msra.mxu0 %v1604
    %2863 = vmatprep.subr.bf16.mxu0 %v1609
    %2864 = vmatpush1.bf16.msra.mxu0 %v1608
    %2865 = vmatprep.subr.bf16.mxu0 %v1613
    %2866 = vmatpush1.bf16.msra.mxu0 %v1612
    %2867 = vmatprep.subr.bf16.mxu0 %v1617
    %2868 = vmatpush1.bf16.msra.mxu0 %v1616
    %2869 = vmatprep.subr.bf16.mxu0 %v1621
    %2870 = vmatpush1.bf16.msra.mxu0 %v1620
    %2871 = vmatprep.mubr.bf16.mxu0 %v2796
    %2872 = vmatmul.mubr.bf16.gmra.mrb[0].mxu0 %v2675
    %v2873 = vpop.f32.mrb[0].mxu0
    %v2874 = vadd.f32 %v1357, %v2873
    %v2875 = vpop.f32.mrb[0].mxu0
    %v2876 = vadd.f32 %v1361, %v2875
    %v2877 = vpop.f32.mrb[0].mxu0
    %v2878 = vpop.f32.mrb[0].mxu0
    %2879 = vdwg.mxu0
    %v2880 = vxor.u32 %v2833, 2147483648
    %v2881 = vmul.f32 %v2880, 1.442695
    %v2882 = vpow.pop %v2881
    %v2883 = vadd.f32 %v2882, 1.0
    %v2884 = vrcp.pop %v2883
    %v2885 = vmul.f32 1.0, %v2884
    %v2886 = vxor.u32 %v2835, 2147483648
    %v2887 = vmul.f32 %v2886, 1.442695
    %v2888 = vpow.pop %v2887
    %v2889 = vadd.f32 %v2888, 1.0
    %v2890 = vrcp.pop %v2889
    %v2891 = vmul.f32 1.0, %v2890
    %v2892 = vmul.f32 %v2885, %v2876
    %v2893 = vadd.f32 %v2874, %v2892
    %v2894 = vtanh.pop %v2893
    %v2895 = vsub.f32 1.0, %v2891
    %v2896 = vmul.f32 %v2895, %v2894
    %v2897 = vmul.f32 %v2891, %v2672
    %v2898 = vadd.f32 %v2896, %v2897
    %v2899 = vpack.c.bf16 %v2790, %v2790
    %v2901 = vrot.slane %v2899, 2
    %2903 = vmatprep.subr.bf16.mxu0 %v1080
    %2904 = vmatpush1.bf16.msra.mxu0 %v1079
    %2905 = vmatprep.subr.bf16.mxu0 %v1083
    %2906 = vmatpush1.bf16.msra.mxu0 %v1082
    %2907 = vmatprep.subr.bf16.mxu0 %v1086
    %2908 = vmatpush1.bf16.msra.mxu0 %v1085
    %2909 = vmatprep.subr.bf16.mxu0 %v1089
    %2910 = vmatpush1.bf16.msra.mxu0 %v1088
    %2911 = vmatprep.subr.bf16.mxu0 %v1092
    %2912 = vmatpush1.bf16.msra.mxu0 %v1091
    %2913 = vmatprep.subr.bf16.mxu0 %v1095
    %2914 = vmatpush1.bf16.msra.mxu0 %v1094
    %2915 = vmatprep.subr.bf16.mxu0 %v1098
    %2916 = vmatpush1.bf16.msra.mxu0 %v1097
    %2917 = vmatprep.subr.bf16.mxu0 %v1101
    %2918 = vmatpush1.bf16.msra.mxu0 %v1100
    %2919 = vmatprep.subr.bf16.mxu0 0
    %2920 = vmatpush1.bf16.msra.mxu0 0
    %2921 = vmatprep.subr.bf16.mxu0 0
    %2922 = vmatpush1.bf16.msra.mxu0 0
    %2923 = vmatprep.subr.bf16.mxu0 0
    %2924 = vmatpush1.bf16.msra.mxu0 0
    %2925 = vmatprep.subr.bf16.mxu0 0
    %2926 = vmatpush1.bf16.msra.mxu0 0
    %2927 = vmatprep.subr.bf16.mxu0 0
    %2928 = vmatpush1.bf16.msra.mxu0 0
    %2929 = vmatprep.subr.bf16.mxu0 0
    %2930 = vmatpush1.bf16.msra.mxu0 0
    %2931 = vmatprep.subr.bf16.mxu0 0
    %2932 = vmatpush1.bf16.msra.mxu0 0
    %2933 = vmatprep.subr.bf16.mxu0 0
    %2934 = vmatpush1.bf16.msra.mxu0 0
    %2935 = vmatprep.mubr.bf16.mxu0 0
    %2936 = vmatmul.mubr.bf16.gmra.mrb[0].mxu0 %v2901
    %v2937 = vpop.f32.mrb[0].mxu0
    %v2938 = vadd.f32 %v987, %v2937
    %v2939 = vpop.f32.mrb[0].mxu0
    %v2940 = vadd.f32 %v991, %v2939
    %v2941 = vpop.f32.mrb[0].mxu0
    %v2942 = vpop.f32.mrb[0].mxu0
    %2943 = vdwg.mxu0
    %2944 = vmatprep.subr.bf16.mxu0 0
    %2945 = vmatpush1.bf16.msra.mxu0 %v1081
    %2946 = vmatprep.subr.bf16.mxu0 0
    %2947 = vmatpush1.bf16.msra.mxu0 %v1084
    %2948 = vmatprep.subr.bf16.mxu0 0
    %2949 = vmatpush1.bf16.msra.mxu0 %v1087
    %2950 = vmatprep.subr.bf16.mxu0 0
    %2951 = vmatpush1.bf16.msra.mxu0 %v1090
    %2952 = vmatprep.subr.bf16.mxu0 0
    %2953 = vmatpush1.bf16.msra.mxu0 %v1093
    %2954 = vmatprep.subr.bf16.mxu0 0
    %2955 = vmatpush1.bf16.msra.mxu0 %v1096
    %2956 = vmatprep.subr.bf16.mxu0 0
    %2957 = vmatpush1.bf16.msra.mxu0 %v1099
    %2958 = vmatprep.subr.bf16.mxu0 0
    %2959 = vmatpush1.bf16.msra.mxu0 %v1102
    %2960 = vmatprep.subr.bf16.mxu0 0
    %2961 = vmatpush1.bf16.msra.mxu0 0
    %2962 = vmatprep.subr.bf16.mxu0 0
    %2963 = vmatpush1.bf16.msra.mxu0 0
    %2964 = vmatprep.subr.bf16.mxu0 0
    %2965 = vmatpush1.bf16.msra.mxu0 0
    %2966 = vmatprep.subr.bf16.mxu0 0
    %2967 = vmatpush1.bf16.msra.mxu0 0
    %2968 = vmatprep.subr.bf16.mxu0 0
    %2969 = vmatpush1.bf16.msra.mxu0 0
    %2970 = vmatprep.subr.bf16.mxu0 0
    %2971 = vmatpush1.bf16.msra.mxu0 0
    %2972 = vmatprep.subr.bf16.mxu0 0
    %2973 = vmatpush1.bf16.msra.mxu0 0
    %2974 = vmatprep.subr.bf16.mxu0 0
    %2975 = vmatpush1.bf16.msra.mxu0 0
    %2976 = vmatprep.mubr.bf16.mxu0 0
    %2977 = vmatmul.mubr.bf16.gmra.mrb[0].mxu0 %v2901
    %v2978 = vpop.f32.mrb[0].mxu0
    %v2979 = vadd.f32 %v995, %v2978
    %v2980 = vpop.f32.mrb[0].mxu0
    %v2981 = vpop.f32.mrb[0].mxu0
    %v2982 = vpop.f32.mrb[0].mxu0
    %2983 = vdwg.mxu0
    %v2985 = vrot.slane %v2938, 2
    %v2987 = vadd.f32 %v840, %v2985
    %v2988 = vxor.u32 %v2987, 2147483648
    %v2989 = vmul.f32 %v2988, 1.442695
    %v2990 = vpow.pop %v2989
    %v2991 = vadd.f32 %v2990, 1.0
    %v2992 = vrcp.pop %v2991
    %v2993 = vmul.f32 1.0, %v2992
    %v2995 = vrot.slane %v2940, 2
    %v2997 = vadd.f32 %v842, %v2995
    %v2998 = vxor.u32 %v2997, 2147483648
    %v2999 = vmul.f32 %v2998, 1.442695
    %v3000 = vpow.pop %v2999
    %v3001 = vadd.f32 %v3000, 1.0
    %v3002 = vrcp.pop %v3001
    %v3003 = vmul.f32 1.0, %v3002
    %v3005 = vrot.slane %v2979, 2
    %v3007 = vmul.f32 %v2993, %v3005
    %v3008 = vadd.f32 %v882, %v3007
    %v3009 = vtanh.pop %v3008
    %v3010 = vsub.f32 1.0, %v3003
    %v3011 = vmul.f32 %v3010, %v3009
    %v3013 = vrot.slane %v2790, 6
    %v3015 = vmul.f32 %v3003, %v3013
    %v3016 = vadd.f32 %v3011, %v3015
    %v3018 = vrot.slane %v2898, 4
    %v3020 = vpack.c.bf16 %v3018, %v3018
    %v3022 = vrot.slane %v3020, 2
    %3024 = vmatprep.subr.bf16.mxu0 %v1559
    %3025 = vmatpush1.bf16.msra.mxu0 %v1558
    %3026 = vmatprep.subr.bf16.mxu0 %v1563
    %3027 = vmatpush1.bf16.msra.mxu0 %v1562
    %3028 = vmatprep.subr.bf16.mxu0 %v1567
    %3029 = vmatpush1.bf16.msra.mxu0 %v1566
    %3030 = vmatprep.subr.bf16.mxu0 %v1571
    %3031 = vmatpush1.bf16.msra.mxu0 %v1570
    %3032 = vmatprep.subr.bf16.mxu0 %v1575
    %3033 = vmatpush1.bf16.msra.mxu0 %v1574
    %3034 = vmatprep.subr.bf16.mxu0 %v1579
    %3035 = vmatpush1.bf16.msra.mxu0 %v1578
    %3036 = vmatprep.subr.bf16.mxu0 %v1583
    %3037 = vmatpush1.bf16.msra.mxu0 %v1582
    %3038 = vmatprep.subr.bf16.mxu0 %v1587
    %3039 = vmatpush1.bf16.msra.mxu0 %v1586
    %3040 = vmatprep.subr.bf16.mxu0 %v1591
    %3041 = vmatpush1.bf16.msra.mxu0 %v1590
    %3042 = vmatprep.subr.bf16.mxu0 %v1595
    %3043 = vmatpush1.bf16.msra.mxu0 %v1594
    %3044 = vmatprep.subr.bf16.mxu0 %v1599
    %3045 = vmatpush1.bf16.msra.mxu0 %v1598
    %3046 = vmatprep.subr.bf16.mxu0 %v1603
    %3047 = vmatpush1.bf16.msra.mxu0 %v1602
    %3048 = vmatprep.subr.bf16.mxu0 %v1607
    %3049 = vmatpush1.bf16.msra.mxu0 %v1606
    %3050 = vmatprep.subr.bf16.mxu0 %v1611
    %3051 = vmatpush1.bf16.msra.mxu0 %v1610
    %3052 = vmatprep.subr.bf16.mxu0 %v1615
    %3053 = vmatpush1.bf16.msra.mxu0 %v1614
    %3054 = vmatprep.subr.bf16.mxu0 %v1619
    %3055 = vmatpush1.bf16.msra.mxu0 %v1618
    %3056 = vmatprep.mubr.bf16.mxu0 %v3022
    %3057 = vmatmul.mubr.bf16.gmra.mrb[0].mxu0 %v2901
    %v3058 = vpop.f32.mrb[0].mxu0
    %v3059 = vadd.f32 %v1349, %v3058
    %v3060 = vpop.f32.mrb[0].mxu0
    %v3061 = vadd.f32 %v1353, %v3060
    %v3062 = vpop.f32.mrb[0].mxu0
    %v3063 = vpop.f32.mrb[0].mxu0
    %3064 = vdwg.mxu0
    %3065 = vmatprep.subr.bf16.mxu0 %v1561
    %3066 = vmatpush1.bf16.msra.mxu0 %v1560
    %3067 = vmatprep.subr.bf16.mxu0 %v1565
    %3068 = vmatpush1.bf16.msra.mxu0 %v1564
    %3069 = vmatprep.subr.bf16.mxu0 %v1569
    %3070 = vmatpush1.bf16.msra.mxu0 %v1568
    %3071 = vmatprep.subr.bf16.mxu0 %v1573
    %3072 = vmatpush1.bf16.msra.mxu0 %v1572
    %3073 = vmatprep.subr.bf16.mxu0 %v1577
    %3074 = vmatpush1.bf16.msra.mxu0 %v1576
    %3075 = vmatprep.subr.bf16.mxu0 %v1581
    %3076 = vmatpush1.bf16.msra.mxu0 %v1580
    %3077 = vmatprep.subr.bf16.mxu0 %v1585
    %3078 = vmatpush1.bf16.msra.mxu0 %v1584
    %3079 = vmatprep.subr.bf16.mxu0 %v1589
    %3080 = vmatpush1.bf16.msra.mxu0 %v1588
    %3081 = vmatprep.subr.bf16.mxu0 %v1593
    %3082 = vmatpush1.bf16.msra.mxu0 %v1592
    %3083 = vmatprep.subr.bf16.mxu0 %v1597
    %3084 = vmatpush1.bf16.msra.mxu0 %v1596
    %3085 = vmatprep.subr.bf16.mxu0 %v1601
    %3086 = vmatpush1.bf16.msra.mxu0 %v1600
    %3087 = vmatprep.subr.bf16.mxu0 %v1605
    %3088 = vmatpush1.bf16.msra.mxu0 %v1604
    %3089 = vmatprep.subr.bf16.mxu0 %v1609
    %3090 = vmatpush1.bf16.msra.mxu0 %v1608
    %3091 = vmatprep.subr.bf16.mxu0 %v1613
    %3092 = vmatpush1.bf16.msra.mxu0 %v1612
    %3093 = vmatprep.subr.bf16.mxu0 %v1617
    %3094 = vmatpush1.bf16.msra.mxu0 %v1616
    %3095 = vmatprep.subr.bf16.mxu0 %v1621
    %3096 = vmatpush1.bf16.msra.mxu0 %v1620
    %3097 = vmatprep.mubr.bf16.mxu0 %v3022
    %3098 = vmatmul.mubr.bf16.gmra.mrb[0].mxu0 %v2901
    %v3099 = vpop.f32.mrb[0].mxu0
    %v3100 = vadd.f32 %v1357, %v3099
    %v3101 = vpop.f32.mrb[0].mxu0
    %v3102 = vadd.f32 %v1361, %v3101
    %v3103 = vpop.f32.mrb[0].mxu0
    %v3104 = vpop.f32.mrb[0].mxu0
    %3105 = vdwg.mxu0
    %v3106 = vxor.u32 %v3059, 2147483648
    %v3107 = vmul.f32 %v3106, 1.442695
    %v3108 = vpow.pop %v3107
    %v3109 = vadd.f32 %v3108, 1.0
    %v3110 = vrcp.pop %v3109
    %v3111 = vmul.f32 1.0, %v3110
    %v3112 = vxor.u32 %v3061, 2147483648
    %v3113 = vmul.f32 %v3112, 1.442695
    %v3114 = vpow.pop %v3113
    %v3115 = vadd.f32 %v3114, 1.0
    %v3116 = vrcp.pop %v3115
    %v3117 = vmul.f32 1.0, %v3116
    %v3118 = vmul.f32 %v3111, %v3102
    %v3119 = vadd.f32 %v3100, %v3118
    %v3120 = vtanh.pop %v3119
    %v3121 = vsub.f32 1.0, %v3117
    %v3122 = vmul.f32 %v3121, %v3120
    %v3123 = vmul.f32 %v3117, %v2898
    %v3124 = vadd.f32 %v3122, %v3123
    %v3126 = vrot.slane %v3124, 2
    %v3128 = vpack.c.bf16 %v3016, %v3016
    %v3129 = vpack.c.bf16 %v3126, %v3126
    %v3132 = vrot.slane %v3128, 3
    %v3133 = vrot.slane %v3129, 3
    %3136 = vmatprep.subr.bf16.mxu0 %v1559
    %3137 = vmatpush1.bf16.msra.mxu0 %v1558
    %3138 = vmatprep.subr.bf16.mxu0 %v1563
    %3139 = vmatpush1.bf16.msra.mxu0 %v1562
    %3140 = vmatprep.subr.bf16.mxu0 %v1567
    %3141 = vmatpush1.bf16.msra.mxu0 %v1566
    %3142 = vmatprep.subr.bf16.mxu0 %v1571
    %3143 = vmatpush1.bf16.msra.mxu0 %v1570
    %3144 = vmatprep.subr.bf16.mxu0 %v1575
    %3145 = vmatpush1.bf16.msra.mxu0 %v1574
    %3146 = vmatprep.subr.bf16.mxu0 %v1579
    %3147 = vmatpush1.bf16.msra.mxu0 %v1578
    %3148 = vmatprep.subr.bf16.mxu0 %v1583
    %3149 = vmatpush1.bf16.msra.mxu0 %v1582
    %3150 = vmatprep.subr.bf16.mxu0 %v1587
    %3151 = vmatpush1.bf16.msra.mxu0 %v1586
    %3152 = vmatprep.subr.bf16.mxu0 %v1591
    %3153 = vmatpush1.bf16.msra.mxu0 %v1590
    %3154 = vmatprep.subr.bf16.mxu0 %v1595
    %3155 = vmatpush1.bf16.msra.mxu0 %v1594
    %3156 = vmatprep.subr.bf16.mxu0 %v1599
    %3157 = vmatpush1.bf16.msra.mxu0 %v1598
    %3158 = vmatprep.subr.bf16.mxu0 %v1603
    %3159 = vmatpush1.bf16.msra.mxu0 %v1602
    %3160 = vmatprep.subr.bf16.mxu0 %v1607
    %3161 = vmatpush1.bf16.msra.mxu0 %v1606
    %3162 = vmatprep.subr.bf16.mxu0 %v1611
    %3163 = vmatpush1.bf16.msra.mxu0 %v1610
    %3164 = vmatprep.subr.bf16.mxu0 %v1615
    %3165 = vmatpush1.bf16.msra.mxu0 %v1614
    %3166 = vmatprep.subr.bf16.mxu0 %v1619
    %3167 = vmatpush1.bf16.msra.mxu0 %v1618
    %3168 = vmatprep.mubr.bf16.mxu0 %v3133
    %3169 = vmatmul.mubr.bf16.gmra.mrb[0].mxu0 %v3132
    %v3170 = vpop.f32.mrb[0].mxu0
    %v3171 = vadd.f32 %v1349, %v3170
    %v3172 = vpop.f32.mrb[0].mxu0
    %v3173 = vadd.f32 %v1353, %v3172
    %v3174 = vpop.f32.mrb[0].mxu0
    %v3175 = vpop.f32.mrb[0].mxu0
    %3176 = vdwg.mxu0
    %3177 = vmatprep.subr.bf16.mxu0 %v1561
    %3178 = vmatpush1.bf16.msra.mxu0 %v1560
    %3179 = vmatprep.subr.bf16.mxu0 %v1565
    %3180 = vmatpush1.bf16.msra.mxu0 %v1564
    %3181 = vmatprep.subr.bf16.mxu0 %v1569
    %3182 = vmatpush1.bf16.msra.mxu0 %v1568
    %3183 = vmatprep.subr.bf16.mxu0 %v1573
    %3184 = vmatpush1.bf16.msra.mxu0 %v1572
    %3185 = vmatprep.subr.bf16.mxu0 %v1577
    %3186 = vmatpush1.bf16.msra.mxu0 %v1576
    %3187 = vmatprep.subr.bf16.mxu0 %v1581
    %3188 = vmatpush1.bf16.msra.mxu0 %v1580
    %3189 = vmatprep.subr.bf16.mxu0 %v1585
    %3190 = vmatpush1.bf16.msra.mxu0 %v1584
    %3191 = vmatprep.subr.bf16.mxu0 %v1589
    %3192 = vmatpush1.bf16.msra.mxu0 %v1588
    %3193 = vmatprep.subr.bf16.mxu0 %v1593
    %3194 = vmatpush1.bf16.msra.mxu0 %v1592
    %3195 = vmatprep.subr.bf16.mxu0 %v1597
    %3196 = vmatpush1.bf16.msra.mxu0 %v1596
    %3197 = vmatprep.subr.bf16.mxu0 %v1601
    %3198 = vmatpush1.bf16.msra.mxu0 %v1600
    %3199 = vmatprep.subr.bf16.mxu0 %v1605
    %3200 = vmatpush1.bf16.msra.mxu0 %v1604
    %3201 = vmatprep.subr.bf16.mxu0 %v1609
    %3202 = vmatpush1.bf16.msra.mxu0 %v1608
    %3203 = vmatprep.subr.bf16.mxu0 %v1613
    %3204 = vmatpush1.bf16.msra.mxu0 %v1612
    %3205 = vmatprep.subr.bf16.mxu0 %v1617
    %3206 = vmatpush1.bf16.msra.mxu0 %v1616
    %3207 = vmatprep.subr.bf16.mxu0 %v1621
    %3208 = vmatpush1.bf16.msra.mxu0 %v1620
    %3209 = vmatprep.mubr.bf16.mxu0 %v3133
    %3210 = vmatmul.mubr.bf16.gmra.mrb[0].mxu0 %v3132
    %v3211 = vpop.f32.mrb[0].mxu0
    %v3212 = vadd.f32 %v1357, %v3211
    %v3213 = vpop.f32.mrb[0].mxu0
    %v3214 = vadd.f32 %v1361, %v3213
    %v3215 = vpop.f32.mrb[0].mxu0
    %v3216 = vpop.f32.mrb[0].mxu0
    %3217 = vdwg.mxu0
    %v3218 = vxor.u32 %v3171, 2147483648
    %v3219 = vmul.f32 %v3218, 1.442695
    %v3220 = vpow.pop %v3219
    %v3221 = vadd.f32 %v3220, 1.0
    %v3222 = vrcp.pop %v3221
    %v3223 = vmul.f32 1.0, %v3222
    %v3224 = vxor.u32 %v3173, 2147483648
    %v3225 = vmul.f32 %v3224, 1.442695
    %v3226 = vpow.pop %v3225
    %v3227 = vadd.f32 %v3226, 1.0
    %v3228 = vrcp.pop %v3227
    %v3229 = vmul.f32 1.0, %v3228
    %v3230 = vmul.f32 %v3223, %v3214
    %v3231 = vadd.f32 %v3212, %v3230
    %v3232 = vtanh.pop %v3231
    %v3233 = vsub.f32 1.0, %v3229
    %v3234 = vmul.f32 %v3233, %v3232
    %v3235 = vmul.f32 %v3229, %v3124
    %v3236 = vadd.f32 %v3234, %v3235
    %v3237 = vmul.f32 %v3236, %v3236
    %vm3238 = vcmask 1041408
    %v3239 = vsel %vm3238, %v3237, 0.0
    %3240 = vadd.xlane.f32.xlu0 %v3239
    %v3241 = vpop.xlane.xlu0 %3240
    %v3242 = vmax.f32 %v3241, 1e-24
    %v3243 = vrsqrt.pop %v3242
    %v3244 = vmul.f32 %v3236, %v3243
    %v3245 = vpack.c.bf16 %v3244, %v3244
    %v3246 = vld [vmem:[#allocation14] sm:$0xf]
    %v3247 = vld [vmem:[#allocation14 + $0x4] sm:$0xf]
    %v3248 = vld [vmem:[#allocation14 + $0x8] sm:$0xf]
    %v3249 = vld [vmem:[#allocation14 + $0xc] sm:$0xf]
    %v3250 = vld [vmem:[#allocation14 + $0x10] sm:$0xf]
    %v3251 = vld [vmem:[#allocation14 + $0x14] sm:$0xf]
    %v3252 = vld [vmem:[#allocation14 + $0x18] sm:$0xf]
    %v3253 = vld [vmem:[#allocation14 + $0x1c] sm:$0xf]
    %v3254 = vld [vmem:[#allocation14 + $0x20] sm:$0xf]
    %v3255 = vld [vmem:[#allocation14 + $0x24] sm:$0xf]
    %v3256 = vld [vmem:[#allocation14 + $0x28] sm:$0xf]
    %v3257 = vld [vmem:[#allocation14 + $0x2c] sm:$0xf]
    %v3258 = vld [vmem:[#allocation14 + $0x30] sm:$0xf]
    %v3259 = vld [vmem:[#allocation14 + $0x34] sm:$0xf]
    %v3260 = vld [vmem:[#allocation14 + $0x38] sm:$0xf]
    %v3261 = vld [vmem:[#allocation14 + $0x3c] sm:$0xf]
    %v3262 = vld [vmem:[%s12] sm:$0x1]
    %v3264 = vlaneseq
    %v3265 = vshrl.u32 %v3264, 7
    %v3266 = vsub.s32 0, %v3265
    %v3267 = vrot.slane %v3262, %v3266
    %v3285 = vunpack.c.l.b16 %v3246
    %v3286 = vunpack.c.l.b16 %v3247
    %v3287 = vunpack.c.l.b16 %v3248
    %v3288 = vunpack.c.l.b16 %v3249
    %v3289 = vunpack.c.l.b16 %v3250
    %v3290 = vunpack.c.l.b16 %v3251
    %v3291 = vunpack.c.l.b16 %v3252
    %v3292 = vunpack.c.l.b16 %v3253
    %v3293 = vunpack.c.l.b16 %v3254
    %v3294 = vunpack.c.l.b16 %v3255
    %v3295 = vunpack.c.l.b16 %v3256
    %v3296 = vunpack.c.l.b16 %v3257
    %v3297 = vunpack.c.l.b16 %v3258
    %v3298 = vunpack.c.l.b16 %v3259
    %v3299 = vunpack.c.l.b16 %v3260
    %v3300 = vunpack.c.l.b16 %v3261
    %v3301 = vpack.c.b16 %v3286, %v3285
    %v3302 = vpack.c.b16 %v3288, %v3287
    %v3303 = vpack.c.b16 %v3290, %v3289
    %v3304 = vpack.c.b16 %v3292, %v3291
    %v3305 = vpack.c.b16 %v3294, %v3293
    %v3306 = vpack.c.b16 %v3296, %v3295
    %v3307 = vpack.c.b16 %v3298, %v3297
    %v3308 = vpack.c.b16 %v3300, %v3299
    %3317 = vmatprep.subr.bf16.mxu0 0
    %3318 = vmatpush1.bf16.msra.mxu0 %v3301
    %3319 = vmatprep.subr.bf16.mxu0 0
    %3320 = vmatpush1.bf16.msra.mxu0 %v3302
    %3321 = vmatprep.subr.bf16.mxu0 0
    %3322 = vmatpush1.bf16.msra.mxu0 %v3303
    %3323 = vmatprep.subr.bf16.mxu0 0
    %3324 = vmatpush1.bf16.msra.mxu0 %v3304
    %3325 = vmatprep.subr.bf16.mxu0 0
    %3326 = vmatpush1.bf16.msra.mxu0 %v3305
    %3327 = vmatprep.subr.bf16.mxu0 0
    %3328 = vmatpush1.bf16.msra.mxu0 %v3306
    %3329 = vmatprep.subr.bf16.mxu0 0
    %3330 = vmatpush1.bf16.msra.mxu0 %v3307
    %3331 = vmatprep.subr.bf16.mxu0 0
    %3332 = vmatpush1.bf16.msra.mxu0 %v3308
    %3333 = vmatprep.subr.bf16.mxu0 0
    %3334 = vmatpush1.bf16.msra.mxu0 0
    %3335 = vmatprep.subr.bf16.mxu0 0
    %3336 = vmatpush1.bf16.msra.mxu0 0
    %3337 = vmatprep.subr.bf16.mxu0 0
    %3338 = vmatpush1.bf16.msra.mxu0 0
    %3339 = vmatprep.subr.bf16.mxu0 0
    %3340 = vmatpush1.bf16.msra.mxu0 0
    %3341 = vmatprep.subr.bf16.mxu0 0
    %3342 = vmatpush1.bf16.msra.mxu0 0
    %3343 = vmatprep.subr.bf16.mxu0 0
    %3344 = vmatpush1.bf16.msra.mxu0 0
    %3345 = vmatprep.subr.bf16.mxu0 0
    %3346 = vmatpush1.bf16.msra.mxu0 0
    %3347 = vmatprep.subr.bf16.mxu0 0
    %3348 = vmatpush1.bf16.msra.mxu0 0
    %3349 = vmatprep.mubr.bf16.mxu0 0
    %3350 = vmatmul.mubr.bf16.gmra.mrb[0].mxu0 %v3245
    %v3351 = vpop.f32.mrb[0].mxu0
    %v3352 = vadd.f32 %v3267, %v3351
    %v3353 = vpop.f32.mrb[0].mxu0
    %v3354 = vpop.f32.mrb[0].mxu0
    %v3355 = vpop.f32.mrb[0].mxu0
    %3356 = vdwg.mxu0
    %3357 = vst [vmem:[#allocation16] sm:$0x3] %v3352
    // Predicated region
    $region86: #{tpu_custom_call.1} parent=1 // pred_check
      _
    $region87: #{tpu_custom_call.1} parent=1 // pred_check_branch
      %3359 = sbr.rel (0) target = $region89
    $region88: #{tpu_custom_call.1} parent=1 // pred_region
      %s3361 = ssub.s32 32, 32
      %3362 = vsyncadd [#allocation4], %s3361
      %s3364 = sshll.u32 [#allocation16], 4
      %s3365 = int_to_ptr.vmem [resolvable:$true] %s3364
      %3367 = dma.vmem_to_hbm [thread:$0]  %s3365, 32, %s13, [#allocation4]
    $region89: #{tpu_custom_call.1} parent=1 // pred_fallthru
      _
    // Predicated region
    $region90: #{tpu_custom_call.1} parent=1 // pred_check
      _
    $region91: #{tpu_custom_call.1} parent=1 // pred_check_branch
      %3369 = sbr.rel (0) target = $region93
    $region92: #{tpu_custom_call.1} parent=1 // pred_region
      %3370 = dma.done [#allocation4], 32
    $region93: #{tpu_custom_call.1} parent=1 // pred_fallthru
      _
    %3371 = vsyncpa [#allocation3], 1
    %3372 = vsyncpa [#allocation6], 1
    %3373 = vsyncpa [#allocation9], 1
    %3374 = vsyncpa [#allocation12], 1
    %3375 = vsyncpa [#allocation15], 1
    %3376 = vsyncpa [#allocation4], 1

</llo_original>
